<compile_context>
chip_gen: v5e
topology: v5e:2x2
jax: 0.10.0
libtpu: 0.0.40
codegen_flags: <defaults>
</compile_context>

<pallas_src>
import numpy as np

import jax
import jax.numpy as jnp
from jax.experimental import pallas as pl
from jax.experimental.pallas import tpu as pltpu


GELU_GAMMA = 1.7015043497085571   # variance-preserving GELU gain used by NFNets
ALPHA = 0.2                       # NFNet residual alpha
BETA = 1.0                        # expected-std scaling for the first block
SE_GAIN = 2.0                     # attn_gain in timm's NormFreeBlock
SKIP_GAIN = 1.0                   # skip-init gain (synthetic value)
OUT_DIM = 3                       # num_classes of the wrapper
OUT_PAD = 128                     # lane-dense classifier width (sliced outside)


# -----------------------------------------------------------------------------
# small helpers: generation-aware VMEM budget and tile picking
# -----------------------------------------------------------------------------

def _vmem_limit_bytes():
    try:
        cap = int(pltpu.get_tpu_info().vmem_capacity_bytes)
    except Exception:
        cap = 64 * 1024 * 1024
    # leave headroom: half the physical capacity, capped at 64 MiB
    return min(cap // 2, 64 * 1024 * 1024)


def _pick_row_tile(total, row_bytes, cap_rows=1024):
    """Largest multiple-of-8 divisor of `total` whose double-buffered blocks fit
    a fraction of the per-generation VMEM budget (v7x: 64 MiB, v5e/v6e: 128 MiB)."""
    budget = _vmem_limit_bytes() // 4
    cap = cap_rows
    while cap > 8 and 4 * cap * row_bytes > budget:   # 2 bufs x (in + out)
        cap //= 2
    hi = min(cap, total)
    hi -= hi % 8
    for t in range(hi, 7, -8):
        if total % t == 0:
            return t
    return total


def _cparams(semantics):
    return pltpu.CompilerParams(dimension_semantics=semantics,
                                vmem_limit_bytes=_vmem_limit_bytes())


# -----------------------------------------------------------------------------
# Pallas kernels
# -----------------------------------------------------------------------------

def _conv_kernel(kh, kw, oh, ow, act):
    """kxk stride-1 conv on one image: tap-accumulated MXU matmuls (in-kernel
    patch extraction), fused bias + GELU*gamma epilogue."""
    def kernel(x_ref, w_ref, b_ref, o_ref):
        xv = x_ref[0]                                       # (Hp, Wp, Cin), bf16
        acc = None
        for a in range(kh):
            for b in range(kw):
                win = xv[a:a + oh, b:b + ow, :]
                win = win.reshape(oh * ow, win.shape[-1])
                part = jnp.dot(win, w_ref[a * kw + b],
                               preferred_element_type=jnp.float32)
                acc = part if acc is None else acc + part   # no extra zeros pass
        acc = acc + b_ref[...]
        if act:
            acc = jax.nn.gelu(acc, approximate=True) * GELU_GAMMA
        o_ref[0] = acc.astype(o_ref.dtype)
    return kernel


def pallas_conv(x_padded, w_taps, bias, kh, kw, act=True):
    """x_padded: (N, Hp, Wp, Cin) already border-padded; returns (N, OH*OW, Cout)."""
    n, hp, wp, cin = x_padded.shape
    cout = w_taps.shape[-1]
    oh, ow = hp - kh + 1, wp - kw + 1
    return pl.pallas_call(
        _conv_kernel(kh, kw, oh, ow, act),
        out_shape=jax.ShapeDtypeStruct((n, oh * ow, cout), x_padded.dtype),
        grid=(n,),
        in_specs=[
            pl.BlockSpec((1, hp, wp, cin), lambda i: (i, 0, 0, 0)),
            pl.BlockSpec(w_taps.shape, lambda i: (0, 0, 0)),
            pl.BlockSpec((1, cout), lambda i: (0, 0)),
        ],
        out_specs=pl.BlockSpec((1, oh * ow, cout), lambda i: (i, 0, 0)),
        compiler_params=_cparams(("parallel",)),
    )(x_padded, w_taps, bias)


def _rows_kernel(pre_scale, post_act):
    """1x1 conv as an M-tiled matmul; optional fused pre-activation (act*beta)
    and fused GELU*gamma epilogue."""
    def kernel(x_ref, w_ref, b_ref, o_ref):
        x = x_ref[...].astype(jnp.float32)
        if pre_scale is not None:
            x = jax.nn.gelu(x, approximate=True) * pre_scale
        y = jnp.dot(x.astype(w_ref.dtype), w_ref[...],
                    preferred_element_type=jnp.float32) + b_ref[...]
        if post_act:
            y = jax.nn.gelu(y, approximate=True) * GELU_GAMMA
        o_ref[...] = y.astype(o_ref.dtype)
    return kernel


def pallas_rows_matmul(x2d, w, bias, pre_scale=None, post_act=False,
                       out_dtype=jnp.bfloat16):
    m, k = x2d.shape
    nout = w.shape[1]
    tm = _pick_row_tile(m, 4 * (k + nout))
    return pl.pallas_call(
        _rows_kernel(pre_scale, post_act),
        out_shape=jax.ShapeDtypeStruct((m, nout), out_dtype),
        grid=(m // tm,),
        in_specs=[
            pl.BlockSpec((tm, k), lambda i: (i, 0)),
            pl.BlockSpec((k, nout), lambda i: (0, 0)),
            pl.BlockSpec((1, nout), lambda i: (0, 0)),
        ],
        out_specs=pl.BlockSpec((tm, nout), lambda i: (i, 0)),
        compiler_params=_cparams(("parallel",)),
    )(x2d, w, bias)


def _proj_gap_kernel(x_ref, w_ref, b_ref, y_ref, p_ref):
    """1x1 project conv with the SE global-average-pool (spatial sum) fused into
    its epilogue; pooled sums accumulated across the spatial grid axis."""
    t = pl.program_id(1)
    y = jnp.dot(x_ref[0], w_ref[...],
                preferred_element_type=jnp.float32) + b_ref[...]
    y_ref[0] = y.astype(y_ref.dtype)
    psum = jnp.sum(y, axis=0, keepdims=True)               # (1, Cout)

    @pl.when(t == 0)
    def _():
        p_ref[0] = psum

    @pl.when(t != 0)
    def _():
        p_ref[0] = p_ref[0] + psum


def pallas_proj_gap(x3d, w, bias):
    n, hw, c = x3d.shape
    cout = w.shape[1]
    thw = _pick_row_tile(hw, 4 * (c + cout))
    return pl.pallas_call(
        _proj_gap_kernel,
        out_shape=(jax.ShapeDtypeStruct((n, hw, cout), x3d.dtype),
                   jax.ShapeDtypeStruct((n, 1, cout), jnp.float32)),
        grid=(n, hw // thw),
        in_specs=[
            pl.BlockSpec((1, thw, c), lambda i, t: (i, t, 0)),
            pl.BlockSpec((c, cout), lambda i, t: (0, 0)),
            pl.BlockSpec((1, cout), lambda i, t: (0, 0)),
        ],
        out_specs=(pl.BlockSpec((1, thw, cout), lambda i, t: (i, t, 0)),
                   pl.BlockSpec((1, 1, cout), lambda i, t: (i, 0, 0))),
        compiler_params=_cparams(("parallel", "arbitrary")),
    )(x3d, w, bias)


def _se_kernel(inv_hw, gate_scale):
    """GAP-mean -> SE reduce (ReLU) -> SE expand (sigmoid) in one tiny kernel.
    The 2x attn gain, block alpha and skip-init gain are folded into the gate."""
    def kernel(p_ref, w1_ref, b1_ref, w2_ref, b2_ref, g_ref):
        mean = p_ref[...] * inv_hw
        s = jnp.dot(mean, w1_ref[...],
                    preferred_element_type=jnp.float32) + b1_ref[...]
        s = jnp.maximum(s, 0.0)
        g = jax.nn.sigmoid(jnp.dot(s, w2_ref[...],
                                   preferred_element_type=jnp.float32) + b2_ref[...])
        g_ref[...] = g * gate_scale
    return kernel


def pallas_se_gate(pooled_sum, hw, w1, b1, w2, b2, gate_scale):
    n, c = pooled_sum.shape
    vmem = pl.BlockSpec(memory_space=pltpu.MemorySpace.VMEM)
    return pl.pallas_call(
        _se_kernel(1.0 / hw, gate_scale),
        out_shape=jax.ShapeDtypeStruct((n, c), jnp.float32),
        in_specs=[vmem] * 5,
        out_specs=vmem,
        compiler_params=pltpu.CompilerParams(vmem_limit_bytes=_vmem_limit_bytes()),
    )(pooled_sum, w1, b1, w2, b2)


def _tail_kernel(inv_hw):
    """NF-block tail (gate*h + shortcut) fused with the head 1x1 conv + GELU,
    global average pool (accumulated in a VMEM scratch across spatial tiles) and
    the lane-dense classifier matmul on the last spatial tile.  The block output
    and head feature map never touch HBM."""
    def kernel(h_ref, s_ref, g_ref, hw_ref, hb_ref, cw_ref, cb_ref,
               o_ref, acc_ref):
        t = pl.program_id(1)
        nt = pl.num_programs(1)
        h = h_ref[0].astype(jnp.float32)
        sc = s_ref[0].astype(jnp.float32)
        g = g_ref[0]                                        # (1, C), f32
        blk = h * g + sc                                    # NF residual add
        f = jnp.dot(blk.astype(hw_ref.dtype), hw_ref[...],
                    preferred_element_type=jnp.float32) + hb_ref[...]
        f = jax.nn.gelu(f, approximate=True) * GELU_GAMMA
        psum = jnp.sum(f, axis=0, keepdims=True)            # (1, Cf)

        @pl.when(t == 0)
        def _():
            acc_ref[...] = psum

        @pl.when(t != 0)
        def _():
            acc_ref[...] = acc_ref[...] + psum

        @pl.when(t == nt - 1)
        def _():
            mean = acc_ref[...] * inv_hw
            logits = jnp.dot(mean.astype(cw_ref.dtype), cw_ref[...],
                             preferred_element_type=jnp.float32) + cb_ref[...]
            o_ref[0] = logits
    return kernel


def pallas_block_tail_head(h3d, shortcut3d, gate, head_w, head_b, cls_w, cls_b):
    n, hw, c = h3d.shape
    cf = head_w.shape[1]
    ncls = cls_w.shape[1]
    thw = _pick_row_tile(hw, 4 * (3 * c + cf))
    return pl.pallas_call(
        _tail_kernel(1.0 / hw),
        out_shape=jax.ShapeDtypeStruct((n, 1, ncls), jnp.float32),
        grid=(n, hw // thw),
        in_specs=[
            pl.BlockSpec((1, thw, c), lambda i, t: (i, t, 0)),
            pl.BlockSpec((1, thw, c), lambda i, t: (i, t, 0)),
            pl.BlockSpec((1, 1, c), lambda i, t: (i, 0, 0)),
            pl.BlockSpec((c, cf), lambda i, t: (0, 0)),
            pl.BlockSpec((1, cf), lambda i, t: (0, 0)),
            pl.BlockSpec((cf, ncls), lambda i, t: (0, 0)),
            pl.BlockSpec((1, ncls), lambda i, t: (0, 0)),
        ],
        out_specs=pl.BlockSpec((1, 1, ncls), lambda i, t: (i, 0, 0)),
        scratch_shapes=[pltpu.VMEM((1, cf), jnp.float32)],
        compiler_params=_cparams(("parallel", "arbitrary")),
    )(h3d, shortcut3d, gate, head_w, head_b, cls_w, cls_b)


# -----------------------------------------------------------------------------
# Glue: ScaledStdConv weight folding, stem stride-2 rearrangement, parameters
# -----------------------------------------------------------------------------

def _standardize(w, eps=1e-5):
    """Inference-time ScaledStdConv2d fold (per-out-channel weight standardization)."""
    fan_in = int(np.prod(w.shape[:-1]))
    ax = tuple(range(w.ndim - 1))
    mean = w.mean(axis=ax, keepdims=True)
    var = w.var(axis=ax, keepdims=True)
    return ((w - mean) / np.sqrt((var + eps) * fan_in)).astype(np.float32)


def _stem_s2d_weight(w3):
    """Rearrange a 3x3 stride-2 (pad=1) conv weight into the equivalent 2x2
    stride-1 weight acting on the factor-2 space-to-depth input."""
    _, _, cin, cout = w3.shape
    w2 = np.zeros((2, 2, 2, 2, cin, cout), np.float32)
    amap = {(0, 1): 0, (1, 0): 1, (1, 1): 2}   # (macro offset, sub pos) -> 3x3 tap
    for (p, sa), a in amap.items():
        for (q, sb), b in amap.items():
            w2[p, q, sa, sb] = w3[a, b]
    return w2.reshape(4, 4 * cin, cout)


def make_params(key, c_in=3, c_body=128, c_se=64, c_head=256,
                out_dim=OUT_DIM, out_pad=OUT_PAD):
    ks = jax.random.split(key, 16)

    def nrm(k, shape, s=0.1):
        return np.asarray(jax.random.normal(k, shape, jnp.float32) * s)

    p = {}
    # stem: one ScaledStdConv2d 3x3 s2 (real f6 stem has 4 convs: 16/32/64/128)
    w_stem3 = _standardize(nrm(ks[0], (3, 3, c_in, c_body)))
    p["stem_w"] = jnp.asarray(_stem_s2d_weight(w_stem3), jnp.bfloat16)
    p["stem_b"] = jnp.asarray(nrm(ks[1], (1, c_body)), jnp.float32)
    # NF block convs (1x1 -> 3x3 -> 1x1)
    p["c1_w"] = jnp.asarray(_standardize(nrm(ks[2], (c_body, c_body))), jnp.bfloat16)
    p["c1_b"] = jnp.asarray(nrm(ks[3], (1, c_body)), jnp.float32)
    w2 = _standardize(nrm(ks[4], (3, 3, c_body, c_body)))
    p["c2_w"] = jnp.asarray(w2.reshape(9, c_body, c_body), jnp.bfloat16)
    p["c2_b"] = jnp.asarray(nrm(ks[5], (1, c_body)), jnp.float32)
    p["c3_w"] = jnp.asarray(_standardize(nrm(ks[6], (c_body, c_body))), jnp.bfloat16)
    p["c3_b"] = jnp.asarray(nrm(ks[7], (1, c_body)), jnp.float32)
    # squeeze-excite (1x1 convs on the pooled vector)
    p["se1_w"] = jnp.asarray(nrm(ks[8], (c_body, c_se)), jnp.float32)
    p["se1_b"] = jnp.asarray(nrm(ks[9], (1, c_se)), jnp.float32)
    p["se2_w"] = jnp.asarray(nrm(ks[10], (c_se, c_body)), jnp.float32)
    p["se2_b"] = jnp.asarray(nrm(ks[11], (1, c_body)), jnp.float32)
    # head 1x1 conv + classifier (classifier padded to a lane-dense 128 columns)
    p["head_w"] = jnp.asarray(_standardize(nrm(ks[12], (c_body, c_head))), jnp.bfloat16)
    p["head_b"] = jnp.asarray(nrm(ks[13], (1, c_head)), jnp.float32)
    cls_w = np.zeros((c_head, out_pad), np.float32)
    cls_w[:, :out_dim] = nrm(ks[14], (c_head, out_dim))
    cls_b = np.zeros((1, out_pad), np.float32)
    cls_b[:, :out_dim] = nrm(ks[15], (1, out_dim))
    p["cls_w"] = jnp.asarray(cls_w, jnp.bfloat16)
    p["cls_b"] = jnp.asarray(cls_b, jnp.float32)
    return p


# -----------------------------------------------------------------------------
# Forward pass
# -----------------------------------------------------------------------------

@jax.jit
def nfnet_forward(x_nchw, params):
    n, c, hgt, wid = x_nchw.shape
    # NCHW -> NHWC, then a bijective space-to-depth (factor 2) so the stride-2
    # stem conv becomes a stride-1 2x2 tap-accumulated matmul inside the kernel
    # (no 9x im2col blow-up in HBM).
    x = jnp.transpose(x_nchw, (0, 2, 3, 1)).astype(jnp.float32)
    hm, wm = hgt // 2, wid // 2
    x = x.reshape(n, hm, 2, wm, 2, c).transpose(0, 1, 3, 2, 4, 5)
    x = x.reshape(n, hm, wm, 4 * c)
    x = jnp.pad(x, ((0, 0), (1, 0), (1, 0), (0, 0))).astype(jnp.bfloat16)

    # --- stem: ScaledStdConv 3x3 s2 + GELU*gamma ------------------------------
    y0_flat = pallas_conv(x, params["stem_w"], params["stem_b"], kh=2, kw=2,
                          act=True)                         # (N, hm*wm, C) bf16
    hw = hm * wm
    cb = y0_flat.shape[-1]

    # --- one NF block (stride 1, no downsample): shortcut = stem output -------
    # conv1 1x1 with fused pre-activation act1(x)*beta and fused act2 epilogue
    y1 = pallas_rows_matmul(y0_flat.reshape(n * hw, cb),
                            params["c1_w"], params["c1_b"],
                            pre_scale=GELU_GAMMA * BETA, post_act=True)
    # conv2 3x3 (grouped 3x3 in the real net) with fused act3 epilogue
    y1p = jnp.pad(y1.reshape(n, hm, wm, cb), ((0, 0), (1, 1), (1, 1), (0, 0)))
    y2_flat = pallas_conv(y1p, params["c2_w"], params["c2_b"], kh=3, kw=3,
                          act=True)                         # (N, hw, C) bf16
    # conv3 1x1 with the SE global-average-pool fused into its epilogue
    y3, pooled = pallas_proj_gap(y2_flat, params["c3_w"], params["c3_b"])
    # SE MLP in one tiny kernel; attn gain, alpha and skip-init folded into gate
    gate = pallas_se_gate(pooled.reshape(n, cb), hw,
                          params["se1_w"], params["se1_b"],
                          params["se2_w"], params["se2_b"],
                          gate_scale=SE_GAIN * ALPHA * SKIP_GAIN)
    # block tail + head conv + GELU + GAP + classifier, all fused
    logits_pad = pallas_block_tail_head(
        y3, y0_flat, gate.reshape(n, 1, cb),
        params["head_w"], params["head_b"], params["cls_w"], params["cls_b"])
    return logits_pad.reshape(n, -1)[:, :OUT_DIM]           # (N, 3) f32


if __name__ == "__main__":
    key = jax.random.PRNGKey(0)
    k_x, k_p = jax.random.split(key)
    # small stand-in for the (3, 576, 576) dm_nfnet_f6 eval input
    x = jax.random.normal(k_x, (2, 3, 16, 16), jnp.float32)
    params = make_params(k_p)
    out = jax.block_until_ready(nfnet_forward(x, params))
    assert out.shape == (2, OUT_DIM) and out.dtype == jnp.float32
    print("KERNEL_OK")
</pallas_src>

<mosaic_0001>
module attributes {stable_mosaic.version = 11 : i64} {
  func.func @kernel(%arg0: i32, %arg1: memref<128x128xbf16, #tpu.memory_space<vmem>>, %arg2: memref<128x128xbf16, #tpu.memory_space<vmem>>, %arg3: memref<1x128xf32, #tpu.memory_space<vmem>>, %arg4: memref<128x128xbf16, #tpu.memory_space<vmem>>) attributes {dimension_semantics = [#tpu.dimension_semantics<parallel>], iteration_bounds = array<i64: 1>, scalar_prefetch = 0 : i64, scratch_operands = 0 : i64, tpu.core_type = #tpu.core_type<tc>, window_params = [{transform_indices = @transform_0, window_bounds = array<i64: 128, 128>}, {pipeline_mode = #tpu.pipeline_mode<synchronous>, transform_indices = @transform_1, window_bounds = array<i64: 128, 128>}, {pipeline_mode = #tpu.pipeline_mode<synchronous>, transform_indices = @transform_2, window_bounds = array<i64: 1, 128>}, {transform_indices = @transform_3, window_bounds = array<i64: 128, 128>}]} {
    %c0 = arith.constant 0 : index
    %c0_0 = arith.constant 0 : index
    %0 = vector.load %arg1[%c0, %c0_0] : memref<128x128xbf16, #tpu.memory_space<vmem>>, vector<128x128xbf16>
    %1 = arith.extf %0 : vector<128x128xbf16> to vector<128x128xf32>
    %2 = arith.mulf %1, %1 : vector<128x128xf32>
    %3 = arith.mulf %1, %2 : vector<128x128xf32>
    %cst = arith.constant 4.471500e-02 : f32
    %4 = vector.broadcast %cst : f32 to vector<128x128xf32>
    %5 = arith.mulf %4, %3 : vector<128x128xf32>
    %6 = arith.addf %1, %5 : vector<128x128xf32>
    %cst_1 = arith.constant 0.797884583 : f32
    %7 = vector.broadcast %cst_1 : f32 to vector<128x128xf32>
    %8 = arith.mulf %7, %6 : vector<128x128xf32>
    %9 = math.tanh %8 : vector<128x128xf32>
    %cst_2 = arith.constant 1.000000e+00 : f32
    %10 = vector.broadcast %cst_2 : f32 to vector<128x128xf32>
    %11 = arith.addf %10, %9 : vector<128x128xf32>
    %cst_3 = arith.constant 5.000000e-01 : f32
    %12 = vector.broadcast %cst_3 : f32 to vector<128x128xf32>
    %13 = arith.mulf %12, %11 : vector<128x128xf32>
    %14 = arith.mulf %1, %13 : vector<128x128xf32>
    %cst_4 = arith.constant 1.70150435 : f32
    %15 = vector.broadcast %cst_4 : f32 to vector<128x128xf32>
    %16 = arith.mulf %14, %15 : vector<128x128xf32>
    %17 = arith.truncf %16 : vector<128x128xf32> to vector<128x128xbf16>
    %c0_5 = arith.constant 0 : index
    %c0_6 = arith.constant 0 : index
    %18 = vector.load %arg2[%c0_5, %c0_6] : memref<128x128xbf16, #tpu.memory_space<vmem>>, vector<128x128xbf16>
    %cst_7 = arith.constant dense<0.000000e+00> : vector<128x128xf32>
    %19 = tpu.matmul %17, %18, %cst_7 {dimension_numbers = #tpu.dot_dimension_numbers<[1], [0], [0], [1], [0, 0, 1, 1], [], []>} : vector<128x128xbf16>, vector<128x128xbf16>, vector<128x128xf32> -> vector<128x128xf32>
    %c0_8 = arith.constant 0 : index
    %c0_9 = arith.constant 0 : index
    %20 = vector.load %arg3[%c0_8, %c0_9] : memref<1x128xf32, #tpu.memory_space<vmem>>, vector<1x128xf32>
    %21 = vector.broadcast %20 : vector<1x128xf32> to vector<128x128xf32>
    %22 = arith.addf %19, %21 : vector<128x128xf32>
    %23 = arith.mulf %22, %22 : vector<128x128xf32>
    %24 = arith.mulf %22, %23 : vector<128x128xf32>
    %cst_10 = arith.constant 4.471500e-02 : f32
    %25 = vector.broadcast %cst_10 : f32 to vector<128x128xf32>
    %26 = arith.mulf %25, %24 : vector<128x128xf32>
    %27 = arith.addf %22, %26 : vector<128x128xf32>
    %cst_11 = arith.constant 0.797884583 : f32
    %28 = vector.broadcast %cst_11 : f32 to vector<128x128xf32>
    %29 = arith.mulf %28, %27 : vector<128x128xf32>
    %30 = math.tanh %29 : vector<128x128xf32>
    %cst_12 = arith.constant 1.000000e+00 : f32
    %31 = vector.broadcast %cst_12 : f32 to vector<128x128xf32>
    %32 = arith.addf %31, %30 : vector<128x128xf32>
    %cst_13 = arith.constant 5.000000e-01 : f32
    %33 = vector.broadcast %cst_13 : f32 to vector<128x128xf32>
    %34 = arith.mulf %33, %32 : vector<128x128xf32>
    %35 = arith.mulf %22, %34 : vector<128x128xf32>
    %cst_14 = arith.constant 1.70150435 : f32
    %36 = vector.broadcast %cst_14 : f32 to vector<128x128xf32>
    %37 = arith.mulf %35, %36 : vector<128x128xf32>
    %38 = arith.truncf %37 : vector<128x128xf32> to vector<128x128xbf16>
    %c0_15 = arith.constant 0 : index
    %c0_16 = arith.constant 0 : index
    %39 = vector.load %arg4[%c0_15, %c0_16] : memref<128x128xbf16, #tpu.memory_space<vmem>>, vector<128x128xbf16>
    tpu.vector_store %arg4[%c0_15, %c0_16], %38 {strides = array<i32>} : memref<128x128xbf16, #tpu.memory_space<vmem>>, vector<128x128xbf16>,
    return
  }
  func.func @transform_0(%arg0: i32) -> (i32, i32) {
    %c0_i32 = arith.constant 0 : i32
    %c0_i32_0 = arith.constant 0 : i32
    return %arg0, %c0_i32 : i32, i32
  }
  func.func @transform_1(%arg0: i32) -> (i32, i32) {
    %c0_i32 = arith.constant 0 : i32
    %c0_i32_0 = arith.constant 0 : i32
    %c0_i32_1 = arith.constant 0 : i32
    return %c0_i32, %c0_i32_0 : i32, i32
  }
  func.func @transform_2(%arg0: i32) -> (i32, i32) {
    %c0_i32 = arith.constant 0 : i32
    %c0_i32_0 = arith.constant 0 : i32
    %c0_i32_1 = arith.constant 0 : i32
    return %c0_i32, %c0_i32_0 : i32, i32
  }
  func.func @transform_3(%arg0: i32) -> (i32, i32) {
    %c0_i32 = arith.constant 0 : i32
    %c0_i32_0 = arith.constant 0 : i32
    return %arg0, %c0_i32 : i32, i32
  }
}

module attributes {stable_mosaic.version = 11 : i64} {
  func.func @kernel(%arg0: i32, %arg1: memref<1x9x9x12xbf16, #tpu.memory_space<vmem>>, %arg2: memref<4x12x128xbf16, #tpu.memory_space<vmem>>, %arg3: memref<1x128xf32, #tpu.memory_space<vmem>>, %arg4: memref<1x64x128xbf16, #tpu.memory_space<vmem>>) attributes {dimension_semantics = [#tpu.dimension_semantics<parallel>], iteration_bounds = array<i64: 2>, scalar_prefetch = 0 : i64, scratch_operands = 0 : i64, tpu.core_type = #tpu.core_type<tc>, window_params = [{transform_indices = @transform_0, window_bounds = array<i64: 1, 9, 9, 12>}, {pipeline_mode = #tpu.pipeline_mode<synchronous>, transform_indices = @transform_1, window_bounds = array<i64: 4, 12, 128>}, {pipeline_mode = #tpu.pipeline_mode<synchronous>, transform_indices = @transform_2, window_bounds = array<i64: 1, 128>}, {transform_indices = @transform_3, window_bounds = array<i64: 1, 64, 128>}]} {
    %c0 = arith.constant 0 : index
    %c0_0 = arith.constant 0 : index
    %c0_1 = arith.constant 0 : index
    %c0_2 = arith.constant 0 : index
    %0 = vector.load %arg1[%c0, %c0_0, %c0_1, %c0_2] : memref<1x9x9x12xbf16, #tpu.memory_space<vmem>>, vector<1x9x9x12xbf16>
    %1 = vector.shape_cast %0 : vector<1x9x9x12xbf16> to vector<9x9x12xbf16>
    %2 = vector.extract_strided_slice %1 {offsets = [0, 0, 0], sizes = [8, 8, 12], strides = [1, 1, 1]} : vector<9x9x12xbf16> to vector<8x8x12xbf16>
    %3 = vector.shape_cast %2 : vector<8x8x12xbf16> to vector<64x12xbf16>
    %c0_3 = arith.constant 0 : index
    %c0_4 = arith.constant 0 : index
    %c0_5 = arith.constant 0 : index
    %4 = vector.load %arg2[%c0_3, %c0_4, %c0_5] : memref<4x12x128xbf16, #tpu.memory_space<vmem>>, vector<1x12x128xbf16>
    %5 = vector.shape_cast %4 : vector<1x12x128xbf16> to vector<12x128xbf16>
    %cst = arith.constant dense<0.000000e+00> : vector<64x128xf32>
    %6 = tpu.matmul %3, %5, %cst {dimension_numbers = #tpu.dot_dimension_numbers<[1], [0], [0], [1], [0, 0, 1, 1], [], []>} : vector<64x12xbf16>, vector<12x128xbf16>, vector<64x128xf32> -> vector<64x128xf32>
    %7 = vector.extract_strided_slice %1 {offsets = [0, 1, 0], sizes = [8, 8, 12], strides = [1, 1, 1]} : vector<9x9x12xbf16> to vector<8x8x12xbf16>
    %8 = vector.shape_cast %7 : vector<8x8x12xbf16> to vector<64x12xbf16>
    %c1 = arith.constant 1 : index
    %c0_6 = arith.constant 0 : index
    %c0_7 = arith.constant 0 : index
    %9 = vector.load %arg2[%c1, %c0_6, %c0_7] : memref<4x12x128xbf16, #tpu.memory_space<vmem>>, vector<1x12x128xbf16>
    %10 = vector.shape_cast %9 : vector<1x12x128xbf16> to vector<12x128xbf16>
    %cst_8 = arith.constant dense<0.000000e+00> : vector<64x128xf32>
    %11 = tpu.matmul %8, %10, %cst_8 {dimension_numbers = #tpu.dot_dimension_numbers<[1], [0], [0], [1], [0, 0, 1, 1], [], []>} : vector<64x12xbf16>, vector<12x128xbf16>, vector<64x128xf32> -> vector<64x128xf32>
    %12 = arith.addf %6, %11 : vector<64x128xf32>
    %13 = vector.extract_strided_slice %1 {offsets = [1, 0, 0], sizes = [8, 8, 12], strides = [1, 1, 1]} : vector<9x9x12xbf16> to vector<8x8x12xbf16>
    %14 = vector.shape_cast %13 : vector<8x8x12xbf16> to vector<64x12xbf16>
    %c2 = arith.constant 2 : index
    %c0_9 = arith.constant 0 : index
    %c0_10 = arith.constant 0 : index
    %15 = vector.load %arg2[%c2, %c0_9, %c0_10] : memref<4x12x128xbf16, #tpu.memory_space<vmem>>, vector<1x12x128xbf16>
    %16 = vector.shape_cast %15 : vector<1x12x128xbf16> to vector<12x128xbf16>
    %cst_11 = arith.constant dense<0.000000e+00> : vector<64x128xf32>
    %17 = tpu.matmul %14, %16, %cst_11 {dimension_numbers = #tpu.dot_dimension_numbers<[1], [0], [0], [1], [0, 0, 1, 1], [], []>} : vector<64x12xbf16>, vector<12x128xbf16>, vector<64x128xf32> -> vector<64x128xf32>
    %18 = arith.addf %12, %17 : vector<64x128xf32>
    %19 = vector.extract_strided_slice %1 {offsets = [1, 1, 0], sizes = [8, 8, 12], strides = [1, 1, 1]} : vector<9x9x12xbf16> to vector<8x8x12xbf16>
    %20 = vector.shape_cast %19 : vector<8x8x12xbf16> to vector<64x12xbf16>
    %c3 = arith.constant 3 : index
    %c0_12 = arith.constant 0 : index
    %c0_13 = arith.constant 0 : index
    %21 = vector.load %arg2[%c3, %c0_12, %c0_13] : memref<4x12x128xbf16, #tpu.memory_space<vmem>>, vector<1x12x128xbf16>
    %22 = vector.shape_cast %21 : vector<1x12x128xbf16> to vector<12x128xbf16>
    %cst_14 = arith.constant dense<0.000000e+00> : vector<64x128xf32>
    %23 = tpu.matmul %20, %22, %cst_14 {dimension_numbers = #tpu.dot_dimension_numbers<[1], [0], [0], [1], [0, 0, 1, 1], [], []>} : vector<64x12xbf16>, vector<12x128xbf16>, vector<64x128xf32> -> vector<64x128xf32>
    %24 = arith.addf %18, %23 : vector<64x128xf32>
    %c0_15 = arith.constant 0 : index
    %c0_16 = arith.constant 0 : index
    %25 = vector.load %arg3[%c0_15, %c0_16] : memref<1x128xf32, #tpu.memory_space<vmem>>, vector<1x128xf32>
    %26 = vector.broadcast %25 : vector<1x128xf32> to vector<64x128xf32>
    %27 = arith.addf %24, %26 : vector<64x128xf32>
    %28 = arith.mulf %27, %27 : vector<64x128xf32>
    %29 = arith.mulf %27, %28 : vector<64x128xf32>
    %cst_17 = arith.constant 4.471500e-02 : f32
    %30 = vector.broadcast %cst_17 : f32 to vector<64x128xf32>
    %31 = arith.mulf %30, %29 : vector<64x128xf32>
    %32 = arith.addf %27, %31 : vector<64x128xf32>
    %cst_18 = arith.constant 0.797884583 : f32
    %33 = vector.broadcast %cst_18 : f32 to vector<64x128xf32>
    %34 = arith.mulf %33, %32 : vector<64x128xf32>
    %35 = math.tanh %34 : vector<64x128xf32>
    %cst_19 = arith.constant 1.000000e+00 : f32
    %36 = vector.broadcast %cst_19 : f32 to vector<64x128xf32>
    %37 = arith.addf %36, %35 : vector<64x128xf32>
    %cst_20 = arith.constant 5.000000e-01 : f32
    %38 = vector.broadcast %cst_20 : f32 to vector<64x128xf32>
    %39 = arith.mulf %38, %37 : vector<64x128xf32>
    %40 = arith.mulf %27, %39 : vector<64x128xf32>
    %cst_21 = arith.constant 1.70150435 : f32
    %41 = vector.broadcast %cst_21 : f32 to vector<64x128xf32>
    %42 = arith.mulf %40, %41 : vector<64x128xf32>
    %43 = arith.truncf %42 : vector<64x128xf32> to vector<64x128xbf16>
    %c0_22 = arith.constant 0 : index
    %c0_23 = arith.constant 0 : index
    %c0_24 = arith.constant 0 : index
    %44 = vector.load %arg4[%c0_22, %c0_23, %c0_24] : memref<1x64x128xbf16, #tpu.memory_space<vmem>>, vector<1x64x128xbf16>
    %45 = vector.shape_cast %44 : vector<1x64x128xbf16> to vector<64x128xbf16>
    %46 = vector.shape_cast %43 : vector<64x128xbf16> to vector<1x64x128xbf16>
    tpu.vector_store %arg4[%c0_22, %c0_23, %c0_24], %46 {strides = array<i32>} : memref<1x64x128xbf16, #tpu.memory_space<vmem>>, vector<1x64x128xbf16>,
    return
  }
  func.func @transform_0(%arg0: i32) -> (i32, i32, i32, i32) {
    %c0_i32 = arith.constant 0 : i32
    %c0_i32_0 = arith.constant 0 : i32
    %c0_i32_1 = arith.constant 0 : i32
    %c0_i32_2 = arith.constant 0 : i32
    return %arg0, %c0_i32, %c0_i32_0, %c0_i32_1 : i32, i32, i32, i32
  }
  func.func @transform_1(%arg0: i32) -> (i32, i32, i32) {
    %c0_i32 = arith.constant 0 : i32
    %c0_i32_0 = arith.constant 0 : i32
    %c0_i32_1 = arith.constant 0 : i32
    %c0_i32_2 = arith.constant 0 : i32
    return %c0_i32, %c0_i32_0, %c0_i32_1 : i32, i32, i32
  }
  func.func @transform_2(%arg0: i32) -> (i32, i32) {
    %c0_i32 = arith.constant 0 : i32
    %c0_i32_0 = arith.constant 0 : i32
    %c0_i32_1 = arith.constant 0 : i32
    return %c0_i32, %c0_i32_0 : i32, i32
  }
  func.func @transform_3(%arg0: i32) -> (i32, i32, i32) {
    %c0_i32 = arith.constant 0 : i32
    %c0_i32_0 = arith.constant 0 : i32
    %c0_i32_1 = arith.constant 0 : i32
    return %arg0, %c0_i32, %c0_i32_0 : i32, i32, i32
  }
}

module attributes {stable_mosaic.version = 11 : i64} {
  func.func @kernel(%arg0: i32, %arg1: memref<1x10x10x128xbf16, #tpu.memory_space<vmem>>, %arg2: memref<9x128x128xbf16, #tpu.memory_space<vmem>>, %arg3: memref<1x128xf32, #tpu.memory_space<vmem>>, %arg4: memref<1x64x128xbf16, #tpu.memory_space<vmem>>) attributes {dimension_semantics = [#tpu.dimension_semantics<parallel>], iteration_bounds = array<i64: 2>, scalar_prefetch = 0 : i64, scratch_operands = 0 : i64, tpu.core_type = #tpu.core_type<tc>, window_params = [{transform_indices = @transform_0, window_bounds = array<i64: 1, 10, 10, 128>}, {pipeline_mode = #tpu.pipeline_mode<synchronous>, transform_indices = @transform_1, window_bounds = array<i64: 9, 128, 128>}, {pipeline_mode = #tpu.pipeline_mode<synchronous>, transform_indices = @transform_2, window_bounds = array<i64: 1, 128>}, {transform_indices = @transform_3, window_bounds = array<i64: 1, 64, 128>}]} {
    %c0 = arith.constant 0 : index
    %c0_0 = arith.constant 0 : index
    %c0_1 = arith.constant 0 : index
    %c0_2 = arith.constant 0 : index
    %0 = vector.load %arg1[%c0, %c0_0, %c0_1, %c0_2] : memref<1x10x10x128xbf16, #tpu.memory_space<vmem>>, vector<1x10x10x128xbf16>
    %1 = vector.shape_cast %0 : vector<1x10x10x128xbf16> to vector<10x10x128xbf16>
    %2 = vector.extract_strided_slice %1 {offsets = [0, 0, 0], sizes = [8, 8, 128], strides = [1, 1, 1]} : vector<10x10x128xbf16> to vector<8x8x128xbf16>
    %3 = vector.shape_cast %2 : vector<8x8x128xbf16> to vector<64x128xbf16>
    %c0_3 = arith.constant 0 : index
    %c0_4 = arith.constant 0 : index
    %c0_5 = arith.constant 0 : index
    %4 = vector.load %arg2[%c0_3, %c0_4, %c0_5] : memref<9x128x128xbf16, #tpu.memory_space<vmem>>, vector<1x128x128xbf16>
    %5 = vector.shape_cast %4 : vector<1x128x128xbf16> to vector<128x128xbf16>
    %cst = arith.constant dense<0.000000e+00> : vector<64x128xf32>
    %6 = tpu.matmul %3, %5, %cst {dimension_numbers = #tpu.dot_dimension_numbers<[1], [0], [0], [1], [0, 0, 1, 1], [], []>} : vector<64x128xbf16>, vector<128x128xbf16>, vector<64x128xf32> -> vector<64x128xf32>
    %7 = vector.extract_strided_slice %1 {offsets = [0, 1, 0], sizes = [8, 8, 128], strides = [1, 1, 1]} : vector<10x10x128xbf16> to vector<8x8x128xbf16>
    %8 = vector.shape_cast %7 : vector<8x8x128xbf16> to vector<64x128xbf16>
    %c1 = arith.constant 1 : index
    %c0_6 = arith.constant 0 : index
    %c0_7 = arith.constant 0 : index
    %9 = vector.load %arg2[%c1, %c0_6, %c0_7] : memref<9x128x128xbf16, #tpu.memory_space<vmem>>, vector<1x128x128xbf16>
    %10 = vector.shape_cast %9 : vector<1x128x128xbf16> to vector<128x128xbf16>
    %cst_8 = arith.constant dense<0.000000e+00> : vector<64x128xf32>
    %11 = tpu.matmul %8, %10, %cst_8 {dimension_numbers = #tpu.dot_dimension_numbers<[1], [0], [0], [1], [0, 0, 1, 1], [], []>} : vector<64x128xbf16>, vector<128x128xbf16>, vector<64x128xf32> -> vector<64x128xf32>
    %12 = arith.addf %6, %11 : vector<64x128xf32>
    %13 = vector.extract_strided_slice %1 {offsets = [0, 2, 0], sizes = [8, 8, 128], strides = [1, 1, 1]} : vector<10x10x128xbf16> to vector<8x8x128xbf16>
    %14 = vector.shape_cast %13 : vector<8x8x128xbf16> to vector<64x128xbf16>
    %c2 = arith.constant 2 : index
    %c0_9 = arith.constant 0 : index
    %c0_10 = arith.constant 0 : index
    %15 = vector.load %arg2[%c2, %c0_9, %c0_10] : memref<9x128x128xbf16, #tpu.memory_space<vmem>>, vector<1x128x128xbf16>
    %16 = vector.shape_cast %15 : vector<1x128x128xbf16> to vector<128x128xbf16>
    %cst_11 = arith.constant dense<0.000000e+00> : vector<64x128xf32>
    %17 = tpu.matmul %14, %16, %cst_11 {dimension_numbers = #tpu.dot_dimension_numbers<[1], [0], [0], [1], [0, 0, 1, 1], [], []>} : vector<64x128xbf16>, vector<128x128xbf16>, vector<64x128xf32> -> vector<64x128xf32>
    %18 = arith.addf %12, %17 : vector<64x128xf32>
    %19 = vector.extract_strided_slice %1 {offsets = [1, 0, 0], sizes = [8, 8, 128], strides = [1, 1, 1]} : vector<10x10x128xbf16> to vector<8x8x128xbf16>
    %20 = vector.shape_cast %19 : vector<8x8x128xbf16> to vector<64x128xbf16>
    %c3 = arith.constant 3 : index
    %c0_12 = arith.constant 0 : index
    %c0_13 = arith.constant 0 : index
    %21 = vector.load %arg2[%c3, %c0_12, %c0_13] : memref<9x128x128xbf16, #tpu.memory_space<vmem>>, vector<1x128x128xbf16>
    %22 = vector.shape_cast %21 : vector<1x128x128xbf16> to vector<128x128xbf16>
    %cst_14 = arith.constant dense<0.000000e+00> : vector<64x128xf32>
    %23 = tpu.matmul %20, %22, %cst_14 {dimension_numbers = #tpu.dot_dimension_numbers<[1], [0], [0], [1], [0, 0, 1, 1], [], []>} : vector<64x128xbf16>, vector<128x128xbf16>, vector<64x128xf32> -> vector<64x128xf32>
    %24 = arith.addf %18, %23 : vector<64x128xf32>
    %25 = vector.extract_strided_slice %1 {offsets = [1, 1, 0], sizes = [8, 8, 128], strides = [1, 1, 1]} : vector<10x10x128xbf16> to vector<8x8x128xbf16>
    %26 = vector.shape_cast %25 : vector<8x8x128xbf16> to vector<64x128xbf16>
    %c4 = arith.constant 4 : index
    %c0_15 = arith.constant 0 : index
    %c0_16 = arith.constant 0 : index
    %27 = vector.load %arg2[%c4, %c0_15, %c0_16] : memref<9x128x128xbf16, #tpu.memory_space<vmem>>, vector<1x128x128xbf16>
    %28 = vector.shape_cast %27 : vector<1x128x128xbf16> to vector<128x128xbf16>
    %cst_17 = arith.constant dense<0.000000e+00> : vector<64x128xf32>
    %29 = tpu.matmul %26, %28, %cst_17 {dimension_numbers = #tpu.dot_dimension_numbers<[1], [0], [0], [1], [0, 0, 1, 1], [], []>} : vector<64x128xbf16>, vector<128x128xbf16>, vector<64x128xf32> -> vector<64x128xf32>
    %30 = arith.addf %24, %29 : vector<64x128xf32>
    %31 = vector.extract_strided_slice %1 {offsets = [1, 2, 0], sizes = [8, 8, 128], strides = [1, 1, 1]} : vector<10x10x128xbf16> to vector<8x8x128xbf16>
    %32 = vector.shape_cast %31 : vector<8x8x128xbf16> to vector<64x128xbf16>
    %c5 = arith.constant 5 : index
    %c0_18 = arith.constant 0 : index
    %c0_19 = arith.constant 0 : index
    %33 = vector.load %arg2[%c5, %c0_18, %c0_19] : memref<9x128x128xbf16, #tpu.memory_space<vmem>>, vector<1x128x128xbf16>
    %34 = vector.shape_cast %33 : vector<1x128x128xbf16> to vector<128x128xbf16>
    %cst_20 = arith.constant dense<0.000000e+00> : vector<64x128xf32>
    %35 = tpu.matmul %32, %34, %cst_20 {dimension_numbers = #tpu.dot_dimension_numbers<[1], [0], [0], [1], [0, 0, 1, 1], [], []>} : vector<64x128xbf16>, vector<128x128xbf16>, vector<64x128xf32> -> vector<64x128xf32>
    %36 = arith.addf %30, %35 : vector<64x128xf32>
    %37 = vector.extract_strided_slice %1 {offsets = [2, 0, 0], sizes = [8, 8, 128], strides = [1, 1, 1]} : vector<10x10x128xbf16> to vector<8x8x128xbf16>
    %38 = vector.shape_cast %37 : vector<8x8x128xbf16> to vector<64x128xbf16>
    %c6 = arith.constant 6 : index
    %c0_21 = arith.constant 0 : index
    %c0_22 = arith.constant 0 : index
    %39 = vector.load %arg2[%c6, %c0_21, %c0_22] : memref<9x128x128xbf16, #tpu.memory_space<vmem>>, vector<1x128x128xbf16>
    %40 = vector.shape_cast %39 : vector<1x128x128xbf16> to vector<128x128xbf16>
    %cst_23 = arith.constant dense<0.000000e+00> : vector<64x128xf32>
    %41 = tpu.matmul %38, %40, %cst_23 {dimension_numbers = #tpu.dot_dimension_numbers<[1], [0], [0], [1], [0, 0, 1, 1], [], []>} : vector<64x128xbf16>, vector<128x128xbf16>, vector<64x128xf32> -> vector<64x128xf32>
    %42 = arith.addf %36, %41 : vector<64x128xf32>
    %43 = vector.extract_strided_slice %1 {offsets = [2, 1, 0], sizes = [8, 8, 128], strides = [1, 1, 1]} : vector<10x10x128xbf16> to vector<8x8x128xbf16>
    %44 = vector.shape_cast %43 : vector<8x8x128xbf16> to vector<64x128xbf16>
    %c7 = arith.constant 7 : index
    %c0_24 = arith.constant 0 : index
    %c0_25 = arith.constant 0 : index
    %45 = vector.load %arg2[%c7, %c0_24, %c0_25] : memref<9x128x128xbf16, #tpu.memory_space<vmem>>, vector<1x128x128xbf16>
    %46 = vector.shape_cast %45 : vector<1x128x128xbf16> to vector<128x128xbf16>
    %cst_26 = arith.constant dense<0.000000e+00> : vector<64x128xf32>
    %47 = tpu.matmul %44, %46, %cst_26 {dimension_numbers = #tpu.dot_dimension_numbers<[1], [0], [0], [1], [0, 0, 1, 1], [], []>} : vector<64x128xbf16>, vector<128x128xbf16>, vector<64x128xf32> -> vector<64x128xf32>
    %48 = arith.addf %42, %47 : vector<64x128xf32>
    %49 = vector.extract_strided_slice %1 {offsets = [2, 2, 0], sizes = [8, 8, 128], strides = [1, 1, 1]} : vector<10x10x128xbf16> to vector<8x8x128xbf16>
    %50 = vector.shape_cast %49 : vector<8x8x128xbf16> to vector<64x128xbf16>
    %c8 = arith.constant 8 : index
    %c0_27 = arith.constant 0 : index
    %c0_28 = arith.constant 0 : index
    %51 = vector.load %arg2[%c8, %c0_27, %c0_28] : memref<9x128x128xbf16, #tpu.memory_space<vmem>>, vector<1x128x128xbf16>
    %52 = vector.shape_cast %51 : vector<1x128x128xbf16> to vector<128x128xbf16>
    %cst_29 = arith.constant dense<0.000000e+00> : vector<64x128xf32>
    %53 = tpu.matmul %50, %52, %cst_29 {dimension_numbers = #tpu.dot_dimension_numbers<[1], [0], [0], [1], [0, 0, 1, 1], [], []>} : vector<64x128xbf16>, vector<128x128xbf16>, vector<64x128xf32> -> vector<64x128xf32>
    %54 = arith.addf %48, %53 : vector<64x128xf32>
    %c0_30 = arith.constant 0 : index
    %c0_31 = arith.constant 0 : index
    %55 = vector.load %arg3[%c0_30, %c0_31] : memref<1x128xf32, #tpu.memory_space<vmem>>, vector<1x128xf32>
    %56 = vector.broadcast %55 : vector<1x128xf32> to vector<64x128xf32>
    %57 = arith.addf %54, %56 : vector<64x128xf32>
    %58 = arith.mulf %57, %57 : vector<64x128xf32>
    %59 = arith.mulf %57, %58 : vector<64x128xf32>
    %cst_32 = arith.constant 4.471500e-02 : f32
    %60 = vector.broadcast %cst_32 : f32 to vector<64x128xf32>
    %61 = arith.mulf %60, %59 : vector<64x128xf32>
    %62 = arith.addf %57, %61 : vector<64x128xf32>
    %cst_33 = arith.constant 0.797884583 : f32
    %63 = vector.broadcast %cst_33 : f32 to vector<64x128xf32>
    %64 = arith.mulf %63, %62 : vector<64x128xf32>
    %65 = math.tanh %64 : vector<64x128xf32>
    %cst_34 = arith.constant 1.000000e+00 : f32
    %66 = vector.broadcast %cst_34 : f32 to vector<64x128xf32>
    %67 = arith.addf %66, %65 : vector<64x128xf32>
    %cst_35 = arith.constant 5.000000e-01 : f32
    %68 = vector.broadcast %cst_35 : f32 to vector<64x128xf32>
    %69 = arith.mulf %68, %67 : vector<64x128xf32>
    %70 = arith.mulf %57, %69 : vector<64x128xf32>
    %cst_36 = arith.constant 1.70150435 : f32
    %71 = vector.broadcast %cst_36 : f32 to vector<64x128xf32>
    %72 = arith.mulf %70, %71 : vector<64x128xf32>
    %73 = arith.truncf %72 : vector<64x128xf32> to vector<64x128xbf16>
    %c0_37 = arith.constant 0 : index
    %c0_38 = arith.constant 0 : index
    %c0_39 = arith.constant 0 : index
    %74 = vector.load %arg4[%c0_37, %c0_38, %c0_39] : memref<1x64x128xbf16, #tpu.memory_space<vmem>>, vector<1x64x128xbf16>
    %75 = vector.shape_cast %74 : vector<1x64x128xbf16> to vector<64x128xbf16>
    %76 = vector.shape_cast %73 : vector<64x128xbf16> to vector<1x64x128xbf16>
    tpu.vector_store %arg4[%c0_37, %c0_38, %c0_39], %76 {strides = array<i32>} : memref<1x64x128xbf16, #tpu.memory_space<vmem>>, vector<1x64x128xbf16>,
    return
  }
  func.func @transform_0(%arg0: i32) -> (i32, i32, i32, i32) {
    %c0_i32 = arith.constant 0 : i32
    %c0_i32_0 = arith.constant 0 : i32
    %c0_i32_1 = arith.constant 0 : i32
    %c0_i32_2 = arith.constant 0 : i32
    return %arg0, %c0_i32, %c0_i32_0, %c0_i32_1 : i32, i32, i32, i32
  }
  func.func @transform_1(%arg0: i32) -> (i32, i32, i32) {
    %c0_i32 = arith.constant 0 : i32
    %c0_i32_0 = arith.constant 0 : i32
    %c0_i32_1 = arith.constant 0 : i32
    %c0_i32_2 = arith.constant 0 : i32
    return %c0_i32, %c0_i32_0, %c0_i32_1 : i32, i32, i32
  }
  func.func @transform_2(%arg0: i32) -> (i32, i32) {
    %c0_i32 = arith.constant 0 : i32
    %c0_i32_0 = arith.constant 0 : i32
    %c0_i32_1 = arith.constant 0 : i32
    return %c0_i32, %c0_i32_0 : i32, i32
  }
  func.func @transform_3(%arg0: i32) -> (i32, i32, i32) {
    %c0_i32 = arith.constant 0 : i32
    %c0_i32_0 = arith.constant 0 : i32
    %c0_i32_1 = arith.constant 0 : i32
    return %arg0, %c0_i32, %c0_i32_0 : i32, i32, i32
  }
}

module attributes {stable_mosaic.version = 11 : i64} {
  func.func @_proj_gap_kernel(%arg0: i32, %arg1: i32, %arg2: memref<1x64x128xbf16, #tpu.memory_space<vmem>>, %arg3: memref<128x128xbf16, #tpu.memory_space<vmem>>, %arg4: memref<1x128xf32, #tpu.memory_space<vmem>>, %arg5: memref<1x64x128xbf16, #tpu.memory_space<vmem>>, %arg6: memref<1x1x128xf32, #tpu.memory_space<vmem>>) attributes {dimension_semantics = [#tpu.dimension_semantics<parallel>, #tpu.dimension_semantics<arbitrary>], iteration_bounds = array<i64: 2, 1>, scalar_prefetch = 0 : i64, scratch_operands = 0 : i64, tpu.core_type = #tpu.core_type<tc>, window_params = [{transform_indices = @transform_0, window_bounds = array<i64: 1, 64, 128>}, {pipeline_mode = #tpu.pipeline_mode<synchronous>, transform_indices = @transform_1, window_bounds = array<i64: 128, 128>}, {pipeline_mode = #tpu.pipeline_mode<synchronous>, transform_indices = @transform_2, window_bounds = array<i64: 1, 128>}, {transform_indices = @transform_3, window_bounds = array<i64: 1, 64, 128>}, {transform_indices = @transform_4, window_bounds = array<i64: 1, 1, 128>}]} {
    %c0 = arith.constant 0 : index
    %c0_0 = arith.constant 0 : index
    %c0_1 = arith.constant 0 : index
    %0 = vector.load %arg2[%c0, %c0_0, %c0_1] : memref<1x64x128xbf16, #tpu.memory_space<vmem>>, vector<1x64x128xbf16>
    %1 = vector.shape_cast %0 : vector<1x64x128xbf16> to vector<64x128xbf16>
    %c0_2 = arith.constant 0 : index
    %c0_3 = arith.constant 0 : index
    %2 = vector.load %arg3[%c0_2, %c0_3] : memref<128x128xbf16, #tpu.memory_space<vmem>>, vector<128x128xbf16>
    %cst = arith.constant dense<0.000000e+00> : vector<64x128xf32>
    %3 = tpu.matmul %1, %2, %cst {dimension_numbers = #tpu.dot_dimension_numbers<[1], [0], [0], [1], [0, 0, 1, 1], [], []>} : vector<64x128xbf16>, vector<128x128xbf16>, vector<64x128xf32> -> vector<64x128xf32>
    %c0_4 = arith.constant 0 : index
    %c0_5 = arith.constant 0 : index
    %4 = vector.load %arg4[%c0_4, %c0_5] : memref<1x128xf32, #tpu.memory_space<vmem>>, vector<1x128xf32>
    %5 = vector.broadcast %4 : vector<1x128xf32> to vector<64x128xf32>
    %6 = arith.addf %3, %5 : vector<64x128xf32>
    %7 = arith.truncf %6 : vector<64x128xf32> to vector<64x128xbf16>
    %c0_6 = arith.constant 0 : index
    %c0_7 = arith.constant 0 : index
    %c0_8 = arith.constant 0 : index
    %8 = vector.load %arg5[%c0_6, %c0_7, %c0_8] : memref<1x64x128xbf16, #tpu.memory_space<vmem>>, vector<1x64x128xbf16>
    %9 = vector.shape_cast %8 : vector<1x64x128xbf16> to vector<64x128xbf16>
    %10 = vector.shape_cast %7 : vector<64x128xbf16> to vector<1x64x128xbf16>
    tpu.vector_store %arg5[%c0_6, %c0_7, %c0_8], %10 {strides = array<i32>} : memref<1x64x128xbf16, #tpu.memory_space<vmem>>, vector<1x64x128xbf16>,
    %cst_9 = arith.constant dense<0.000000e+00> : vector<128xf32>
    %11 = vector.multi_reduction <add>, %6, %cst_9 [0] : vector<64x128xf32> to vector<128xf32>
    %12 = vector.shape_cast %11 : vector<128xf32> to vector<1x128xf32>
    %c0_i32 = arith.constant 0 : i32
    %13 = arith.cmpi eq, %arg1, %c0_i32 : i32
    %14 = arith.extui %13 : i1 to i32
    %c0_i32_10 = arith.constant 0 : i32
    %15 = arith.cmpi ne, %14, %c0_i32_10 : i32
    scf.if %15 {
      %c0_13 = arith.constant 0 : index
      %c0_14 = arith.constant 0 : index
      %c0_15 = arith.constant 0 : index
      %19 = vector.load %arg6[%c0_13, %c0_14, %c0_15] : memref<1x1x128xf32, #tpu.memory_space<vmem>>, vector<1x1x128xf32>
      %20 = vector.shape_cast %19 : vector<1x1x128xf32> to vector<1x128xf32>
      %21 = vector.shape_cast %12 : vector<1x128xf32> to vector<1x1x128xf32>
      tpu.vector_store %arg6[%c0_13, %c0_14, %c0_15], %21 {strides = array<i32>} : memref<1x1x128xf32, #tpu.memory_space<vmem>>, vector<1x1x128xf32>,
    } else {
    }
    %c0_i32_11 = arith.constant 0 : i32
    %16 = arith.cmpi ne, %arg1, %c0_i32_11 : i32
    %17 = arith.extui %16 : i1 to i32
    %c0_i32_12 = arith.constant 0 : i32
    %18 = arith.cmpi ne, %17, %c0_i32_12 : i32
    scf.if %18 {
      %c0_13 = arith.constant 0 : index
      %c0_14 = arith.constant 0 : index
      %c0_15 = arith.constant 0 : index
      %19 = vector.load %arg6[%c0_13, %c0_14, %c0_15] : memref<1x1x128xf32, #tpu.memory_space<vmem>>, vector<1x1x128xf32>
      %20 = vector.shape_cast %19 : vector<1x1x128xf32> to vector<1x128xf32>
      %21 = arith.addf %20, %12 : vector<1x128xf32>
      %c0_16 = arith.constant 0 : index
      %c0_17 = arith.constant 0 : index
      %c0_18 = arith.constant 0 : index
      %22 = vector.load %arg6[%c0_16, %c0_17, %c0_18] : memref<1x1x128xf32, #tpu.memory_space<vmem>>, vector<1x1x128xf32>
      %23 = vector.shape_cast %22 : vector<1x1x128xf32> to vector<1x128xf32>
      %24 = vector.shape_cast %21 : vector<1x128xf32> to vector<1x1x128xf32>
      tpu.vector_store %arg6[%c0_16, %c0_17, %c0_18], %24 {strides = array<i32>} : memref<1x1x128xf32, #tpu.memory_space<vmem>>, vector<1x1x128xf32>,
    } else {
    }
    return
  }
  func.func @transform_0(%arg0: i32, %arg1: i32) -> (i32, i32, i32) {
    %c0_i32 = arith.constant 0 : i32
    %c0_i32_0 = arith.constant 0 : i32
    return %arg0, %arg1, %c0_i32 : i32, i32, i32
  }
  func.func @transform_1(%arg0: i32, %arg1: i32) -> (i32, i32) {
    %c0_i32 = arith.constant 0 : i32
    %c0_i32_0 = arith.constant 0 : i32
    %c0_i32_1 = arith.constant 0 : i32
    return %c0_i32, %c0_i32_0 : i32, i32
  }
  func.func @transform_2(%arg0: i32, %arg1: i32) -> (i32, i32) {
    %c0_i32 = arith.constant 0 : i32
    %c0_i32_0 = arith.constant 0 : i32
    %c0_i32_1 = arith.constant 0 : i32
    return %c0_i32, %c0_i32_0 : i32, i32
  }
  func.func @transform_3(%arg0: i32, %arg1: i32) -> (i32, i32, i32) {
    %c0_i32 = arith.constant 0 : i32
    %c0_i32_0 = arith.constant 0 : i32
    return %arg0, %arg1, %c0_i32 : i32, i32, i32
  }
  func.func @transform_4(%arg0: i32, %arg1: i32) -> (i32, i32, i32) {
    %c0_i32 = arith.constant 0 : i32
    %c0_i32_0 = arith.constant 0 : i32
    %c0_i32_1 = arith.constant 0 : i32
    return %arg0, %c0_i32, %c0_i32_0 : i32, i32, i32
  }
}

module attributes {stable_mosaic.version = 11 : i64} {
  func.func @kernel(%arg0: memref<2x128xf32, #tpu.memory_space<vmem>>, %arg1: memref<128x64xf32, #tpu.memory_space<vmem>>, %arg2: memref<1x64xf32, #tpu.memory_space<vmem>>, %arg3: memref<64x128xf32, #tpu.memory_space<vmem>>, %arg4: memref<1x128xf32, #tpu.memory_space<vmem>>, %arg5: memref<2x128xf32, #tpu.memory_space<vmem>>) attributes {dimension_semantics = [], scalar_prefetch = 0 : i64, scratch_operands = 0 : i64, tpu.core_type = #tpu.core_type<tc>} {
    %c0 = arith.constant 0 : index
    %c0_0 = arith.constant 0 : index
    %0 = vector.load %arg0[%c0, %c0_0] : memref<2x128xf32, #tpu.memory_space<vmem>>, vector<2x128xf32>
    %cst = arith.constant 1.562500e-02 : f32
    %1 = vector.broadcast %cst : f32 to vector<2x128xf32>
    %2 = arith.mulf %0, %1 : vector<2x128xf32>
    %c0_1 = arith.constant 0 : index
    %c0_2 = arith.constant 0 : index
    %3 = vector.load %arg1[%c0_1, %c0_2] : memref<128x64xf32, #tpu.memory_space<vmem>>, vector<128x64xf32>
    %cst_3 = arith.constant dense<0.000000e+00> : vector<2x64xf32>
    %4 = tpu.matmul %2, %3, %cst_3 {dimension_numbers = #tpu.dot_dimension_numbers<[1], [0], [0], [1], [0, 0, 1, 1], [], []>} : vector<2x128xf32>, vector<128x64xf32>, vector<2x64xf32> -> vector<2x64xf32>
    %c0_4 = arith.constant 0 : index
    %c0_5 = arith.constant 0 : index
    %5 = vector.load %arg2[%c0_4, %c0_5] : memref<1x64xf32, #tpu.memory_space<vmem>>, vector<1x64xf32>
    %6 = vector.broadcast %5 : vector<1x64xf32> to vector<2x64xf32>
    %7 = arith.addf %4, %6 : vector<2x64xf32>
    %cst_6 = arith.constant 0.000000e+00 : f32
    %8 = vector.broadcast %cst_6 : f32 to vector<2x64xf32>
    %9 = arith.maximumf %7, %8 : vector<2x64xf32>
    %c0_7 = arith.constant 0 : index
    %c0_8 = arith.constant 0 : index
    %10 = vector.load %arg3[%c0_7, %c0_8] : memref<64x128xf32, #tpu.memory_space<vmem>>, vector<64x128xf32>
    %cst_9 = arith.constant dense<0.000000e+00> : vector<2x128xf32>
    %11 = tpu.matmul %9, %10, %cst_9 {dimension_numbers = #tpu.dot_dimension_numbers<[1], [0], [0], [1], [0, 0, 1, 1], [], []>} : vector<2x64xf32>, vector<64x128xf32>, vector<2x128xf32> -> vector<2x128xf32>
    %c0_10 = arith.constant 0 : index
    %c0_11 = arith.constant 0 : index
    %12 = vector.load %arg4[%c0_10, %c0_11] : memref<1x128xf32, #tpu.memory_space<vmem>>, vector<1x128xf32>
    %13 = vector.broadcast %12 : vector<1x128xf32> to vector<2x128xf32>
    %14 = arith.addf %11, %13 : vector<2x128xf32>
    %15 = arith.negf %14 : vector<2x128xf32>
    %16 = math.exp %15 : vector<2x128xf32>
    %cst_12 = arith.constant 1.000000e+00 : f32
    %17 = vector.broadcast %cst_12 : f32 to vector<2x128xf32>
    %18 = arith.addf %17, %16 : vector<2x128xf32>
    %19 = arith.divf %17, %18 : vector<2x128xf32>
    %cst_13 = arith.constant 4.000000e-01 : f32
    %20 = vector.broadcast %cst_13 : f32 to vector<2x128xf32>
    %21 = arith.mulf %19, %20 : vector<2x128xf32>
    %c0_14 = arith.constant 0 : index
    %c0_15 = arith.constant 0 : index
    %22 = vector.load %arg5[%c0_14, %c0_15] : memref<2x128xf32, #tpu.memory_space<vmem>>, vector<2x128xf32>
    tpu.vector_store %arg5[%c0_14, %c0_15], %21 {strides = array<i32>} : memref<2x128xf32, #tpu.memory_space<vmem>>, vector<2x128xf32>,
    return
  }
}

module attributes {stable_mosaic.version = 11 : i64} {
  func.func @kernel(%arg0: i32, %arg1: i32, %arg2: memref<1x64x128xbf16, #tpu.memory_space<vmem>>, %arg3: memref<1x64x128xbf16, #tpu.memory_space<vmem>>, %arg4: memref<1x1x128xf32, #tpu.memory_space<vmem>>, %arg5: memref<128x256xbf16, #tpu.memory_space<vmem>>, %arg6: memref<1x256xf32, #tpu.memory_space<vmem>>, %arg7: memref<256x128xbf16, #tpu.memory_space<vmem>>, %arg8: memref<1x128xf32, #tpu.memory_space<vmem>>, %arg9: memref<1x1x128xf32, #tpu.memory_space<vmem>>, %arg10: memref<1x256xf32, #tpu.memory_space<vmem>>) attributes {dimension_semantics = [#tpu.dimension_semantics<parallel>, #tpu.dimension_semantics<arbitrary>], iteration_bounds = array<i64: 2, 1>, scalar_prefetch = 0 : i64, scratch_operands = 1 : i64, tpu.core_type = #tpu.core_type<tc>, window_params = [{transform_indices = @transform_0, window_bounds = array<i64: 1, 64, 128>}, {transform_indices = @transform_1, window_bounds = array<i64: 1, 64, 128>}, {transform_indices = @transform_2, window_bounds = array<i64: 1, 1, 128>}, {pipeline_mode = #tpu.pipeline_mode<synchronous>, transform_indices = @transform_3, window_bounds = array<i64: 128, 256>}, {pipeline_mode = #tpu.pipeline_mode<synchronous>, transform_indices = @transform_4, window_bounds = array<i64: 1, 256>}, {pipeline_mode = #tpu.pipeline_mode<synchronous>, transform_indices = @transform_5, window_bounds = array<i64: 256, 128>}, {pipeline_mode = #tpu.pipeline_mode<synchronous>, transform_indices = @transform_6, window_bounds = array<i64: 1, 128>}, {transform_indices = @transform_7, window_bounds = array<i64: 1, 1, 128>}]} {
    %c0 = arith.constant 0 : index
    %c0_0 = arith.constant 0 : index
    %c0_1 = arith.constant 0 : index
    %0 = vector.load %arg2[%c0, %c0_0, %c0_1] : memref<1x64x128xbf16, #tpu.memory_space<vmem>>, vector<1x64x128xbf16>
    %1 = vector.shape_cast %0 : vector<1x64x128xbf16> to vector<64x128xbf16>
    %2 = arith.extf %1 : vector<64x128xbf16> to vector<64x128xf32>
    %c0_2 = arith.constant 0 : index
    %c0_3 = arith.constant 0 : index
    %c0_4 = arith.constant 0 : index
    %3 = vector.load %arg3[%c0_2, %c0_3, %c0_4] : memref<1x64x128xbf16, #tpu.memory_space<vmem>>, vector<1x64x128xbf16>
    %4 = vector.shape_cast %3 : vector<1x64x128xbf16> to vector<64x128xbf16>
    %5 = arith.extf %4 : vector<64x128xbf16> to vector<64x128xf32>
    %c0_5 = arith.constant 0 : index
    %c0_6 = arith.constant 0 : index
    %c0_7 = arith.constant 0 : index
    %6 = vector.load %arg4[%c0_5, %c0_6, %c0_7] : memref<1x1x128xf32, #tpu.memory_space<vmem>>, vector<1x1x128xf32>
    %7 = vector.shape_cast %6 : vector<1x1x128xf32> to vector<1x128xf32>
    %8 = vector.broadcast %7 : vector<1x128xf32> to vector<64x128xf32>
    %9 = arith.mulf %2, %8 : vector<64x128xf32>
    %10 = arith.addf %9, %5 : vector<64x128xf32>
    %11 = arith.truncf %10 : vector<64x128xf32> to vector<64x128xbf16>
    %c0_8 = arith.constant 0 : index
    %c0_9 = arith.constant 0 : index
    %12 = vector.load %arg5[%c0_8, %c0_9] : memref<128x256xbf16, #tpu.memory_space<vmem>>, vector<128x256xbf16>
    %cst = arith.constant dense<0.000000e+00> : vector<64x256xf32>
    %13 = tpu.matmul %11, %12, %cst {dimension_numbers = #tpu.dot_dimension_numbers<[1], [0], [0], [1], [0, 0, 1, 1], [], []>} : vector<64x128xbf16>, vector<128x256xbf16>, vector<64x256xf32> -> vector<64x256xf32>
    %c0_10 = arith.constant 0 : index
    %c0_11 = arith.constant 0 : index
    %14 = vector.load %arg6[%c0_10, %c0_11] : memref<1x256xf32, #tpu.memory_space<vmem>>, vector<1x256xf32>
    %15 = vector.broadcast %14 : vector<1x256xf32> to vector<64x256xf32>
    %16 = arith.addf %13, %15 : vector<64x256xf32>
    %17 = arith.mulf %16, %16 : vector<64x256xf32>
    %18 = arith.mulf %16, %17 : vector<64x256xf32>
    %cst_12 = arith.constant 4.471500e-02 : f32
    %19 = vector.broadcast %cst_12 : f32 to vector<64x256xf32>
    %20 = arith.mulf %19, %18 : vector<64x256xf32>
    %21 = arith.addf %16, %20 : vector<64x256xf32>
    %cst_13 = arith.constant 0.797884583 : f32
    %22 = vector.broadcast %cst_13 : f32 to vector<64x256xf32>
    %23 = arith.mulf %22, %21 : vector<64x256xf32>
    %24 = math.tanh %23 : vector<64x256xf32>
    %cst_14 = arith.constant 1.000000e+00 : f32
    %25 = vector.broadcast %cst_14 : f32 to vector<64x256xf32>
    %26 = arith.addf %25, %24 : vector<64x256xf32>
    %cst_15 = arith.constant 5.000000e-01 : f32
    %27 = vector.broadcast %cst_15 : f32 to vector<64x256xf32>
    %28 = arith.mulf %27, %26 : vector<64x256xf32>
    %29 = arith.mulf %16, %28 : vector<64x256xf32>
    %cst_16 = arith.constant 1.70150435 : f32
    %30 = vector.broadcast %cst_16 : f32 to vector<64x256xf32>
    %31 = arith.mulf %29, %30 : vector<64x256xf32>
    %cst_17 = arith.constant dense<0.000000e+00> : vector<256xf32>
    %32 = vector.multi_reduction <add>, %31, %cst_17 [0] : vector<64x256xf32> to vector<256xf32>
    %33 = vector.shape_cast %32 : vector<256xf32> to vector<1x256xf32>
    %c0_i32 = arith.constant 0 : i32
    %34 = arith.cmpi eq, %arg1, %c0_i32 : i32
    %35 = arith.extui %34 : i1 to i32
    %c0_i32_18 = arith.constant 0 : i32
    %36 = arith.cmpi ne, %35, %c0_i32_18 : i32
    scf.if %36 {
      %c0_23 = arith.constant 0 : index
      %c0_24 = arith.constant 0 : index
      %43 = vector.load %arg10[%c0_23, %c0_24] : memref<1x256xf32, #tpu.memory_space<vmem>>, vector<1x256xf32>
      tpu.vector_store %arg10[%c0_23, %c0_24], %33 {strides = array<i32>} : memref<1x256xf32, #tpu.memory_space<vmem>>, vector<1x256xf32>,
    } else {
    }
    %c0_i32_19 = arith.constant 0 : i32
    %37 = arith.cmpi ne, %arg1, %c0_i32_19 : i32
    %38 = arith.extui %37 : i1 to i32
    %c0_i32_20 = arith.constant 0 : i32
    %39 = arith.cmpi ne, %38, %c0_i32_20 : i32
    scf.if %39 {
      %c0_23 = arith.constant 0 : index
      %c0_24 = arith.constant 0 : index
      %43 = vector.load %arg10[%c0_23, %c0_24] : memref<1x256xf32, #tpu.memory_space<vmem>>, vector<1x256xf32>
      %44 = arith.addf %43, %33 : vector<1x256xf32>
      %c0_25 = arith.constant 0 : index
      %c0_26 = arith.constant 0 : index
      %45 = vector.load %arg10[%c0_25, %c0_26] : memref<1x256xf32, #tpu.memory_space<vmem>>, vector<1x256xf32>
      tpu.vector_store %arg10[%c0_25, %c0_26], %44 {strides = array<i32>} : memref<1x256xf32, #tpu.memory_space<vmem>>, vector<1x256xf32>,
    } else {
    }
    %c0_i32_21 = arith.constant 0 : i32
    %40 = arith.cmpi eq, %arg1, %c0_i32_21 : i32
    %41 = arith.extui %40 : i1 to i32
    %c0_i32_22 = arith.constant 0 : i32
    %42 = arith.cmpi ne, %41, %c0_i32_22 : i32
    scf.if %42 {
      %c0_23 = arith.constant 0 : index
      %c0_24 = arith.constant 0 : index
      %43 = vector.load %arg10[%c0_23, %c0_24] : memref<1x256xf32, #tpu.memory_space<vmem>>, vector<1x256xf32>
      %cst_25 = arith.constant 1.562500e-02 : f32
      %44 = vector.broadcast %cst_25 : f32 to vector<1x256xf32>
      %45 = arith.mulf %43, %44 : vector<1x256xf32>
      %46 = arith.truncf %45 : vector<1x256xf32> to vector<1x256xbf16>
      %c0_26 = arith.constant 0 : index
      %c0_27 = arith.constant 0 : index
      %47 = vector.load %arg7[%c0_26, %c0_27] : memref<256x128xbf16, #tpu.memory_space<vmem>>, vector<256x128xbf16>
      %cst_28 = arith.constant dense<0.000000e+00> : vector<1x128xf32>
      %48 = tpu.matmul %46, %47, %cst_28 {dimension_numbers = #tpu.dot_dimension_numbers<[1], [0], [0], [1], [0, 0, 1, 1], [], []>} : vector<1x256xbf16>, vector<256x128xbf16>, vector<1x128xf32> -> vector<1x128xf32>
      %c0_29 = arith.constant 0 : index
      %c0_30 = arith.constant 0 : index
      %49 = vector.load %arg8[%c0_29, %c0_30] : memref<1x128xf32, #tpu.memory_space<vmem>>, vector<1x128xf32>
      %50 = arith.addf %48, %49 : vector<1x128xf32>
      %c0_31 = arith.constant 0 : index
      %c0_32 = arith.constant 0 : index
      %c0_33 = arith.constant 0 : index
      %51 = vector.load %arg9[%c0_31, %c0_32, %c0_33] : memref<1x1x128xf32, #tpu.memory_space<vmem>>, vector<1x1x128xf32>
      %52 = vector.shape_cast %51 : vector<1x1x128xf32> to vector<1x128xf32>
      %53 = vector.shape_cast %50 : vector<1x128xf32> to vector<1x1x128xf32>
      tpu.vector_store %arg9[%c0_31, %c0_32, %c0_33], %53 {strides = array<i32>} : memref<1x1x128xf32, #tpu.memory_space<vmem>>, vector<1x1x128xf32>,
    } else {
    }
    return
  }
  func.func @transform_0(%arg0: i32, %arg1: i32) -> (i32, i32, i32) {
    %c0_i32 = arith.constant 0 : i32
    %c0_i32_0 = arith.constant 0 : i32
    return %arg0, %arg1, %c0_i32 : i32, i32, i32
  }
  func.func @transform_1(%arg0: i32, %arg1: i32) -> (i32, i32, i32) {
    %c0_i32 = arith.constant 0 : i32
    %c0_i32_0 = arith.constant 0 : i32
    return %arg0, %arg1, %c0_i32 : i32, i32, i32
  }
  func.func @transform_2(%arg0: i32, %arg1: i32) -> (i32, i32, i32) {
    %c0_i32 = arith.constant 0 : i32
    %c0_i32_0 = arith.constant 0 : i32
    %c0_i32_1 = arith.constant 0 : i32
    return %arg0, %c0_i32, %c0_i32_0 : i32, i32, i32
  }
  func.func @transform_3(%arg0: i32, %arg1: i32) -> (i32, i32) {
    %c0_i32 = arith.constant 0 : i32
    %c0_i32_0 = arith.constant 0 : i32
    %c0_i32_1 = arith.constant 0 : i32
    return %c0_i32, %c0_i32_0 : i32, i32
  }
  func.func @transform_4(%arg0: i32, %arg1: i32) -> (i32, i32) {
    %c0_i32 = arith.constant 0 : i32
    %c0_i32_0 = arith.constant 0 : i32
    %c0_i32_1 = arith.constant 0 : i32
    return %c0_i32, %c0_i32_0 : i32, i32
  }
  func.func @transform_5(%arg0: i32, %arg1: i32) -> (i32, i32) {
    %c0_i32 = arith.constant 0 : i32
    %c0_i32_0 = arith.constant 0 : i32
    %c0_i32_1 = arith.constant 0 : i32
    return %c0_i32, %c0_i32_0 : i32, i32
  }
  func.func @transform_6(%arg0: i32, %arg1: i32) -> (i32, i32) {
    %c0_i32 = arith.constant 0 : i32
    %c0_i32_0 = arith.constant 0 : i32
    %c0_i32_1 = arith.constant 0 : i32
    return %c0_i32, %c0_i32_0 : i32, i32
  }
  func.func @transform_7(%arg0: i32, %arg1: i32) -> (i32, i32, i32) {
    %c0_i32 = arith.constant 0 : i32
    %c0_i32_0 = arith.constant 0 : i32
    %c0_i32_1 = arith.constant 0 : i32
    return %arg0, %c0_i32, %c0_i32_0 : i32, i32, i32
  }
}

</mosaic_0001>

<llo_original>
// kernel: nfnet_forward.6
$region0: #{nfnet_forward.6}
  #allocation0 [shape = 'u32[]', space=smem, size = 0x4, offset = 0x4, fixed_abs, tag = 'smem constant byte address 0x4 - core index']
  #allocation1 [shape = 'u32[72,128]{1,0:T(1,128)}', space=vmem, size = 0x9000, scoped, tag = 'internal scratch']
  %s0 = inlined_call_operand.vmem [shape: bf16[2,9,9,12], index: 0, kind: input, shape index: {}]
  %s1 = inlined_call_operand.vmem [shape: bf16[4,12,128], index: 1, kind: input, shape index: {}]
  %s2 = inlined_call_operand.vmem [shape: f32[1,128], index: 2, kind: input, shape index: {}]
  %s3 = inlined_call_operand.vmem [shape: bf16[2,64,128], index: 3, kind: output, shape index: {}]
  %s4 = sld [smem:[#allocation0]]
  $region45: #{nfnet_forward.6} parent=0
    _
  %s6 = ssub.s32 1, %s4
  %s7 = scalar_select 0, %s6, %s4
  loop: start=0, step=1, limit=4
  $region2: #{nfnet_forward.6} parent=0 // loop_pre_header
    _
  $region3: #{nfnet_forward.6} parent=0 // loop_header
    %s9 = sphi 0, %s13
    %p10 = scmp.ge.s32.totalorder %s9, 4
    %s19 = sphi 0, %s21
    %s22 = sphi 0, %s19
    %s23 = sphi 0, %s22
    %s39 = sphi 0, %s23
    %s43 = sphi 0, %s43
    %s45 = sphi 0, %s43
    %s46 = sphi 0, %s45
    %s60 = sphi 0, %s46
    %s64 = sphi 0, %s64
    %s66 = sphi 0, %s64
    %s67 = sphi 0, %s66
    %s81 = sphi 0, %s67
    %s87 = sphi 0, %s89
    %s90 = sphi 0, %s87
    %s91 = sphi 0, %s90
    %s107 = sphi 0, %s91
  $region4: #{nfnet_forward.6} parent=0 // loop_header_branch
    %12 = sbr.rel (%p10) target = $region8
  $region5: #{nfnet_forward.6} parent=0 // loop_body
    %s14 = ssub.s32 %s9, 1
    %s15 = ssub.s32 %s9, 2
    %s16 = sadd.s32 %s9, 1
    %s17 = ssub.s32 %s9, %s16
    %p18 = scmp.eq.s32.totalorder %s17, 0
    %s20 = sadd.s32 %s19, 1
    %s21 = scalar_select %p18, %s19, %s20
    %p24 = pneg %p18
    %p25 = scmp.eq.s32.totalorder %s9, 1
    %p26 = por %p24, %p25
    %p27 = scmp.ne.s32.totalorder %s19, %s22
    %p28 = scmp.eq.s32.totalorder %s9, 0
    %p29 = por %p27, %p28
    %p30 = scmp.ne.s32.totalorder %s19, %s22
    %p31 = scmp.eq.s32.totalorder %s14, 1
    %p32 = por %p30, %p31
    %p33 = scmp.ne.s32.totalorder %s22, %s23
    %p34 = scmp.eq.s32.totalorder %s14, 0
    %p35 = por %p33, %p34
    %p36 = scmp.ne.s32.totalorder %s22, %s23
    %p37 = scmp.eq.s32.totalorder %s15, 1
    %p38 = por %p36, %p37
    %p40 = scmp.ne.s32.totalorder %s23, %s39
    %p41 = scmp.eq.s32.totalorder %s15, 0
    %p42 = por %p40, %p41
    %s44 = sadd.s32 %s43, 1
    %p47 = scmp.eq.s32.totalorder %s9, 1
    %p48 = scmp.ne.s32.totalorder %s43, %s45
    %p49 = scmp.eq.s32.totalorder %s9, 0
    %p50 = por %p48, %p49
    %p51 = scmp.ne.s32.totalorder %s43, %s45
    %p52 = scmp.eq.s32.totalorder %s14, 1
    %p53 = por %p51, %p52
    %p54 = scmp.ne.s32.totalorder %s45, %s46
    %p55 = scmp.eq.s32.totalorder %s14, 0
    %p56 = por %p54, %p55
    %p57 = scmp.ne.s32.totalorder %s45, %s46
    %p58 = scmp.eq.s32.totalorder %s15, 1
    %p59 = por %p57, %p58
    %p61 = scmp.ne.s32.totalorder %s46, %s60
    %p62 = scmp.eq.s32.totalorder %s15, 0
    %p63 = por %p61, %p62
    %s65 = sadd.s32 %s64, 1
    %p68 = scmp.eq.s32.totalorder %s9, 1
    %p69 = scmp.ne.s32.totalorder %s64, %s66
    %p70 = scmp.eq.s32.totalorder %s9, 0
    %p71 = por %p69, %p70
    %p72 = scmp.ne.s32.totalorder %s64, %s66
    %p73 = scmp.eq.s32.totalorder %s14, 1
    %p74 = por %p72, %p73
    %p75 = scmp.ne.s32.totalorder %s66, %s67
    %p76 = scmp.eq.s32.totalorder %s14, 0
    %p77 = por %p75, %p76
    %p78 = scmp.ne.s32.totalorder %s66, %s67
    %p79 = scmp.eq.s32.totalorder %s15, 1
    %p80 = por %p78, %p79
    %p82 = scmp.ne.s32.totalorder %s67, %s81
    %p83 = scmp.eq.s32.totalorder %s15, 0
    %p84 = por %p82, %p83
    %s85 = ssub.s32 %s9, %s16
    %p86 = scmp.eq.s32.totalorder %s85, 0
    %s88 = sadd.s32 %s87, 1
    %s89 = scalar_select %p86, %s87, %s88
    %p92 = pneg %p86
    %p93 = scmp.eq.s32.totalorder %s9, 1
    %p94 = por %p92, %p93
    %p95 = scmp.ne.s32.totalorder %s87, %s90
    %p96 = scmp.eq.s32.totalorder %s9, 0
    %p97 = por %p95, %p96
    %p98 = scmp.ne.s32.totalorder %s87, %s90
    %p99 = scmp.eq.s32.totalorder %s14, 1
    %p100 = por %p98, %p99
    %p101 = scmp.ne.s32.totalorder %s90, %s91
    %p102 = scmp.eq.s32.totalorder %s14, 0
    %p103 = por %p101, %p102
    %p104 = scmp.ne.s32.totalorder %s90, %s91
    %p105 = scmp.eq.s32.totalorder %s15, 1
    %p106 = por %p104, %p105
    %p108 = scmp.ne.s32.totalorder %s91, %s107
    %p109 = scmp.eq.s32.totalorder %s15, 0
    %p110 = por %p108, %p109
    %p111 = scmp.le.s32.totalorder 1, %s9
    %p112 = scmp.lt.s32.totalorder %s9, 3
    %p113 = pnand %p111, %p112
    %p114 = pneg %p113
    // Predicated region
    $region9: #{nfnet_forward.6} parent=5 // pred_check
      _
    $region10: #{nfnet_forward.6} parent=5 // pred_check_branch
      %116 = sbr.rel (%p113) target = $region12
    $region11: #{nfnet_forward.6} parent=5 // pred_region
      %s117 = ssub.s32 %s9, 1
      // Predicated region
      $region13: #{nfnet_forward.6} parent=11 // pred_check
        %p118 = pneg %p56
      $region14: #{nfnet_forward.6} parent=11 // pred_check_branch
        %120 = sbr.rel (%p118) target = $region16
      $region15: #{nfnet_forward.6} parent=11 // pred_region
        _
      $region16: #{nfnet_forward.6} parent=11 // pred_fallthru
        _
      // Predicated region
      $region17: #{nfnet_forward.6} parent=11 // pred_check
        %p121 = pneg %p77
      $region18: #{nfnet_forward.6} parent=11 // pred_check_branch
        %123 = sbr.rel (%p121) target = $region20
      $region19: #{nfnet_forward.6} parent=11 // pred_region
        _
      $region20: #{nfnet_forward.6} parent=11 // pred_fallthru
        _
    $region12: #{nfnet_forward.6} parent=5 // pred_fallthru
      _
    %p124 = scmp.lt.s32.totalorder %s9, 2
    // Predicated region
    $region21: #{nfnet_forward.6} parent=5 // pred_check
      %p125 = pneg %p124
    $region22: #{nfnet_forward.6} parent=5 // pred_check_branch
      %127 = sbr.rel (%p125) target = $region24
    $region23: #{nfnet_forward.6} parent=5 // pred_region
      // Predicated region
      $region25: #{nfnet_forward.6} parent=23 // pred_check
        %p128 = pneg %p29
      $region26: #{nfnet_forward.6} parent=23 // pred_check_branch
        %130 = sbr.rel (%p128) target = $region28
      $region27: #{nfnet_forward.6} parent=23 // pred_region
        %p131 = scmp.lt.s32.totalorder %s9, 1
        %s132 = scalar_select %p131, %s9, 1
        %s133 = smul.addr %s132, 18
        %s134 = smul.addr %s133, 4
        %s135 = scalar_lea.vmem %s0, %s134
      $region28: #{nfnet_forward.6} parent=23 // pred_fallthru
        _
    $region24: #{nfnet_forward.6} parent=5 // pred_fallthru
      _
    %p136 = scmp.le.s32.totalorder 1, %s9
    %p137 = scmp.lt.s32.totalorder %s9, 3
    %p138 = pnand %p136, %p137
    %p139 = pneg %p138
    // Predicated region
    $region29: #{nfnet_forward.6} parent=5 // pred_check
      _
    $region30: #{nfnet_forward.6} parent=5 // pred_check_branch
      %141 = sbr.rel (%p138) target = $region32
    $region31: #{nfnet_forward.6} parent=5 // pred_region
      %s142 = ssub.s32 %s9, 1
      %p143 = scmp.lt.s32.totalorder %s14, 1
      %s144 = scalar_select %p143, %s14, 1
      %s145 = smul.addr %s144, 18
      %s146 = smul.addr %s145, 4
      %s147 = scalar_lea.vmem %s0, %s146
      %p148 = pneg %p35
      %p149 = pneg %p32
      %p150 = pneg %p56
      %p151 = pneg %p53
      %p152 = pneg %p77
      %p153 = pneg %p74
      %p154 = pneg %p103
      %p155 = pneg %p100
      %p156 = scmp.lt.s32.totalorder %s14, 1
      %s157 = scalar_select %p156, %s14, 1
      %s158 = smul.addr %s157, 8
      %s159 = smul.addr %s158, 4
      %s160 = scalar_lea.vmem %s3, %s159
      %p161 = scmp.lt.s32.totalorder %s14, 1
      %s162 = scalar_select %p161, %s14, 1
      %s163 = smul.addr %s162, 18
      %s164 = smul.addr %s163, 4
      %s165 = scalar_lea.vmem %s0, %s164
      %p166 = scmp.lt.s32.totalorder %s14, 1
      %s167 = scalar_select %p166, %s14, 1
      %s168 = smul.addr %s167, 8
      %s169 = smul.addr %s168, 4
      %s170 = scalar_lea.vmem %s3, %s169
      %v172 = vld [vmem:[%s165] sm:$0xf]
      %v173 = vld [vmem:[%s165 + $0x4] sm:$0x1]
      %v174 = vld [vmem:[%s165 + $0x8] sm:$0xf]
      %v175 = vld [vmem:[%s165 + $0xc] sm:$0x1]
      %v176 = vld [vmem:[%s165 + $0x10] sm:$0xf]
      %v177 = vld [vmem:[%s165 + $0x14] sm:$0x1]
      %v178 = vld [vmem:[%s165 + $0x18] sm:$0xf]
      %v179 = vld [vmem:[%s165 + $0x1c] sm:$0x1]
      %v180 = vld [vmem:[%s165 + $0x20] sm:$0xf]
      %v181 = vld [vmem:[%s165 + $0x24] sm:$0x1]
      %v182 = vld [vmem:[%s165 + $0x28] sm:$0xf]
      %v183 = vld [vmem:[%s165 + $0x2c] sm:$0x1]
      %v184 = vld [vmem:[%s165 + $0x30] sm:$0xf]
      %v185 = vld [vmem:[%s165 + $0x34] sm:$0x1]
      %v186 = vld [vmem:[%s165 + $0x38] sm:$0xf]
      %v187 = vld [vmem:[%s165 + $0x3c] sm:$0x1]
      %v188 = vld [vmem:[%s165 + $0x40] sm:$0xf]
      %v189 = vld [vmem:[%s165 + $0x44] sm:$0x1]
      %v190 = vld [vmem:[%s1] sm:$0xf]
      %v191 = vld [vmem:[%s1 + $0x4] sm:$0x3]
      %vm192 = vsmask.f32 3328
      %vm193 = vsmask.f32 7440
      %vm194 = vmor %vm192, %vm193
      %v196 = vshrl.u32 %v172, 16
      %v198 = vrot.slane %v196, 4
      %v199 = vshll.u32 %v172, 16
      %v201 = vrot.slane %v199, 5
      %v202 = vor.u32 %v198, %v201
      %v203 = vrot.slane %v202, 4
      %v205 = vshll.u32 %v173, 16
      %v207 = vrot.slane %v205, 5
      %v208 = vsel %vm194, %v203, %v207
      %v210 = vshrl.u32 %v174, 16
      %v212 = vrot.slane %v210, 4
      %v213 = vshll.u32 %v174, 16
      %v215 = vrot.slane %v213, 5
      %v216 = vor.u32 %v212, %v215
      %v217 = vrot.slane %v216, 4
      %v219 = vshll.u32 %v175, 16
      %v221 = vrot.slane %v219, 5
      %v222 = vsel %vm194, %v217, %v221
      %v224 = vshrl.u32 %v176, 16
      %v226 = vrot.slane %v224, 4
      %v227 = vshll.u32 %v176, 16
      %v229 = vrot.slane %v227, 5
      %v230 = vor.u32 %v226, %v229
      %v231 = vrot.slane %v230, 4
      %v233 = vshll.u32 %v177, 16
      %v235 = vrot.slane %v233, 5
      %v236 = vsel %vm194, %v231, %v235
      %v238 = vshrl.u32 %v178, 16
      %v240 = vrot.slane %v238, 4
      %v241 = vshll.u32 %v178, 16
      %v243 = vrot.slane %v241, 5
      %v244 = vor.u32 %v240, %v243
      %v245 = vrot.slane %v244, 4
      %v247 = vshll.u32 %v179, 16
      %v249 = vrot.slane %v247, 5
      %v250 = vsel %vm194, %v245, %v249
      %v252 = vshrl.u32 %v180, 16
      %v254 = vrot.slane %v252, 4
      %v255 = vshll.u32 %v180, 16
      %v257 = vrot.slane %v255, 5
      %v258 = vor.u32 %v254, %v257
      %v259 = vrot.slane %v258, 4
      %v261 = vshll.u32 %v181, 16
      %v263 = vrot.slane %v261, 5
      %v264 = vsel %vm194, %v259, %v263
      %v266 = vshrl.u32 %v182, 16
      %v268 = vrot.slane %v266, 4
      %v269 = vshll.u32 %v182, 16
      %v271 = vrot.slane %v269, 5
      %v272 = vor.u32 %v268, %v271
      %v273 = vrot.slane %v272, 4
      %v275 = vshll.u32 %v183, 16
      %v277 = vrot.slane %v275, 5
      %v278 = vsel %vm194, %v273, %v277
      %v280 = vshrl.u32 %v184, 16
      %v282 = vrot.slane %v280, 4
      %v283 = vshll.u32 %v184, 16
      %v285 = vrot.slane %v283, 5
      %v286 = vor.u32 %v282, %v285
      %v287 = vrot.slane %v286, 4
      %v289 = vshll.u32 %v185, 16
      %v291 = vrot.slane %v289, 5
      %v292 = vsel %vm194, %v287, %v291
      %v294 = vshrl.u32 %v186, 16
      %v296 = vrot.slane %v294, 4
      %v297 = vshll.u32 %v186, 16
      %v299 = vrot.slane %v297, 5
      %v300 = vor.u32 %v296, %v299
      %v301 = vrot.slane %v300, 4
      %v303 = vshll.u32 %v187, 16
      %v305 = vrot.slane %v303, 5
      %v306 = vsel %vm194, %v301, %v305
      %s307 = scalar_lea.vmem %s1, 8
      %v308 = vld [vmem:[%s307] sm:$0xf]
      %v309 = vld [vmem:[%s307 + $0x4] sm:$0x3]
      %v310 = vunpack.c.l.b16 %v208
      %v311 = vunpack.c.l.b16 %v222
      %v312 = vunpack.c.l.b16 %v236
      %v313 = vunpack.c.l.b16 %v250
      %v314 = vunpack.c.l.b16 %v264
      %v315 = vunpack.c.l.b16 %v278
      %v316 = vunpack.c.l.b16 %v292
      %v317 = vunpack.c.l.b16 %v306
      %v318 = vpack.c.b16 %v311, %v310
      %v319 = vpack.c.b16 %v313, %v312
      %v320 = vpack.c.b16 %v315, %v314
      %v321 = vpack.c.b16 %v317, %v316
      %v324 = vunpack.c.l.b16 %v308
      %v325 = vunpack.c.l.b16 %v309
      %v326 = vpack.c.b16 %v325, %v324
      %vm327 = vcmask 97280
      %v329 = vsel %vm327, %v318, 0
      %v332 = vsel %vm327, %v319, 0
      %v335 = vsel %vm327, %v320, 0
      %v338 = vsel %vm327, %v321, 0
      %vm340 = vcmask 1045504
      %v342 = vsel %vm340, %v326, 0
      %344 = vmatpush.bf16.msra.mxu0 0
      %345 = vmatpush.bf16.msra.mxu0 0
      %346 = vmatpush.bf16.msra.mxu0 0
      %347 = vmatpush.bf16.msra.mxu0 0
      %348 = vmatpush.bf16.msra.mxu0 0
      %349 = vmatpush.bf16.msra.mxu0 0
      %350 = vmatpush.bf16.msra.mxu0 0
      %351 = vmatpush.bf16.msra.mxu0 %v342
      %352 = vmatmul.bf16.gmra.mxu0 %v329
      %v353 = vpop.f32.mrf.mxu0
      %v354 = vadd.f32 0.0, %v353
      %v355 = vpop.f32.mrf.mxu0
      %v356 = vadd.f32 0.0, %v355
      %357 = vmatmul.bf16.gmra.mxu0 %v332
      %v358 = vpop.f32.mrf.mxu0
      %v359 = vadd.f32 0.0, %v358
      %v360 = vpop.f32.mrf.mxu0
      %v361 = vadd.f32 0.0, %v360
      %362 = vmatmul.bf16.gmra.mxu0 %v335
      %v363 = vpop.f32.mrf.mxu0
      %v364 = vadd.f32 0.0, %v363
      %v365 = vpop.f32.mrf.mxu0
      %v366 = vadd.f32 0.0, %v365
      %367 = vmatmul.bf16.gmra.mxu0 %v338
      %v368 = vpop.f32.mrf.mxu0
      %v369 = vadd.f32 0.0, %v368
      %v370 = vpop.f32.mrf.mxu0
      %v371 = vadd.f32 0.0, %v370
      %372 = vdwg.mxu0
      %v381 = vunpack.c.l.b16 %v172
      %v382 = vunpack.c.l.b16 %v174
      %v383 = vunpack.c.l.b16 %v176
      %v384 = vunpack.c.l.b16 %v178
      %v385 = vunpack.c.l.b16 %v180
      %v386 = vunpack.c.l.b16 %v182
      %v387 = vunpack.c.l.b16 %v184
      %v388 = vunpack.c.l.b16 %v186
      %v389 = vpack.c.b16 %v382, %v381
      %v390 = vpack.c.b16 %v384, %v383
      %v391 = vpack.c.b16 %v386, %v385
      %v392 = vpack.c.b16 %v388, %v387
      %v395 = vunpack.c.l.b16 %v190
      %v396 = vunpack.c.l.b16 %v191
      %v397 = vpack.c.b16 %v396, %v395
      %v399 = vsel %vm327, %v389, 0
      %v402 = vsel %vm327, %v390, 0
      %v405 = vsel %vm327, %v391, 0
      %v408 = vsel %vm327, %v392, 0
      %v411 = vsel %vm340, %v397, 0
      %413 = vmatpush.bf16.msra.mxu0 0
      %414 = vmatpush.bf16.msra.mxu0 0
      %415 = vmatpush.bf16.msra.mxu0 0
      %416 = vmatpush.bf16.msra.mxu0 0
      %417 = vmatpush.bf16.msra.mxu0 0
      %418 = vmatpush.bf16.msra.mxu0 0
      %419 = vmatpush.bf16.msra.mxu0 0
      %420 = vmatpush.bf16.msra.mxu0 %v411
      %421 = vmatmul.bf16.gmra.mxu0 %v399
      %v422 = vpop.f32.mrf.mxu0
      %v423 = vadd.f32 %v354, %v422
      %v424 = vpop.f32.mrf.mxu0
      %v425 = vadd.f32 %v356, %v424
      %426 = vmatmul.bf16.gmra.mxu0 %v402
      %v427 = vpop.f32.mrf.mxu0
      %v428 = vadd.f32 %v359, %v427
      %v429 = vpop.f32.mrf.mxu0
      %v430 = vadd.f32 %v361, %v429
      %431 = vmatmul.bf16.gmra.mxu0 %v405
      %v432 = vpop.f32.mrf.mxu0
      %v433 = vadd.f32 %v364, %v432
      %v434 = vpop.f32.mrf.mxu0
      %v435 = vadd.f32 %v366, %v434
      %436 = vmatmul.bf16.gmra.mxu0 %v408
      %v437 = vpop.f32.mrf.mxu0
      %v438 = vadd.f32 %v369, %v437
      %v439 = vpop.f32.mrf.mxu0
      %v440 = vadd.f32 %v371, %v439
      %441 = vdwg.mxu0
      %s442 = scalar_lea.vmem %s1, 16
      %v443 = vld [vmem:[%s442] sm:$0xf]
      %v444 = vld [vmem:[%s442 + $0x4] sm:$0x3]
      %v446 = vunpack.c.l.b16 %v188
      %v447 = vpack.c.b16 %v383, %v382
      %v448 = vpack.c.b16 %v385, %v384
      %v449 = vpack.c.b16 %v387, %v386
      %v450 = vpack.c.b16 %v446, %v388
      %v453 = vunpack.c.l.b16 %v443
      %v454 = vunpack.c.l.b16 %v444
      %v455 = vpack.c.b16 %v454, %v453
      %v457 = vsel %vm327, %v447, 0
      %v460 = vsel %vm327, %v448, 0
      %v463 = vsel %vm327, %v449, 0
      %v466 = vsel %vm327, %v450, 0
      %v469 = vsel %vm340, %v455, 0
      %471 = vmatpush.bf16.msra.mxu0 0
      %472 = vmatpush.bf16.msra.mxu0 0
      %473 = vmatpush.bf16.msra.mxu0 0
      %474 = vmatpush.bf16.msra.mxu0 0
      %475 = vmatpush.bf16.msra.mxu0 0
      %476 = vmatpush.bf16.msra.mxu0 0
      %477 = vmatpush.bf16.msra.mxu0 0
      %478 = vmatpush.bf16.msra.mxu0 %v469
      %479 = vmatmul.bf16.gmra.mxu0 %v457
      %v480 = vpop.f32.mrf.mxu0
      %v481 = vadd.f32 0.0, %v480
      %v482 = vpop.f32.mrf.mxu0
      %v483 = vadd.f32 0.0, %v482
      %484 = vmatmul.bf16.gmra.mxu0 %v460
      %v485 = vpop.f32.mrf.mxu0
      %v486 = vadd.f32 0.0, %v485
      %v487 = vpop.f32.mrf.mxu0
      %v488 = vadd.f32 0.0, %v487
      %489 = vmatmul.bf16.gmra.mxu0 %v463
      %v490 = vpop.f32.mrf.mxu0
      %v491 = vadd.f32 0.0, %v490
      %v492 = vpop.f32.mrf.mxu0
      %v493 = vadd.f32 0.0, %v492
      %494 = vmatmul.bf16.gmra.mxu0 %v466
      %v495 = vpop.f32.mrf.mxu0
      %v496 = vadd.f32 0.0, %v495
      %v497 = vpop.f32.mrf.mxu0
      %v498 = vadd.f32 0.0, %v497
      %499 = vdwg.mxu0
      %v500 = vadd.f32 %v423, %v481
      %v501 = vadd.f32 %v425, %v483
      %v502 = vadd.f32 %v428, %v486
      %v503 = vadd.f32 %v430, %v488
      %v504 = vadd.f32 %v433, %v491
      %v505 = vadd.f32 %v435, %v493
      %v506 = vadd.f32 %v438, %v496
      %v507 = vadd.f32 %v440, %v498
      %v509 = vshrl.u32 %v188, 16
      %v511 = vrot.slane %v509, 4
      %v512 = vshll.u32 %v188, 16
      %v514 = vrot.slane %v512, 5
      %v515 = vor.u32 %v511, %v514
      %v516 = vrot.slane %v515, 4
      %v518 = vshll.u32 %v189, 16
      %v520 = vrot.slane %v518, 5
      %v521 = vsel %vm194, %v516, %v520
      %s522 = scalar_lea.vmem %s1, 24
      %v523 = vld [vmem:[%s522] sm:$0xf]
      %v524 = vld [vmem:[%s522 + $0x4] sm:$0x3]
      %v525 = vunpack.c.l.b16 %v521
      %v526 = vpack.c.b16 %v312, %v311
      %v527 = vpack.c.b16 %v314, %v313
      %v528 = vpack.c.b16 %v316, %v315
      %v529 = vpack.c.b16 %v525, %v317
      %v532 = vunpack.c.l.b16 %v523
      %v533 = vunpack.c.l.b16 %v524
      %v534 = vpack.c.b16 %v533, %v532
      %v536 = vsel %vm327, %v526, 0
      %v539 = vsel %vm327, %v527, 0
      %v542 = vsel %vm327, %v528, 0
      %v545 = vsel %vm327, %v529, 0
      %v548 = vsel %vm340, %v534, 0
      %550 = vmatpush.bf16.msra.mxu0 0
      %551 = vmatpush.bf16.msra.mxu0 0
      %552 = vmatpush.bf16.msra.mxu0 0
      %553 = vmatpush.bf16.msra.mxu0 0
      %554 = vmatpush.bf16.msra.mxu0 0
      %555 = vmatpush.bf16.msra.mxu0 0
      %556 = vmatpush.bf16.msra.mxu0 0
      %557 = vmatpush.bf16.msra.mxu0 %v548
      %558 = vmatmul.bf16.gmra.mxu0 %v536
      %v559 = vpop.f32.mrf.mxu0
      %v560 = vadd.f32 0.0, %v559
      %v561 = vpop.f32.mrf.mxu0
      %v562 = vadd.f32 0.0, %v561
      %563 = vmatmul.bf16.gmra.mxu0 %v539
      %v564 = vpop.f32.mrf.mxu0
      %v565 = vadd.f32 0.0, %v564
      %v566 = vpop.f32.mrf.mxu0
      %v567 = vadd.f32 0.0, %v566
      %568 = vmatmul.bf16.gmra.mxu0 %v542
      %v569 = vpop.f32.mrf.mxu0
      %v570 = vadd.f32 0.0, %v569
      %v571 = vpop.f32.mrf.mxu0
      %v572 = vadd.f32 0.0, %v571
      %573 = vmatmul.bf16.gmra.mxu0 %v545
      %v574 = vpop.f32.mrf.mxu0
      %v575 = vadd.f32 0.0, %v574
      %v576 = vpop.f32.mrf.mxu0
      %v577 = vadd.f32 0.0, %v576
      %578 = vdwg.mxu0
      %v579 = vadd.f32 %v500, %v560
      %v580 = vadd.f32 %v501, %v562
      %v581 = vadd.f32 %v502, %v565
      %v582 = vadd.f32 %v503, %v567
      %v583 = vadd.f32 %v504, %v570
      %v584 = vadd.f32 %v505, %v572
      %v585 = vadd.f32 %v506, %v575
      %v586 = vadd.f32 %v507, %v577
      %v587 = vld [vmem:[%s2] sm:$0x1]
      %v589 = vperm.slane %v587, 0
      %v591 = vadd.f32 %v579, %v589
      %v592 = vadd.f32 %v580, %v589
      %v593 = vadd.f32 %v581, %v589
      %v594 = vadd.f32 %v582, %v589
      %v595 = vadd.f32 %v583, %v589
      %v596 = vadd.f32 %v584, %v589
      %v597 = vadd.f32 %v585, %v589
      %v598 = vadd.f32 %v586, %v589
      %v599 = vmul.f32 %v591, %v591
      %v600 = vmul.f32 %v592, %v592
      %v601 = vmul.f32 %v593, %v593
      %v602 = vmul.f32 %v594, %v594
      %v603 = vmul.f32 %v595, %v595
      %v604 = vmul.f32 %v596, %v596
      %v605 = vmul.f32 %v597, %v597
      %v606 = vmul.f32 %v598, %v598
      %v607 = vmul.f32 %v591, %v599
      %v608 = vmul.f32 %v592, %v600
      %v609 = vmul.f32 %v593, %v601
      %v610 = vmul.f32 %v594, %v602
      %v611 = vmul.f32 %v595, %v603
      %v612 = vmul.f32 %v596, %v604
      %v613 = vmul.f32 %v597, %v605
      %v614 = vmul.f32 %v598, %v606
      %v615 = vmul.f32 %v607, 0.044715
      %v616 = vmul.f32 %v608, 0.044715
      %v617 = vmul.f32 %v609, 0.044715
      %v618 = vmul.f32 %v610, 0.044715
      %v619 = vmul.f32 %v611, 0.044715
      %v620 = vmul.f32 %v612, 0.044715
      %v621 = vmul.f32 %v613, 0.044715
      %v622 = vmul.f32 %v614, 0.044715
      %v623 = vadd.f32 %v591, %v615
      %v624 = vadd.f32 %v592, %v616
      %v625 = vadd.f32 %v593, %v617
      %v626 = vadd.f32 %v594, %v618
      %v627 = vadd.f32 %v595, %v619
      %v628 = vadd.f32 %v596, %v620
      %v629 = vadd.f32 %v597, %v621
      %v630 = vadd.f32 %v598, %v622
      %v631 = vmul.f32 %v623, 0.7978846
      %v632 = vmul.f32 %v624, 0.7978846
      %v633 = vmul.f32 %v625, 0.7978846
      %v634 = vmul.f32 %v626, 0.7978846
      %v635 = vmul.f32 %v627, 0.7978846
      %v636 = vmul.f32 %v628, 0.7978846
      %v637 = vmul.f32 %v629, 0.7978846
      %v638 = vmul.f32 %v630, 0.7978846
      %v639 = vtanh.pop %v631
      %v640 = vtanh.pop %v632
      %v641 = vtanh.pop %v633
      %v642 = vtanh.pop %v634
      %v643 = vtanh.pop %v635
      %v644 = vtanh.pop %v636
      %v645 = vtanh.pop %v637
      %v646 = vtanh.pop %v638
      %v647 = vadd.f32 %v639, 1.0
      %v648 = vadd.f32 %v640, 1.0
      %v649 = vadd.f32 %v641, 1.0
      %v650 = vadd.f32 %v642, 1.0
      %v651 = vadd.f32 %v643, 1.0
      %v652 = vadd.f32 %v644, 1.0
      %v653 = vadd.f32 %v645, 1.0
      %v654 = vadd.f32 %v646, 1.0
      %v655 = vmul.f32 %v647, 0.5
      %v656 = vmul.f32 %v648, 0.5
      %v657 = vmul.f32 %v649, 0.5
      %v658 = vmul.f32 %v650, 0.5
      %v659 = vmul.f32 %v651, 0.5
      %v660 = vmul.f32 %v652, 0.5
      %v661 = vmul.f32 %v653, 0.5
      %v662 = vmul.f32 %v654, 0.5
      %v663 = vmul.f32 %v591, %v655
      %v664 = vmul.f32 %v592, %v656
      %v665 = vmul.f32 %v593, %v657
      %v666 = vmul.f32 %v594, %v658
      %v667 = vmul.f32 %v595, %v659
      %v668 = vmul.f32 %v596, %v660
      %v669 = vmul.f32 %v597, %v661
      %v670 = vmul.f32 %v598, %v662
      %v671 = vmul.f32 %v663, 1.7015043
      %v672 = vmul.f32 %v664, 1.7015043
      %v673 = vmul.f32 %v665, 1.7015043
      %v674 = vmul.f32 %v666, 1.7015043
      %v675 = vmul.f32 %v667, 1.7015043
      %v676 = vmul.f32 %v668, 1.7015043
      %v677 = vmul.f32 %v669, 1.7015043
      %v678 = vmul.f32 %v670, 1.7015043
      %v679 = vpack.c.bf16 %v671, %v671
      %v680 = vpack.c.bf16 %v672, %v672
      %v681 = vpack.c.bf16 %v673, %v673
      %v682 = vpack.c.bf16 %v674, %v674
      %v683 = vpack.c.bf16 %v675, %v675
      %v684 = vpack.c.bf16 %v676, %v676
      %v685 = vpack.c.bf16 %v677, %v677
      %v686 = vpack.c.bf16 %v678, %v678
      %687 = vst [vmem:[%s170] sm:$0xf] %v679
      %688 = vst [vmem:[%s170 + $0x4] sm:$0xf] %v680
      %689 = vst [vmem:[%s170 + $0x8] sm:$0xf] %v681
      %690 = vst [vmem:[%s170 + $0xc] sm:$0xf] %v682
      %691 = vst [vmem:[%s170 + $0x10] sm:$0xf] %v683
      %692 = vst [vmem:[%s170 + $0x14] sm:$0xf] %v684
      %693 = vst [vmem:[%s170 + $0x18] sm:$0xf] %v685
      %694 = vst [vmem:[%s170 + $0x1c] sm:$0xf] %v686
      %p695 = scmp.lt.s32.totalorder %s14, 1
      %s696 = scalar_select %p695, %s14, 1
      %s697 = smul.addr %s696, 8
      %s698 = smul.addr %s697, 4
      %s699 = scalar_lea.vmem %s3, %s698
      // Predicated region
      $region33: #{nfnet_forward.6} parent=31 // pred_check
        %p700 = pneg %p100
      $region34: #{nfnet_forward.6} parent=31 // pred_check_branch
        %702 = sbr.rel (%p700) target = $region36
      $region35: #{nfnet_forward.6} parent=31 // pred_region
        _
      $region36: #{nfnet_forward.6} parent=31 // pred_fallthru
        _
    $region32: #{nfnet_forward.6} parent=5 // pred_fallthru
      _
    %p703 = scmp.le.s32.totalorder 2, %s9
    // Predicated region
    $region37: #{nfnet_forward.6} parent=5 // pred_check
      %p704 = pneg %p703
    $region38: #{nfnet_forward.6} parent=5 // pred_check_branch
      %706 = sbr.rel (%p704) target = $region40
    $region39: #{nfnet_forward.6} parent=5 // pred_region
      %s707 = ssub.s32 %s9, 2
      // Predicated region
      $region41: #{nfnet_forward.6} parent=39 // pred_check
        %p708 = pneg %p106
      $region42: #{nfnet_forward.6} parent=39 // pred_check_branch
        %710 = sbr.rel (%p708) target = $region44
      $region43: #{nfnet_forward.6} parent=39 // pred_region
        %p711 = scmp.lt.s32.totalorder %s15, 1
        %s712 = scalar_select %p711, %s15, 1
        %s713 = smul.addr %s712, 8
        %s714 = smul.addr %s713, 4
        %s715 = scalar_lea.vmem %s3, %s714
      $region44: #{nfnet_forward.6} parent=39 // pred_fallthru
        _
    $region40: #{nfnet_forward.6} parent=5 // pred_fallthru
      _
  $region6: #{nfnet_forward.6} parent=0 // loop_footer
    %s13 = sadd.s32 1, %s9
  $region7: #{nfnet_forward.6} parent=0 // loop_footer_branch
    %8 = sbr.rel target = $region3
  $region8: #{nfnet_forward.6} parent=0 // loop_exit
    _

// kernel: nfnet_forward.7
$region0: #{nfnet_forward.7}
  #allocation0 [shape = 'u32[]', space=smem, size = 0x4, offset = 0x4, fixed_abs, tag = 'smem constant byte address 0x4 - core index']
  #allocation1 [shape = 'u32[72,128]{1,0:T(1,128)}', space=vmem, size = 0x9000, scoped, tag = 'internal scratch']
  %s0 = inlined_call_operand.vmem [shape: bf16[128,128], index: 0, kind: input, shape index: {}]
  %s1 = inlined_call_operand.vmem [shape: bf16[128,128], index: 1, kind: input, shape index: {}]
  %s2 = inlined_call_operand.vmem [shape: f32[1,128], index: 2, kind: input, shape index: {}]
  %s3 = inlined_call_operand.vmem [shape: bf16[128,128], index: 3, kind: output, shape index: {}]
  %s4 = sld [smem:[#allocation0]]
  $region22: #{nfnet_forward.7} parent=0
    _
  %s6 = ssub.s32 1, %s4
  %s7 = scalar_select 0, %s6, %s4
  // Predicated region
  $region2: #{nfnet_forward.7} parent=0 // pred_check
    _
  $region3: #{nfnet_forward.7} parent=0 // pred_check_branch
    %9 = sbr.rel (0) target = $region5
  $region4: #{nfnet_forward.7} parent=0 // pred_region
    _
  $region5: #{nfnet_forward.7} parent=0 // pred_fallthru
    _
  // Predicated region
  $region6: #{nfnet_forward.7} parent=0 // pred_check
    _
  $region7: #{nfnet_forward.7} parent=0 // pred_check_branch
    %11 = sbr.rel (0) target = $region9
  $region8: #{nfnet_forward.7} parent=0 // pred_region
    _
  $region9: #{nfnet_forward.7} parent=0 // pred_fallthru
    _
  // Predicated region
  $region10: #{nfnet_forward.7} parent=0 // pred_check
    _
  $region11: #{nfnet_forward.7} parent=0 // pred_check_branch
    %13 = sbr.rel (0) target = $region13
  $region12: #{nfnet_forward.7} parent=0 // pred_region
    _
  $region13: #{nfnet_forward.7} parent=0 // pred_fallthru
    _
  %v14 = vld [vmem:[%s0] sm:$0xf]
  %v15 = vld [vmem:[%s0 + $0x4] sm:$0xf]
  %v16 = vld [vmem:[%s0 + $0x8] sm:$0xf]
  %v17 = vld [vmem:[%s0 + $0xc] sm:$0xf]
  %v18 = vld [vmem:[%s0 + $0x10] sm:$0xf]
  %v19 = vld [vmem:[%s0 + $0x14] sm:$0xf]
  %v20 = vld [vmem:[%s0 + $0x18] sm:$0xf]
  %v21 = vld [vmem:[%s0 + $0x1c] sm:$0xf]
  %v22 = vld [vmem:[%s0 + $0x20] sm:$0xf]
  %v23 = vld [vmem:[%s0 + $0x24] sm:$0xf]
  %v24 = vld [vmem:[%s0 + $0x28] sm:$0xf]
  %v25 = vld [vmem:[%s0 + $0x2c] sm:$0xf]
  %v26 = vld [vmem:[%s0 + $0x30] sm:$0xf]
  %v27 = vld [vmem:[%s0 + $0x34] sm:$0xf]
  %v28 = vld [vmem:[%s0 + $0x38] sm:$0xf]
  %v29 = vld [vmem:[%s0 + $0x3c] sm:$0xf]
  %v30 = vunpack.c.l.bf16 %v14
  %v31 = vunpack.c.l.bf16 %v15
  %v32 = vunpack.c.l.bf16 %v16
  %v33 = vunpack.c.l.bf16 %v17
  %v34 = vunpack.c.l.bf16 %v18
  %v35 = vunpack.c.l.bf16 %v19
  %v36 = vunpack.c.l.bf16 %v20
  %v37 = vunpack.c.l.bf16 %v21
  %v38 = vunpack.c.l.bf16 %v22
  %v39 = vunpack.c.l.bf16 %v23
  %v40 = vunpack.c.l.bf16 %v24
  %v41 = vunpack.c.l.bf16 %v25
  %v42 = vunpack.c.l.bf16 %v26
  %v43 = vunpack.c.l.bf16 %v27
  %v44 = vunpack.c.l.bf16 %v28
  %v45 = vunpack.c.l.bf16 %v29
  %v46 = vmul.f32 %v30, %v30
  %v47 = vmul.f32 %v31, %v31
  %v48 = vmul.f32 %v32, %v32
  %v49 = vmul.f32 %v33, %v33
  %v50 = vmul.f32 %v34, %v34
  %v51 = vmul.f32 %v35, %v35
  %v52 = vmul.f32 %v36, %v36
  %v53 = vmul.f32 %v37, %v37
  %v54 = vmul.f32 %v38, %v38
  %v55 = vmul.f32 %v39, %v39
  %v56 = vmul.f32 %v40, %v40
  %v57 = vmul.f32 %v41, %v41
  %v58 = vmul.f32 %v42, %v42
  %v59 = vmul.f32 %v43, %v43
  %v60 = vmul.f32 %v44, %v44
  %v61 = vmul.f32 %v45, %v45
  %v62 = vmul.f32 %v30, %v46
  %v63 = vmul.f32 %v31, %v47
  %v64 = vmul.f32 %v32, %v48
  %v65 = vmul.f32 %v33, %v49
  %v66 = vmul.f32 %v34, %v50
  %v67 = vmul.f32 %v35, %v51
  %v68 = vmul.f32 %v36, %v52
  %v69 = vmul.f32 %v37, %v53
  %v70 = vmul.f32 %v38, %v54
  %v71 = vmul.f32 %v39, %v55
  %v72 = vmul.f32 %v40, %v56
  %v73 = vmul.f32 %v41, %v57
  %v74 = vmul.f32 %v42, %v58
  %v75 = vmul.f32 %v43, %v59
  %v76 = vmul.f32 %v44, %v60
  %v77 = vmul.f32 %v45, %v61
  %v78 = vmul.f32 %v62, 0.044715
  %v79 = vmul.f32 %v63, 0.044715
  %v80 = vmul.f32 %v64, 0.044715
  %v81 = vmul.f32 %v65, 0.044715
  %v82 = vmul.f32 %v66, 0.044715
  %v83 = vmul.f32 %v67, 0.044715
  %v84 = vmul.f32 %v68, 0.044715
  %v85 = vmul.f32 %v69, 0.044715
  %v86 = vmul.f32 %v70, 0.044715
  %v87 = vmul.f32 %v71, 0.044715
  %v88 = vmul.f32 %v72, 0.044715
  %v89 = vmul.f32 %v73, 0.044715
  %v90 = vmul.f32 %v74, 0.044715
  %v91 = vmul.f32 %v75, 0.044715
  %v92 = vmul.f32 %v76, 0.044715
  %v93 = vmul.f32 %v77, 0.044715
  %v94 = vadd.f32 %v30, %v78
  %v95 = vadd.f32 %v31, %v79
  %v96 = vadd.f32 %v32, %v80
  %v97 = vadd.f32 %v33, %v81
  %v98 = vadd.f32 %v34, %v82
  %v99 = vadd.f32 %v35, %v83
  %v100 = vadd.f32 %v36, %v84
  %v101 = vadd.f32 %v37, %v85
  %v102 = vadd.f32 %v38, %v86
  %v103 = vadd.f32 %v39, %v87
  %v104 = vadd.f32 %v40, %v88
  %v105 = vadd.f32 %v41, %v89
  %v106 = vadd.f32 %v42, %v90
  %v107 = vadd.f32 %v43, %v91
  %v108 = vadd.f32 %v44, %v92
  %v109 = vadd.f32 %v45, %v93
  %v110 = vmul.f32 %v94, 0.7978846
  %v111 = vmul.f32 %v95, 0.7978846
  %v112 = vmul.f32 %v96, 0.7978846
  %v113 = vmul.f32 %v97, 0.7978846
  %v114 = vmul.f32 %v98, 0.7978846
  %v115 = vmul.f32 %v99, 0.7978846
  %v116 = vmul.f32 %v100, 0.7978846
  %v117 = vmul.f32 %v101, 0.7978846
  %v118 = vmul.f32 %v102, 0.7978846
  %v119 = vmul.f32 %v103, 0.7978846
  %v120 = vmul.f32 %v104, 0.7978846
  %v121 = vmul.f32 %v105, 0.7978846
  %v122 = vmul.f32 %v106, 0.7978846
  %v123 = vmul.f32 %v107, 0.7978846
  %v124 = vmul.f32 %v108, 0.7978846
  %v125 = vmul.f32 %v109, 0.7978846
  %v126 = vtanh.pop %v110
  %v127 = vtanh.pop %v111
  %v128 = vtanh.pop %v112
  %v129 = vtanh.pop %v113
  %v130 = vtanh.pop %v114
  %v131 = vtanh.pop %v115
  %v132 = vtanh.pop %v116
  %v133 = vtanh.pop %v117
  %v134 = vtanh.pop %v118
  %v135 = vtanh.pop %v119
  %v136 = vtanh.pop %v120
  %v137 = vtanh.pop %v121
  %v138 = vtanh.pop %v122
  %v139 = vtanh.pop %v123
  %v140 = vtanh.pop %v124
  %v141 = vtanh.pop %v125
  %v142 = vadd.f32 %v126, 1.0
  %v143 = vadd.f32 %v127, 1.0
  %v144 = vadd.f32 %v128, 1.0
  %v145 = vadd.f32 %v129, 1.0
  %v146 = vadd.f32 %v130, 1.0
  %v147 = vadd.f32 %v131, 1.0
  %v148 = vadd.f32 %v132, 1.0
  %v149 = vadd.f32 %v133, 1.0
  %v150 = vadd.f32 %v134, 1.0
  %v151 = vadd.f32 %v135, 1.0
  %v152 = vadd.f32 %v136, 1.0
  %v153 = vadd.f32 %v137, 1.0
  %v154 = vadd.f32 %v138, 1.0
  %v155 = vadd.f32 %v139, 1.0
  %v156 = vadd.f32 %v140, 1.0
  %v157 = vadd.f32 %v141, 1.0
  %v158 = vmul.f32 %v142, 0.5
  %v159 = vmul.f32 %v143, 0.5
  %v160 = vmul.f32 %v144, 0.5
  %v161 = vmul.f32 %v145, 0.5
  %v162 = vmul.f32 %v146, 0.5
  %v163 = vmul.f32 %v147, 0.5
  %v164 = vmul.f32 %v148, 0.5
  %v165 = vmul.f32 %v149, 0.5
  %v166 = vmul.f32 %v150, 0.5
  %v167 = vmul.f32 %v151, 0.5
  %v168 = vmul.f32 %v152, 0.5
  %v169 = vmul.f32 %v153, 0.5
  %v170 = vmul.f32 %v154, 0.5
  %v171 = vmul.f32 %v155, 0.5
  %v172 = vmul.f32 %v156, 0.5
  %v173 = vmul.f32 %v157, 0.5
  %v174 = vmul.f32 %v30, %v158
  %v175 = vmul.f32 %v31, %v159
  %v176 = vmul.f32 %v32, %v160
  %v177 = vmul.f32 %v33, %v161
  %v178 = vmul.f32 %v34, %v162
  %v179 = vmul.f32 %v35, %v163
  %v180 = vmul.f32 %v36, %v164
  %v181 = vmul.f32 %v37, %v165
  %v182 = vmul.f32 %v38, %v166
  %v183 = vmul.f32 %v39, %v167
  %v184 = vmul.f32 %v40, %v168
  %v185 = vmul.f32 %v41, %v169
  %v186 = vmul.f32 %v42, %v170
  %v187 = vmul.f32 %v43, %v171
  %v188 = vmul.f32 %v44, %v172
  %v189 = vmul.f32 %v45, %v173
  %v190 = vmul.f32 %v174, 1.7015043
  %v191 = vmul.f32 %v175, 1.7015043
  %v192 = vmul.f32 %v176, 1.7015043
  %v193 = vmul.f32 %v177, 1.7015043
  %v194 = vmul.f32 %v178, 1.7015043
  %v195 = vmul.f32 %v179, 1.7015043
  %v196 = vmul.f32 %v180, 1.7015043
  %v197 = vmul.f32 %v181, 1.7015043
  %v198 = vmul.f32 %v182, 1.7015043
  %v199 = vmul.f32 %v183, 1.7015043
  %v200 = vmul.f32 %v184, 1.7015043
  %v201 = vmul.f32 %v185, 1.7015043
  %v202 = vmul.f32 %v186, 1.7015043
  %v203 = vmul.f32 %v187, 1.7015043
  %v204 = vmul.f32 %v188, 1.7015043
  %v205 = vmul.f32 %v189, 1.7015043
  %v206 = vpack.c.bf16 %v191, %v190
  %v207 = vpack.c.bf16 %v193, %v192
  %v208 = vpack.c.bf16 %v195, %v194
  %v209 = vpack.c.bf16 %v197, %v196
  %v210 = vpack.c.bf16 %v199, %v198
  %v211 = vpack.c.bf16 %v201, %v200
  %v212 = vpack.c.bf16 %v203, %v202
  %v213 = vpack.c.bf16 %v205, %v204
  %v214 = vld [vmem:[%s1] sm:$0xf]
  %v215 = vld [vmem:[%s1 + $0x4] sm:$0xf]
  %v216 = vld [vmem:[%s1 + $0x8] sm:$0xf]
  %v217 = vld [vmem:[%s1 + $0xc] sm:$0xf]
  %v218 = vld [vmem:[%s1 + $0x10] sm:$0xf]
  %v219 = vld [vmem:[%s1 + $0x14] sm:$0xf]
  %v220 = vld [vmem:[%s1 + $0x18] sm:$0xf]
  %v221 = vld [vmem:[%s1 + $0x1c] sm:$0xf]
  %v222 = vld [vmem:[%s1 + $0x20] sm:$0xf]
  %v223 = vld [vmem:[%s1 + $0x24] sm:$0xf]
  %v224 = vld [vmem:[%s1 + $0x28] sm:$0xf]
  %v225 = vld [vmem:[%s1 + $0x2c] sm:$0xf]
  %v226 = vld [vmem:[%s1 + $0x30] sm:$0xf]
  %v227 = vld [vmem:[%s1 + $0x34] sm:$0xf]
  %v228 = vld [vmem:[%s1 + $0x38] sm:$0xf]
  %v229 = vld [vmem:[%s1 + $0x3c] sm:$0xf]
  %v230 = vld [vmem:[%s2] sm:$0x1]
  %v232 = vperm.slane %v230, 0
  %v250 = vunpack.c.l.b16 %v214
  %v251 = vunpack.c.l.b16 %v215
  %v252 = vunpack.c.l.b16 %v216
  %v253 = vunpack.c.l.b16 %v217
  %v254 = vunpack.c.l.b16 %v218
  %v255 = vunpack.c.l.b16 %v219
  %v256 = vunpack.c.l.b16 %v220
  %v257 = vunpack.c.l.b16 %v221
  %v258 = vunpack.c.l.b16 %v222
  %v259 = vunpack.c.l.b16 %v223
  %v260 = vunpack.c.l.b16 %v224
  %v261 = vunpack.c.l.b16 %v225
  %v262 = vunpack.c.l.b16 %v226
  %v263 = vunpack.c.l.b16 %v227
  %v264 = vunpack.c.l.b16 %v228
  %v265 = vunpack.c.l.b16 %v229
  %v266 = vpack.c.b16 %v251, %v250
  %v267 = vpack.c.b16 %v253, %v252
  %v268 = vpack.c.b16 %v255, %v254
  %v269 = vpack.c.b16 %v257, %v256
  %v270 = vpack.c.b16 %v259, %v258
  %v271 = vpack.c.b16 %v261, %v260
  %v272 = vpack.c.b16 %v263, %v262
  %v273 = vpack.c.b16 %v265, %v264
  %282 = vmatpush.bf16.msra.mxu0 %v273
  %283 = vmatpush.bf16.msra.mxu0 %v272
  %284 = vmatpush.bf16.msra.mxu0 %v271
  %285 = vmatpush.bf16.msra.mxu0 %v270
  %286 = vmatpush.bf16.msra.mxu0 %v269
  %287 = vmatpush.bf16.msra.mxu0 %v268
  %288 = vmatpush.bf16.msra.mxu0 %v267
  %289 = vmatpush.bf16.msra.mxu0 %v266
  %290 = vmatmul.bf16.gmra.mxu0 %v206
  %v291 = vpop.f32.mrf.mxu0
  %v292 = vadd.f32 %v232, %v291
  %v293 = vpop.f32.mrf.mxu0
  %v294 = vadd.f32 %v232, %v293
  %295 = vmatmul.bf16.gmra.mxu0 %v207
  %v296 = vpop.f32.mrf.mxu0
  %v297 = vadd.f32 %v232, %v296
  %v298 = vpop.f32.mrf.mxu0
  %v299 = vadd.f32 %v232, %v298
  %300 = vmatmul.bf16.gmra.mxu0 %v208
  %v301 = vpop.f32.mrf.mxu0
  %v302 = vadd.f32 %v232, %v301
  %v303 = vpop.f32.mrf.mxu0
  %v304 = vadd.f32 %v232, %v303
  %305 = vmatmul.bf16.gmra.mxu0 %v209
  %v306 = vpop.f32.mrf.mxu0
  %v307 = vadd.f32 %v232, %v306
  %v308 = vpop.f32.mrf.mxu0
  %v309 = vadd.f32 %v232, %v308
  %310 = vmatmul.bf16.gmra.mxu0 %v210
  %v311 = vpop.f32.mrf.mxu0
  %v312 = vadd.f32 %v232, %v311
  %v313 = vpop.f32.mrf.mxu0
  %v314 = vadd.f32 %v232, %v313
  %315 = vmatmul.bf16.gmra.mxu0 %v211
  %v316 = vpop.f32.mrf.mxu0
  %v317 = vadd.f32 %v232, %v316
  %v318 = vpop.f32.mrf.mxu0
  %v319 = vadd.f32 %v232, %v318
  %320 = vmatmul.bf16.gmra.mxu0 %v212
  %v321 = vpop.f32.mrf.mxu0
  %v322 = vadd.f32 %v232, %v321
  %v323 = vpop.f32.mrf.mxu0
  %v324 = vadd.f32 %v232, %v323
  %325 = vmatmul.bf16.gmra.mxu0 %v213
  %v326 = vpop.f32.mrf.mxu0
  %v327 = vadd.f32 %v232, %v326
  %v328 = vpop.f32.mrf.mxu0
  %v329 = vadd.f32 %v232, %v328
  %330 = vdwg.mxu0
  %v331 = vmul.f32 %v292, %v292
  %v332 = vmul.f32 %v294, %v294
  %v333 = vmul.f32 %v297, %v297
  %v334 = vmul.f32 %v299, %v299
  %v335 = vmul.f32 %v302, %v302
  %v336 = vmul.f32 %v304, %v304
  %v337 = vmul.f32 %v307, %v307
  %v338 = vmul.f32 %v309, %v309
  %v339 = vmul.f32 %v312, %v312
  %v340 = vmul.f32 %v314, %v314
  %v341 = vmul.f32 %v317, %v317
  %v342 = vmul.f32 %v319, %v319
  %v343 = vmul.f32 %v322, %v322
  %v344 = vmul.f32 %v324, %v324
  %v345 = vmul.f32 %v327, %v327
  %v346 = vmul.f32 %v329, %v329
  %v347 = vmul.f32 %v292, %v331
  %v348 = vmul.f32 %v294, %v332
  %v349 = vmul.f32 %v297, %v333
  %v350 = vmul.f32 %v299, %v334
  %v351 = vmul.f32 %v302, %v335
  %v352 = vmul.f32 %v304, %v336
  %v353 = vmul.f32 %v307, %v337
  %v354 = vmul.f32 %v309, %v338
  %v355 = vmul.f32 %v312, %v339
  %v356 = vmul.f32 %v314, %v340
  %v357 = vmul.f32 %v317, %v341
  %v358 = vmul.f32 %v319, %v342
  %v359 = vmul.f32 %v322, %v343
  %v360 = vmul.f32 %v324, %v344
  %v361 = vmul.f32 %v327, %v345
  %v362 = vmul.f32 %v329, %v346
  %v363 = vmul.f32 %v347, 0.044715
  %v364 = vmul.f32 %v348, 0.044715
  %v365 = vmul.f32 %v349, 0.044715
  %v366 = vmul.f32 %v350, 0.044715
  %v367 = vmul.f32 %v351, 0.044715
  %v368 = vmul.f32 %v352, 0.044715
  %v369 = vmul.f32 %v353, 0.044715
  %v370 = vmul.f32 %v354, 0.044715
  %v371 = vmul.f32 %v355, 0.044715
  %v372 = vmul.f32 %v356, 0.044715
  %v373 = vmul.f32 %v357, 0.044715
  %v374 = vmul.f32 %v358, 0.044715
  %v375 = vmul.f32 %v359, 0.044715
  %v376 = vmul.f32 %v360, 0.044715
  %v377 = vmul.f32 %v361, 0.044715
  %v378 = vmul.f32 %v362, 0.044715
  %v379 = vadd.f32 %v292, %v363
  %v380 = vadd.f32 %v294, %v364
  %v381 = vadd.f32 %v297, %v365
  %v382 = vadd.f32 %v299, %v366
  %v383 = vadd.f32 %v302, %v367
  %v384 = vadd.f32 %v304, %v368
  %v385 = vadd.f32 %v307, %v369
  %v386 = vadd.f32 %v309, %v370
  %v387 = vadd.f32 %v312, %v371
  %v388 = vadd.f32 %v314, %v372
  %v389 = vadd.f32 %v317, %v373
  %v390 = vadd.f32 %v319, %v374
  %v391 = vadd.f32 %v322, %v375
  %v392 = vadd.f32 %v324, %v376
  %v393 = vadd.f32 %v327, %v377
  %v394 = vadd.f32 %v329, %v378
  %v395 = vmul.f32 %v379, 0.7978846
  %v396 = vmul.f32 %v380, 0.7978846
  %v397 = vmul.f32 %v381, 0.7978846
  %v398 = vmul.f32 %v382, 0.7978846
  %v399 = vmul.f32 %v383, 0.7978846
  %v400 = vmul.f32 %v384, 0.7978846
  %v401 = vmul.f32 %v385, 0.7978846
  %v402 = vmul.f32 %v386, 0.7978846
  %v403 = vmul.f32 %v387, 0.7978846
  %v404 = vmul.f32 %v388, 0.7978846
  %v405 = vmul.f32 %v389, 0.7978846
  %v406 = vmul.f32 %v390, 0.7978846
  %v407 = vmul.f32 %v391, 0.7978846
  %v408 = vmul.f32 %v392, 0.7978846
  %v409 = vmul.f32 %v393, 0.7978846
  %v410 = vmul.f32 %v394, 0.7978846
  %v411 = vtanh.pop %v395
  %v412 = vtanh.pop %v396
  %v413 = vtanh.pop %v397
  %v414 = vtanh.pop %v398
  %v415 = vtanh.pop %v399
  %v416 = vtanh.pop %v400
  %v417 = vtanh.pop %v401
  %v418 = vtanh.pop %v402
  %v419 = vtanh.pop %v403
  %v420 = vtanh.pop %v404
  %v421 = vtanh.pop %v405
  %v422 = vtanh.pop %v406
  %v423 = vtanh.pop %v407
  %v424 = vtanh.pop %v408
  %v425 = vtanh.pop %v409
  %v426 = vtanh.pop %v410
  %v427 = vadd.f32 %v411, 1.0
  %v428 = vadd.f32 %v412, 1.0
  %v429 = vadd.f32 %v413, 1.0
  %v430 = vadd.f32 %v414, 1.0
  %v431 = vadd.f32 %v415, 1.0
  %v432 = vadd.f32 %v416, 1.0
  %v433 = vadd.f32 %v417, 1.0
  %v434 = vadd.f32 %v418, 1.0
  %v435 = vadd.f32 %v419, 1.0
  %v436 = vadd.f32 %v420, 1.0
  %v437 = vadd.f32 %v421, 1.0
  %v438 = vadd.f32 %v422, 1.0
  %v439 = vadd.f32 %v423, 1.0
  %v440 = vadd.f32 %v424, 1.0
  %v441 = vadd.f32 %v425, 1.0
  %v442 = vadd.f32 %v426, 1.0
  %v443 = vmul.f32 %v427, 0.5
  %v444 = vmul.f32 %v428, 0.5
  %v445 = vmul.f32 %v429, 0.5
  %v446 = vmul.f32 %v430, 0.5
  %v447 = vmul.f32 %v431, 0.5
  %v448 = vmul.f32 %v432, 0.5
  %v449 = vmul.f32 %v433, 0.5
  %v450 = vmul.f32 %v434, 0.5
  %v451 = vmul.f32 %v435, 0.5
  %v452 = vmul.f32 %v436, 0.5
  %v453 = vmul.f32 %v437, 0.5
  %v454 = vmul.f32 %v438, 0.5
  %v455 = vmul.f32 %v439, 0.5
  %v456 = vmul.f32 %v440, 0.5
  %v457 = vmul.f32 %v441, 0.5
  %v458 = vmul.f32 %v442, 0.5
  %v459 = vmul.f32 %v292, %v443
  %v460 = vmul.f32 %v294, %v444
  %v461 = vmul.f32 %v297, %v445
  %v462 = vmul.f32 %v299, %v446
  %v463 = vmul.f32 %v302, %v447
  %v464 = vmul.f32 %v304, %v448
  %v465 = vmul.f32 %v307, %v449
  %v466 = vmul.f32 %v309, %v450
  %v467 = vmul.f32 %v312, %v451
  %v468 = vmul.f32 %v314, %v452
  %v469 = vmul.f32 %v317, %v453
  %v470 = vmul.f32 %v319, %v454
  %v471 = vmul.f32 %v322, %v455
  %v472 = vmul.f32 %v324, %v456
  %v473 = vmul.f32 %v327, %v457
  %v474 = vmul.f32 %v329, %v458
  %v475 = vmul.f32 %v459, 1.7015043
  %v476 = vmul.f32 %v460, 1.7015043
  %v477 = vmul.f32 %v461, 1.7015043
  %v478 = vmul.f32 %v462, 1.7015043
  %v479 = vmul.f32 %v463, 1.7015043
  %v480 = vmul.f32 %v464, 1.7015043
  %v481 = vmul.f32 %v465, 1.7015043
  %v482 = vmul.f32 %v466, 1.7015043
  %v483 = vmul.f32 %v467, 1.7015043
  %v484 = vmul.f32 %v468, 1.7015043
  %v485 = vmul.f32 %v469, 1.7015043
  %v486 = vmul.f32 %v470, 1.7015043
  %v487 = vmul.f32 %v471, 1.7015043
  %v488 = vmul.f32 %v472, 1.7015043
  %v489 = vmul.f32 %v473, 1.7015043
  %v490 = vmul.f32 %v474, 1.7015043
  %v491 = vpack.c.bf16 %v475, %v475
  %v492 = vpack.c.bf16 %v476, %v476
  %v493 = vpack.c.bf16 %v477, %v477
  %v494 = vpack.c.bf16 %v478, %v478
  %v495 = vpack.c.bf16 %v479, %v479
  %v496 = vpack.c.bf16 %v480, %v480
  %v497 = vpack.c.bf16 %v481, %v481
  %v498 = vpack.c.bf16 %v482, %v482
  %v499 = vpack.c.bf16 %v483, %v483
  %v500 = vpack.c.bf16 %v484, %v484
  %v501 = vpack.c.bf16 %v485, %v485
  %v502 = vpack.c.bf16 %v486, %v486
  %v503 = vpack.c.bf16 %v487, %v487
  %v504 = vpack.c.bf16 %v488, %v488
  %v505 = vpack.c.bf16 %v489, %v489
  %v506 = vpack.c.bf16 %v490, %v490
  %507 = vst [vmem:[%s3] sm:$0xf] %v491
  %508 = vst [vmem:[%s3 + $0x4] sm:$0xf] %v492
  %509 = vst [vmem:[%s3 + $0x8] sm:$0xf] %v493
  %510 = vst [vmem:[%s3 + $0xc] sm:$0xf] %v494
  %511 = vst [vmem:[%s3 + $0x10] sm:$0xf] %v495
  %512 = vst [vmem:[%s3 + $0x14] sm:$0xf] %v496
  %513 = vst [vmem:[%s3 + $0x18] sm:$0xf] %v497
  %514 = vst [vmem:[%s3 + $0x1c] sm:$0xf] %v498
  %515 = vst [vmem:[%s3 + $0x20] sm:$0xf] %v499
  %516 = vst [vmem:[%s3 + $0x24] sm:$0xf] %v500
  %517 = vst [vmem:[%s3 + $0x28] sm:$0xf] %v501
  %518 = vst [vmem:[%s3 + $0x2c] sm:$0xf] %v502
  %519 = vst [vmem:[%s3 + $0x30] sm:$0xf] %v503
  %520 = vst [vmem:[%s3 + $0x34] sm:$0xf] %v504
  %521 = vst [vmem:[%s3 + $0x38] sm:$0xf] %v505
  %522 = vst [vmem:[%s3 + $0x3c] sm:$0xf] %v506
  // Predicated region
  $region14: #{nfnet_forward.7} parent=0 // pred_check
    _
  $region15: #{nfnet_forward.7} parent=0 // pred_check_branch
    %524 = sbr.rel (0) target = $region17
  $region16: #{nfnet_forward.7} parent=0 // pred_region
    _
  $region17: #{nfnet_forward.7} parent=0 // pred_fallthru
    _
  // Predicated region
  $region18: #{nfnet_forward.7} parent=0 // pred_check
    _
  $region19: #{nfnet_forward.7} parent=0 // pred_check_branch
    %526 = sbr.rel (0) target = $region21
  $region20: #{nfnet_forward.7} parent=0 // pred_region
    _
  $region21: #{nfnet_forward.7} parent=0 // pred_fallthru
    _

// kernel: nfnet_forward.9
$region0: #{nfnet_forward.9}
  #allocation0 [shape = 'u32[]', space=smem, size = 0x4, offset = 0x4, fixed_abs, tag = 'smem constant byte address 0x4 - core index']
  #allocation1 [shape = 'u32[72,128]{1,0:T(1,128)}', space=vmem, size = 0x9000, scoped, tag = 'internal scratch']
  %s0 = inlined_call_operand.vmem [shape: bf16[2,64,128], index: 0, kind: input, shape index: {}]
  %s1 = inlined_call_operand.vmem [shape: bf16[128,128], index: 1, kind: input, shape index: {}]
  %s2 = inlined_call_operand.vmem [shape: f32[1,128], index: 2, kind: input, shape index: {}]
  %s3 = inlined_call_operand.vmem [shape: bf16[2,64,128], index: 3, kind: output, shape index: {0}]
  %s4 = inlined_call_operand.vmem [shape: f32[2,1,128], index: 4, kind: output, shape index: {1}]
  %5 = xla_tuple %s3, %s4
  %s6 = sld [smem:[#allocation0]]
  $region61: #{nfnet_forward.9} parent=0
    _
  %s8 = ssub.s32 1, %s6
  %s9 = scalar_select 0, %s8, %s6
  loop: start=0, step=1, limit=4
  $region2: #{nfnet_forward.9} parent=0 // loop_pre_header
    _
  $region3: #{nfnet_forward.9} parent=0 // loop_header
    %s11 = sphi 0, %s15
    %p12 = scmp.ge.s32.totalorder %s11, 4
    %s18 = sphi 0, %s30
    %s19 = sphi 0, %s26
    %s20 = sphi 0, %s18
    %s21 = sphi 0, %s19
    %s22 = sphi 0, %s20
    %s23 = sphi 0, %s21
    %s35 = sphi 0, %s37
    %s38 = sphi 0, %s35
    %s39 = sphi 0, %s38
    %s55 = sphi 0, %s39
    %s59 = sphi 0, %s59
    %s61 = sphi 0, %s59
    %s62 = sphi 0, %s61
    %s76 = sphi 0, %s62
    %s80 = sphi 0, %s80
    %s82 = sphi 0, %s80
    %s83 = sphi 0, %s82
    %s97 = sphi 0, %s83
    %s105 = sphi 0, %s107
    %s108 = sphi 0, %s105
    %s109 = sphi 0, %s108
    %s125 = sphi 0, %s109
    %s131 = sphi 0, %s133
    %s134 = sphi 0, %s131
    %s135 = sphi 0, %s134
    %s151 = sphi 0, %s135
  $region4: #{nfnet_forward.9} parent=0 // loop_header_branch
    %14 = sbr.rel (%p12) target = $region8
  $region5: #{nfnet_forward.9} parent=0 // loop_body
    %s16 = ssub.s32 %s11, 1
    %s17 = ssub.s32 %s11, 2
    %s24 = sadd.s32 1, %s19
    %p25 = scmp.ge.s32.totalorder %s24, 1
    %s26 = scalar_select %p25, 0, %s24
    %s27 = sadd.s32 1, %s18
    %s28 = scalar_select %p25, %s27, %s18
    %p29 = scmp.ge.s32.totalorder %s28, 2
    %s30 = scalar_select %p29, 0, %s28
    %s31 = ssub.s32 %s18, %s30
    %s32 = ssub.s32 %s19, %s26
    %s33 = sor.u32 %s31, %s32
    %p34 = scmp.eq.s32.totalorder %s33, 0
    %s36 = sadd.s32 %s35, 1
    %s37 = scalar_select %p34, %s35, %s36
    %p40 = pneg %p34
    %p41 = scmp.eq.s32.totalorder %s11, 1
    %p42 = por %p40, %p41
    %p43 = scmp.ne.s32.totalorder %s35, %s38
    %p44 = scmp.eq.s32.totalorder %s11, 0
    %p45 = por %p43, %p44
    %p46 = scmp.ne.s32.totalorder %s35, %s38
    %p47 = scmp.eq.s32.totalorder %s16, 1
    %p48 = por %p46, %p47
    %p49 = scmp.ne.s32.totalorder %s38, %s39
    %p50 = scmp.eq.s32.totalorder %s16, 0
    %p51 = por %p49, %p50
    %p52 = scmp.ne.s32.totalorder %s38, %s39
    %p53 = scmp.eq.s32.totalorder %s17, 1
    %p54 = por %p52, %p53
    %p56 = scmp.ne.s32.totalorder %s39, %s55
    %p57 = scmp.eq.s32.totalorder %s17, 0
    %p58 = por %p56, %p57
    %s60 = sadd.s32 %s59, 1
    %p63 = scmp.eq.s32.totalorder %s11, 1
    %p64 = scmp.ne.s32.totalorder %s59, %s61
    %p65 = scmp.eq.s32.totalorder %s11, 0
    %p66 = por %p64, %p65
    %p67 = scmp.ne.s32.totalorder %s59, %s61
    %p68 = scmp.eq.s32.totalorder %s16, 1
    %p69 = por %p67, %p68
    %p70 = scmp.ne.s32.totalorder %s61, %s62
    %p71 = scmp.eq.s32.totalorder %s16, 0
    %p72 = por %p70, %p71
    %p73 = scmp.ne.s32.totalorder %s61, %s62
    %p74 = scmp.eq.s32.totalorder %s17, 1
    %p75 = por %p73, %p74
    %p77 = scmp.ne.s32.totalorder %s62, %s76
    %p78 = scmp.eq.s32.totalorder %s17, 0
    %p79 = por %p77, %p78
    %s81 = sadd.s32 %s80, 1
    %p84 = scmp.eq.s32.totalorder %s11, 1
    %p85 = scmp.ne.s32.totalorder %s80, %s82
    %p86 = scmp.eq.s32.totalorder %s11, 0
    %p87 = por %p85, %p86
    %p88 = scmp.ne.s32.totalorder %s80, %s82
    %p89 = scmp.eq.s32.totalorder %s16, 1
    %p90 = por %p88, %p89
    %p91 = scmp.ne.s32.totalorder %s82, %s83
    %p92 = scmp.eq.s32.totalorder %s16, 0
    %p93 = por %p91, %p92
    %p94 = scmp.ne.s32.totalorder %s82, %s83
    %p95 = scmp.eq.s32.totalorder %s17, 1
    %p96 = por %p94, %p95
    %p98 = scmp.ne.s32.totalorder %s83, %s97
    %p99 = scmp.eq.s32.totalorder %s17, 0
    %p100 = por %p98, %p99
    %s101 = ssub.s32 %s18, %s30
    %s102 = ssub.s32 %s19, %s26
    %s103 = sor.u32 %s101, %s102
    %p104 = scmp.eq.s32.totalorder %s103, 0
    %s106 = sadd.s32 %s105, 1
    %s107 = scalar_select %p104, %s105, %s106
    %p110 = pneg %p104
    %p111 = scmp.eq.s32.totalorder %s11, 1
    %p112 = por %p110, %p111
    %p113 = scmp.ne.s32.totalorder %s105, %s108
    %p114 = scmp.eq.s32.totalorder %s11, 0
    %p115 = por %p113, %p114
    %p116 = scmp.ne.s32.totalorder %s105, %s108
    %p117 = scmp.eq.s32.totalorder %s16, 1
    %p118 = por %p116, %p117
    %p119 = scmp.ne.s32.totalorder %s108, %s109
    %p120 = scmp.eq.s32.totalorder %s16, 0
    %p121 = por %p119, %p120
    %p122 = scmp.ne.s32.totalorder %s108, %s109
    %p123 = scmp.eq.s32.totalorder %s17, 1
    %p124 = por %p122, %p123
    %p126 = scmp.ne.s32.totalorder %s109, %s125
    %p127 = scmp.eq.s32.totalorder %s17, 0
    %p128 = por %p126, %p127
    %s129 = ssub.s32 %s18, %s30
    %p130 = scmp.eq.s32.totalorder %s129, 0
    %s132 = sadd.s32 %s131, 1
    %s133 = scalar_select %p130, %s131, %s132
    %p136 = pneg %p130
    %p137 = scmp.eq.s32.totalorder %s11, 1
    %p138 = por %p136, %p137
    %p139 = scmp.ne.s32.totalorder %s131, %s134
    %p140 = scmp.eq.s32.totalorder %s11, 0
    %p141 = por %p139, %p140
    %p142 = scmp.ne.s32.totalorder %s131, %s134
    %p143 = scmp.eq.s32.totalorder %s16, 1
    %p144 = por %p142, %p143
    %p145 = scmp.ne.s32.totalorder %s134, %s135
    %p146 = scmp.eq.s32.totalorder %s16, 0
    %p147 = por %p145, %p146
    %p148 = scmp.ne.s32.totalorder %s134, %s135
    %p149 = scmp.eq.s32.totalorder %s17, 1
    %p150 = por %p148, %p149
    %p152 = scmp.ne.s32.totalorder %s135, %s151
    %p153 = scmp.eq.s32.totalorder %s17, 0
    %p154 = por %p152, %p153
    %p155 = scmp.le.s32.totalorder 1, %s11
    %p156 = scmp.lt.s32.totalorder %s11, 3
    %p157 = pnand %p155, %p156
    %p158 = pneg %p157
    // Predicated region
    $region9: #{nfnet_forward.9} parent=5 // pred_check
      _
    $region10: #{nfnet_forward.9} parent=5 // pred_check_branch
      %160 = sbr.rel (%p157) target = $region12
    $region11: #{nfnet_forward.9} parent=5 // pred_region
      %s161 = ssub.s32 %s11, 1
      // Predicated region
      $region13: #{nfnet_forward.9} parent=11 // pred_check
        %p162 = pneg %p72
      $region14: #{nfnet_forward.9} parent=11 // pred_check_branch
        %164 = sbr.rel (%p162) target = $region16
      $region15: #{nfnet_forward.9} parent=11 // pred_region
        _
      $region16: #{nfnet_forward.9} parent=11 // pred_fallthru
        _
      // Predicated region
      $region17: #{nfnet_forward.9} parent=11 // pred_check
        %p165 = pneg %p93
      $region18: #{nfnet_forward.9} parent=11 // pred_check_branch
        %167 = sbr.rel (%p165) target = $region20
      $region19: #{nfnet_forward.9} parent=11 // pred_region
        _
      $region20: #{nfnet_forward.9} parent=11 // pred_fallthru
        _
    $region12: #{nfnet_forward.9} parent=5 // pred_fallthru
      _
    %p168 = scmp.lt.s32.totalorder %s11, 2
    // Predicated region
    $region21: #{nfnet_forward.9} parent=5 // pred_check
      %p169 = pneg %p168
    $region22: #{nfnet_forward.9} parent=5 // pred_check_branch
      %171 = sbr.rel (%p169) target = $region24
    $region23: #{nfnet_forward.9} parent=5 // pred_region
      // Predicated region
      $region25: #{nfnet_forward.9} parent=23 // pred_check
        %p172 = pneg %p45
      $region26: #{nfnet_forward.9} parent=23 // pred_check_branch
        %174 = sbr.rel (%p172) target = $region28
      $region27: #{nfnet_forward.9} parent=23 // pred_region
        %s175 = smul.u32 8, %s19
        %p176 = scmp.lt.s32.totalorder %s18, 1
        %s177 = scalar_select %p176, %s18, 1
        %p178 = scmp.lt.s32.totalorder %s175, 7
        %s179 = scalar_select %p178, %s175, 7
        %s180 = smul.addr %s177, 8
        %s181 = sadd.s32 %s179, %s180
        %s182 = smul.addr %s181, 4
        %s183 = scalar_lea.vmem %s0, %s182
        %s184 = smul.u32 8, %s19
      $region28: #{nfnet_forward.9} parent=23 // pred_fallthru
        _
    $region24: #{nfnet_forward.9} parent=5 // pred_fallthru
      _
    %p185 = scmp.le.s32.totalorder 1, %s11
    %p186 = scmp.lt.s32.totalorder %s11, 3
    %p187 = pnand %p185, %p186
    %p188 = pneg %p187
    // Predicated region
    $region29: #{nfnet_forward.9} parent=5 // pred_check
      _
    $region30: #{nfnet_forward.9} parent=5 // pred_check_branch
      %190 = sbr.rel (%p187) target = $region32
    $region31: #{nfnet_forward.9} parent=5 // pred_region
      %s191 = ssub.s32 %s11, 1
      %s192 = smul.u32 8, %s21
      %p193 = scmp.lt.s32.totalorder %s20, 1
      %s194 = scalar_select %p193, %s20, 1
      %p195 = scmp.lt.s32.totalorder %s192, 7
      %s196 = scalar_select %p195, %s192, 7
      %s197 = smul.addr %s194, 8
      %s198 = sadd.s32 %s196, %s197
      %s199 = smul.addr %s198, 4
      %s200 = scalar_lea.vmem %s0, %s199
      %p201 = pneg %p51
      %p202 = pneg %p48
      %p203 = pneg %p72
      %p204 = pneg %p69
      %p205 = pneg %p93
      %p206 = pneg %p90
      %p207 = pneg %p121
      %p208 = pneg %p118
      %s209 = smul.u32 8, %s21
      %p210 = scmp.lt.s32.totalorder %s20, 1
      %s211 = scalar_select %p210, %s20, 1
      %p212 = scmp.lt.s32.totalorder %s209, 7
      %s213 = scalar_select %p212, %s209, 7
      %s214 = smul.addr %s211, 8
      %s215 = sadd.s32 %s213, %s214
      %s216 = smul.addr %s215, 4
      %s217 = scalar_lea.vmem %s3, %s216
      %p218 = pneg %p147
      %p219 = pneg %p144
      %p220 = scmp.lt.s32.totalorder %s20, 1
      %s221 = scalar_select %p220, %s20, 1
      %s222 = scalar_lea.vmem %s4, %s221
      %s223 = smul.u32 8, %s21
      %p224 = scmp.lt.s32.totalorder %s20, 1
      %s225 = scalar_select %p224, %s20, 1
      %p226 = scmp.lt.s32.totalorder %s223, 7
      %s227 = scalar_select %p226, %s223, 7
      %s228 = smul.addr %s225, 8
      %s229 = sadd.s32 %s227, %s228
      %s230 = smul.addr %s229, 4
      %s231 = scalar_lea.vmem %s0, %s230
      %s232 = smul.u32 8, %s21
      %s233 = smul.u32 8, %s21
      %p234 = scmp.lt.s32.totalorder %s20, 1
      %s235 = scalar_select %p234, %s20, 1
      %p236 = scmp.lt.s32.totalorder %s233, 7
      %s237 = scalar_select %p236, %s233, 7
      %s238 = smul.addr %s235, 8
      %s239 = sadd.s32 %s237, %s238
      %s240 = smul.addr %s239, 4
      %s241 = scalar_lea.vmem %s3, %s240
      %s242 = smul.u32 8, %s21
      %p243 = scmp.lt.s32.totalorder %s20, 1
      %s244 = scalar_select %p243, %s20, 1
      %s245 = scalar_lea.vmem %s4, %s244
      %v246 = vld [vmem:[%s231] sm:$0xf]
      %v247 = vld [vmem:[%s231 + $0x4] sm:$0xf]
      %v248 = vld [vmem:[%s231 + $0x8] sm:$0xf]
      %v249 = vld [vmem:[%s231 + $0xc] sm:$0xf]
      %v250 = vld [vmem:[%s231 + $0x10] sm:$0xf]
      %v251 = vld [vmem:[%s231 + $0x14] sm:$0xf]
      %v252 = vld [vmem:[%s231 + $0x18] sm:$0xf]
      %v253 = vld [vmem:[%s231 + $0x1c] sm:$0xf]
      %v254 = vld [vmem:[%s1] sm:$0xf]
      %v255 = vld [vmem:[%s1 + $0x4] sm:$0xf]
      %v256 = vld [vmem:[%s1 + $0x8] sm:$0xf]
      %v257 = vld [vmem:[%s1 + $0xc] sm:$0xf]
      %v258 = vld [vmem:[%s1 + $0x10] sm:$0xf]
      %v259 = vld [vmem:[%s1 + $0x14] sm:$0xf]
      %v260 = vld [vmem:[%s1 + $0x18] sm:$0xf]
      %v261 = vld [vmem:[%s1 + $0x1c] sm:$0xf]
      %v262 = vld [vmem:[%s1 + $0x20] sm:$0xf]
      %v263 = vld [vmem:[%s1 + $0x24] sm:$0xf]
      %v264 = vld [vmem:[%s1 + $0x28] sm:$0xf]
      %v265 = vld [vmem:[%s1 + $0x2c] sm:$0xf]
      %v266 = vld [vmem:[%s1 + $0x30] sm:$0xf]
      %v267 = vld [vmem:[%s1 + $0x34] sm:$0xf]
      %v268 = vld [vmem:[%s1 + $0x38] sm:$0xf]
      %v269 = vld [vmem:[%s1 + $0x3c] sm:$0xf]
      %v270 = vld [vmem:[%s2] sm:$0x1]
      %v272 = vperm.slane %v270, 0
      %v282 = vunpack.c.l.b16 %v246
      %v283 = vunpack.c.l.b16 %v247
      %v284 = vunpack.c.l.b16 %v248
      %v285 = vunpack.c.l.b16 %v249
      %v286 = vunpack.c.l.b16 %v250
      %v287 = vunpack.c.l.b16 %v251
      %v288 = vunpack.c.l.b16 %v252
      %v289 = vunpack.c.l.b16 %v253
      %v290 = vpack.c.b16 %v283, %v282
      %v291 = vpack.c.b16 %v285, %v284
      %v292 = vpack.c.b16 %v287, %v286
      %v293 = vpack.c.b16 %v289, %v288
      %v314 = vunpack.c.l.b16 %v254
      %v315 = vunpack.c.l.b16 %v255
      %v316 = vunpack.c.l.b16 %v256
      %v317 = vunpack.c.l.b16 %v257
      %v318 = vunpack.c.l.b16 %v258
      %v319 = vunpack.c.l.b16 %v259
      %v320 = vunpack.c.l.b16 %v260
      %v321 = vunpack.c.l.b16 %v261
      %v322 = vunpack.c.l.b16 %v262
      %v323 = vunpack.c.l.b16 %v263
      %v324 = vunpack.c.l.b16 %v264
      %v325 = vunpack.c.l.b16 %v265
      %v326 = vunpack.c.l.b16 %v266
      %v327 = vunpack.c.l.b16 %v267
      %v328 = vunpack.c.l.b16 %v268
      %v329 = vunpack.c.l.b16 %v269
      %v330 = vpack.c.b16 %v315, %v314
      %v331 = vpack.c.b16 %v317, %v316
      %v332 = vpack.c.b16 %v319, %v318
      %v333 = vpack.c.b16 %v321, %v320
      %v334 = vpack.c.b16 %v323, %v322
      %v335 = vpack.c.b16 %v325, %v324
      %v336 = vpack.c.b16 %v327, %v326
      %v337 = vpack.c.b16 %v329, %v328
      %346 = vmatpush.bf16.msra.mxu0 %v337
      %347 = vmatpush.bf16.msra.mxu0 %v336
      %348 = vmatpush.bf16.msra.mxu0 %v335
      %349 = vmatpush.bf16.msra.mxu0 %v334
      %350 = vmatpush.bf16.msra.mxu0 %v333
      %351 = vmatpush.bf16.msra.mxu0 %v332
      %352 = vmatpush.bf16.msra.mxu0 %v331
      %353 = vmatpush.bf16.msra.mxu0 %v330
      %354 = vmatmul.bf16.gmra.mxu0 %v290
      %v355 = vpop.f32.mrf.mxu0
      %v356 = vadd.f32 %v272, %v355
      %v357 = vpop.f32.mrf.mxu0
      %v358 = vadd.f32 %v272, %v357
      %359 = vmatmul.bf16.gmra.mxu0 %v291
      %v360 = vpop.f32.mrf.mxu0
      %v361 = vadd.f32 %v272, %v360
      %v362 = vpop.f32.mrf.mxu0
      %v363 = vadd.f32 %v272, %v362
      %364 = vmatmul.bf16.gmra.mxu0 %v292
      %v365 = vpop.f32.mrf.mxu0
      %v366 = vadd.f32 %v272, %v365
      %v367 = vpop.f32.mrf.mxu0
      %v368 = vadd.f32 %v272, %v367
      %369 = vmatmul.bf16.gmra.mxu0 %v293
      %v370 = vpop.f32.mrf.mxu0
      %v371 = vadd.f32 %v272, %v370
      %v372 = vpop.f32.mrf.mxu0
      %v373 = vadd.f32 %v272, %v372
      %374 = vdwg.mxu0
      %v375 = vpack.c.bf16 %v356, %v356
      %v376 = vpack.c.bf16 %v358, %v358
      %v377 = vpack.c.bf16 %v361, %v361
      %v378 = vpack.c.bf16 %v363, %v363
      %v379 = vpack.c.bf16 %v366, %v366
      %v380 = vpack.c.bf16 %v368, %v368
      %v381 = vpack.c.bf16 %v371, %v371
      %v382 = vpack.c.bf16 %v373, %v373
      %383 = vst [vmem:[%s241] sm:$0xf] %v375
      %384 = vst [vmem:[%s241 + $0x4] sm:$0xf] %v376
      %385 = vst [vmem:[%s241 + $0x8] sm:$0xf] %v377
      %386 = vst [vmem:[%s241 + $0xc] sm:$0xf] %v378
      %387 = vst [vmem:[%s241 + $0x10] sm:$0xf] %v379
      %388 = vst [vmem:[%s241 + $0x14] sm:$0xf] %v380
      %389 = vst [vmem:[%s241 + $0x18] sm:$0xf] %v381
      %390 = vst [vmem:[%s241 + $0x1c] sm:$0xf] %v382
      %v391 = vadd.f32 %v356, %v358
      %v392 = vadd.f32 %v391, %v361
      %v393 = vadd.f32 %v392, %v363
      %v394 = vadd.f32 %v393, %v366
      %v395 = vadd.f32 %v394, %v368
      %v396 = vadd.f32 %v395, %v371
      %v397 = vadd.f32 %v396, %v373
      %v398 = vrot.slane %v397, 4
      %v399 = vadd.f32 %v397, %v398
      %v400 = vrot.slane %v399, 2
      %v401 = vadd.f32 %v399, %v400
      %v402 = vrot.slane %v401, 1
      %v403 = vadd.f32 %v401, %v402
      %p404 = scmp.eq.s32.totalorder %s21, 0
      // Predicated region
      $region33: #{nfnet_forward.9} parent=31 // pred_check
        %p405 = pneg %p404
      $region34: #{nfnet_forward.9} parent=31 // pred_check_branch
        %407 = sbr.rel (%p405) target = $region36
      $region35: #{nfnet_forward.9} parent=31 // pred_region
        %408 = vst [vmem:[%s245] sm:$0x1] %v403
      $region36: #{nfnet_forward.9} parent=31 // pred_fallthru
        _
      %p409 = scmp.ne.s32.totalorder %s21, 0
      // Predicated region
      $region37: #{nfnet_forward.9} parent=31 // pred_check
        %p410 = pneg %p409
      $region38: #{nfnet_forward.9} parent=31 // pred_check_branch
        %412 = sbr.rel (%p410) target = $region40
      $region39: #{nfnet_forward.9} parent=31 // pred_region
        %v413 = vld [vmem:[%s245] sm:$0x1]
        %v414 = vadd.f32 %v413, %v403
        %415 = vst [vmem:[%s245] sm:$0x1] %v414
      $region40: #{nfnet_forward.9} parent=31 // pred_fallthru
        _
      %s416 = smul.u32 8, %s21
      %p417 = scmp.lt.s32.totalorder %s20, 1
      %s418 = scalar_select %p417, %s20, 1
      %p419 = scmp.lt.s32.totalorder %s416, 7
      %s420 = scalar_select %p419, %s416, 7
      %s421 = smul.addr %s418, 8
      %s422 = sadd.s32 %s420, %s421
      %s423 = smul.addr %s422, 4
      %s424 = scalar_lea.vmem %s3, %s423
      %p425 = scmp.lt.s32.totalorder %s20, 1
      %s426 = scalar_select %p425, %s20, 1
      %s427 = scalar_lea.vmem %s4, %s426
      // Predicated region
      $region41: #{nfnet_forward.9} parent=31 // pred_check
        %p428 = pneg %p118
      $region42: #{nfnet_forward.9} parent=31 // pred_check_branch
        %430 = sbr.rel (%p428) target = $region44
      $region43: #{nfnet_forward.9} parent=31 // pred_region
        %s431 = smul.u32 8, %s21
      $region44: #{nfnet_forward.9} parent=31 // pred_fallthru
        _
      // Predicated region
      $region45: #{nfnet_forward.9} parent=31 // pred_check
        %p432 = pneg %p144
      $region46: #{nfnet_forward.9} parent=31 // pred_check_branch
        %434 = sbr.rel (%p432) target = $region48
      $region47: #{nfnet_forward.9} parent=31 // pred_region
        _
      $region48: #{nfnet_forward.9} parent=31 // pred_fallthru
        _
    $region32: #{nfnet_forward.9} parent=5 // pred_fallthru
      _
    %p435 = scmp.le.s32.totalorder 2, %s11
    // Predicated region
    $region49: #{nfnet_forward.9} parent=5 // pred_check
      %p436 = pneg %p435
    $region50: #{nfnet_forward.9} parent=5 // pred_check_branch
      %438 = sbr.rel (%p436) target = $region52
    $region51: #{nfnet_forward.9} parent=5 // pred_region
      %s439 = ssub.s32 %s11, 2
      // Predicated region
      $region53: #{nfnet_forward.9} parent=51 // pred_check
        %p440 = pneg %p124
      $region54: #{nfnet_forward.9} parent=51 // pred_check_branch
        %442 = sbr.rel (%p440) target = $region56
      $region55: #{nfnet_forward.9} parent=51 // pred_region
        %s443 = smul.u32 8, %s23
        %p444 = scmp.lt.s32.totalorder %s22, 1
        %s445 = scalar_select %p444, %s22, 1
        %p446 = scmp.lt.s32.totalorder %s443, 7
        %s447 = scalar_select %p446, %s443, 7
        %s448 = smul.addr %s445, 8
        %s449 = sadd.s32 %s447, %s448
        %s450 = smul.addr %s449, 4
        %s451 = scalar_lea.vmem %s3, %s450
      $region56: #{nfnet_forward.9} parent=51 // pred_fallthru
        _
      // Predicated region
      $region57: #{nfnet_forward.9} parent=51 // pred_check
        %p452 = pneg %p150
      $region58: #{nfnet_forward.9} parent=51 // pred_check_branch
        %454 = sbr.rel (%p452) target = $region60
      $region59: #{nfnet_forward.9} parent=51 // pred_region
        %p455 = scmp.lt.s32.totalorder %s22, 1
        %s456 = scalar_select %p455, %s22, 1
        %s457 = scalar_lea.vmem %s4, %s456
      $region60: #{nfnet_forward.9} parent=51 // pred_fallthru
        _
    $region52: #{nfnet_forward.9} parent=5 // pred_fallthru
      _
  $region6: #{nfnet_forward.9} parent=0 // loop_footer
    %s15 = sadd.s32 1, %s11
  $region7: #{nfnet_forward.9} parent=0 // loop_footer_branch
    %10 = sbr.rel target = $region3
  $region8: #{nfnet_forward.9} parent=0 // loop_exit
    _

// kernel: nfnet_forward.8
$region0: #{nfnet_forward.8}
  #allocation0 [shape = 'u32[]', space=smem, size = 0x4, offset = 0x4, fixed_abs, tag = 'smem constant byte address 0x4 - core index']
  #allocation1 [shape = 'u32[72,128]{1,0:T(1,128)}', space=vmem, size = 0x9000, scoped, tag = 'internal scratch']
  %s0 = inlined_call_operand.vmem [shape: bf16[2,10,10,128], index: 0, kind: input, shape index: {}]
  %s1 = inlined_call_operand.vmem [shape: bf16[9,128,128], index: 1, kind: input, shape index: {}]
  %s2 = inlined_call_operand.vmem [shape: f32[1,128], index: 2, kind: input, shape index: {}]
  %s3 = inlined_call_operand.vmem [shape: bf16[2,64,128], index: 3, kind: output, shape index: {}]
  %s4 = sld [smem:[#allocation0]]
  $region45: #{nfnet_forward.8} parent=0
    _
  %s6 = ssub.s32 1, %s4
  %s7 = scalar_select 0, %s6, %s4
  loop: start=0, step=1, limit=4
  $region2: #{nfnet_forward.8} parent=0 // loop_pre_header
    _
  $region3: #{nfnet_forward.8} parent=0 // loop_header
    %s9 = sphi 0, %s13
    %p10 = scmp.ge.s32.totalorder %s9, 4
    %s19 = sphi 0, %s21
    %s22 = sphi 0, %s19
    %s23 = sphi 0, %s22
    %s39 = sphi 0, %s23
    %s43 = sphi 0, %s43
    %s45 = sphi 0, %s43
    %s46 = sphi 0, %s45
    %s60 = sphi 0, %s46
    %s64 = sphi 0, %s64
    %s66 = sphi 0, %s64
    %s67 = sphi 0, %s66
    %s81 = sphi 0, %s67
    %s87 = sphi 0, %s89
    %s90 = sphi 0, %s87
    %s91 = sphi 0, %s90
    %s107 = sphi 0, %s91
  $region4: #{nfnet_forward.8} parent=0 // loop_header_branch
    %12 = sbr.rel (%p10) target = $region8
  $region5: #{nfnet_forward.8} parent=0 // loop_body
    %s14 = ssub.s32 %s9, 1
    %s15 = ssub.s32 %s9, 2
    %s16 = sadd.s32 %s9, 1
    %s17 = ssub.s32 %s9, %s16
    %p18 = scmp.eq.s32.totalorder %s17, 0
    %s20 = sadd.s32 %s19, 1
    %s21 = scalar_select %p18, %s19, %s20
    %p24 = pneg %p18
    %p25 = scmp.eq.s32.totalorder %s9, 1
    %p26 = por %p24, %p25
    %p27 = scmp.ne.s32.totalorder %s19, %s22
    %p28 = scmp.eq.s32.totalorder %s9, 0
    %p29 = por %p27, %p28
    %p30 = scmp.ne.s32.totalorder %s19, %s22
    %p31 = scmp.eq.s32.totalorder %s14, 1
    %p32 = por %p30, %p31
    %p33 = scmp.ne.s32.totalorder %s22, %s23
    %p34 = scmp.eq.s32.totalorder %s14, 0
    %p35 = por %p33, %p34
    %p36 = scmp.ne.s32.totalorder %s22, %s23
    %p37 = scmp.eq.s32.totalorder %s15, 1
    %p38 = por %p36, %p37
    %p40 = scmp.ne.s32.totalorder %s23, %s39
    %p41 = scmp.eq.s32.totalorder %s15, 0
    %p42 = por %p40, %p41
    %s44 = sadd.s32 %s43, 1
    %p47 = scmp.eq.s32.totalorder %s9, 1
    %p48 = scmp.ne.s32.totalorder %s43, %s45
    %p49 = scmp.eq.s32.totalorder %s9, 0
    %p50 = por %p48, %p49
    %p51 = scmp.ne.s32.totalorder %s43, %s45
    %p52 = scmp.eq.s32.totalorder %s14, 1
    %p53 = por %p51, %p52
    %p54 = scmp.ne.s32.totalorder %s45, %s46
    %p55 = scmp.eq.s32.totalorder %s14, 0
    %p56 = por %p54, %p55
    %p57 = scmp.ne.s32.totalorder %s45, %s46
    %p58 = scmp.eq.s32.totalorder %s15, 1
    %p59 = por %p57, %p58
    %p61 = scmp.ne.s32.totalorder %s46, %s60
    %p62 = scmp.eq.s32.totalorder %s15, 0
    %p63 = por %p61, %p62
    %s65 = sadd.s32 %s64, 1
    %p68 = scmp.eq.s32.totalorder %s9, 1
    %p69 = scmp.ne.s32.totalorder %s64, %s66
    %p70 = scmp.eq.s32.totalorder %s9, 0
    %p71 = por %p69, %p70
    %p72 = scmp.ne.s32.totalorder %s64, %s66
    %p73 = scmp.eq.s32.totalorder %s14, 1
    %p74 = por %p72, %p73
    %p75 = scmp.ne.s32.totalorder %s66, %s67
    %p76 = scmp.eq.s32.totalorder %s14, 0
    %p77 = por %p75, %p76
    %p78 = scmp.ne.s32.totalorder %s66, %s67
    %p79 = scmp.eq.s32.totalorder %s15, 1
    %p80 = por %p78, %p79
    %p82 = scmp.ne.s32.totalorder %s67, %s81
    %p83 = scmp.eq.s32.totalorder %s15, 0
    %p84 = por %p82, %p83
    %s85 = ssub.s32 %s9, %s16
    %p86 = scmp.eq.s32.totalorder %s85, 0
    %s88 = sadd.s32 %s87, 1
    %s89 = scalar_select %p86, %s87, %s88
    %p92 = pneg %p86
    %p93 = scmp.eq.s32.totalorder %s9, 1
    %p94 = por %p92, %p93
    %p95 = scmp.ne.s32.totalorder %s87, %s90
    %p96 = scmp.eq.s32.totalorder %s9, 0
    %p97 = por %p95, %p96
    %p98 = scmp.ne.s32.totalorder %s87, %s90
    %p99 = scmp.eq.s32.totalorder %s14, 1
    %p100 = por %p98, %p99
    %p101 = scmp.ne.s32.totalorder %s90, %s91
    %p102 = scmp.eq.s32.totalorder %s14, 0
    %p103 = por %p101, %p102
    %p104 = scmp.ne.s32.totalorder %s90, %s91
    %p105 = scmp.eq.s32.totalorder %s15, 1
    %p106 = por %p104, %p105
    %p108 = scmp.ne.s32.totalorder %s91, %s107
    %p109 = scmp.eq.s32.totalorder %s15, 0
    %p110 = por %p108, %p109
    %p111 = scmp.le.s32.totalorder 1, %s9
    %p112 = scmp.lt.s32.totalorder %s9, 3
    %p113 = pnand %p111, %p112
    %p114 = pneg %p113
    // Predicated region
    $region9: #{nfnet_forward.8} parent=5 // pred_check
      _
    $region10: #{nfnet_forward.8} parent=5 // pred_check_branch
      %116 = sbr.rel (%p113) target = $region12
    $region11: #{nfnet_forward.8} parent=5 // pred_region
      %s117 = ssub.s32 %s9, 1
      // Predicated region
      $region13: #{nfnet_forward.8} parent=11 // pred_check
        %p118 = pneg %p56
      $region14: #{nfnet_forward.8} parent=11 // pred_check_branch
        %120 = sbr.rel (%p118) target = $region16
      $region15: #{nfnet_forward.8} parent=11 // pred_region
        _
      $region16: #{nfnet_forward.8} parent=11 // pred_fallthru
        _
      // Predicated region
      $region17: #{nfnet_forward.8} parent=11 // pred_check
        %p121 = pneg %p77
      $region18: #{nfnet_forward.8} parent=11 // pred_check_branch
        %123 = sbr.rel (%p121) target = $region20
      $region19: #{nfnet_forward.8} parent=11 // pred_region
        _
      $region20: #{nfnet_forward.8} parent=11 // pred_fallthru
        _
    $region12: #{nfnet_forward.8} parent=5 // pred_fallthru
      _
    %p124 = scmp.lt.s32.totalorder %s9, 2
    // Predicated region
    $region21: #{nfnet_forward.8} parent=5 // pred_check
      %p125 = pneg %p124
    $region22: #{nfnet_forward.8} parent=5 // pred_check_branch
      %127 = sbr.rel (%p125) target = $region24
    $region23: #{nfnet_forward.8} parent=5 // pred_region
      // Predicated region
      $region25: #{nfnet_forward.8} parent=23 // pred_check
        %p128 = pneg %p29
      $region26: #{nfnet_forward.8} parent=23 // pred_check_branch
        %130 = sbr.rel (%p128) target = $region28
      $region27: #{nfnet_forward.8} parent=23 // pred_region
        %p131 = scmp.lt.s32.totalorder %s9, 1
        %s132 = scalar_select %p131, %s9, 1
        %s133 = smul.addr %s132, 20
        %s134 = smul.addr %s133, 4
        %s135 = scalar_lea.vmem %s0, %s134
      $region28: #{nfnet_forward.8} parent=23 // pred_fallthru
        _
    $region24: #{nfnet_forward.8} parent=5 // pred_fallthru
      _
    %p136 = scmp.le.s32.totalorder 1, %s9
    %p137 = scmp.lt.s32.totalorder %s9, 3
    %p138 = pnand %p136, %p137
    %p139 = pneg %p138
    // Predicated region
    $region29: #{nfnet_forward.8} parent=5 // pred_check
      _
    $region30: #{nfnet_forward.8} parent=5 // pred_check_branch
      %141 = sbr.rel (%p138) target = $region32
    $region31: #{nfnet_forward.8} parent=5 // pred_region
      %s142 = ssub.s32 %s9, 1
      %p143 = scmp.lt.s32.totalorder %s14, 1
      %s144 = scalar_select %p143, %s14, 1
      %s145 = smul.addr %s144, 20
      %s146 = smul.addr %s145, 4
      %s147 = scalar_lea.vmem %s0, %s146
      %p148 = pneg %p35
      %p149 = pneg %p32
      %p150 = pneg %p56
      %p151 = pneg %p53
      %p152 = pneg %p77
      %p153 = pneg %p74
      %p154 = pneg %p103
      %p155 = pneg %p100
      %p156 = scmp.lt.s32.totalorder %s14, 1
      %s157 = scalar_select %p156, %s14, 1
      %s158 = smul.addr %s157, 8
      %s159 = smul.addr %s158, 4
      %s160 = scalar_lea.vmem %s3, %s159
      %p161 = scmp.lt.s32.totalorder %s14, 1
      %s162 = scalar_select %p161, %s14, 1
      %s163 = smul.addr %s162, 20
      %s164 = smul.addr %s163, 4
      %s165 = scalar_lea.vmem %s0, %s164
      %p166 = scmp.lt.s32.totalorder %s14, 1
      %s167 = scalar_select %p166, %s14, 1
      %s168 = smul.addr %s167, 8
      %s169 = smul.addr %s168, 4
      %s170 = scalar_lea.vmem %s3, %s169
      %v171 = vld [vmem:[%s165] sm:$0xf]
      %v172 = vld [vmem:[%s165 + $0x4] sm:$0x1]
      %v173 = vld [vmem:[%s165 + $0x8] sm:$0xf]
      %v174 = vld [vmem:[%s165 + $0xc] sm:$0x1]
      %v175 = vld [vmem:[%s165 + $0x10] sm:$0xf]
      %v176 = vld [vmem:[%s165 + $0x14] sm:$0x1]
      %v177 = vld [vmem:[%s165 + $0x18] sm:$0xf]
      %v178 = vld [vmem:[%s165 + $0x1c] sm:$0x1]
      %v179 = vld [vmem:[%s165 + $0x20] sm:$0xf]
      %v180 = vld [vmem:[%s165 + $0x24] sm:$0x1]
      %v181 = vld [vmem:[%s165 + $0x28] sm:$0xf]
      %v182 = vld [vmem:[%s165 + $0x2c] sm:$0x1]
      %v183 = vld [vmem:[%s165 + $0x30] sm:$0xf]
      %v184 = vld [vmem:[%s165 + $0x34] sm:$0x1]
      %v185 = vld [vmem:[%s165 + $0x38] sm:$0xf]
      %v186 = vld [vmem:[%s165 + $0x3c] sm:$0x1]
      %v187 = vld [vmem:[%s165 + $0x40] sm:$0xf]
      %v188 = vld [vmem:[%s165 + $0x44] sm:$0x1]
      %v189 = vld [vmem:[%s165 + $0x48] sm:$0xf]
      %v190 = vld [vmem:[%s165 + $0x4c] sm:$0x1]
      %v191 = vld [vmem:[%s1] sm:$0xf]
      %v192 = vld [vmem:[%s1 + $0x4] sm:$0xf]
      %v193 = vld [vmem:[%s1 + $0x8] sm:$0xf]
      %v194 = vld [vmem:[%s1 + $0xc] sm:$0xf]
      %v195 = vld [vmem:[%s1 + $0x10] sm:$0xf]
      %v196 = vld [vmem:[%s1 + $0x14] sm:$0xf]
      %v197 = vld [vmem:[%s1 + $0x18] sm:$0xf]
      %v198 = vld [vmem:[%s1 + $0x1c] sm:$0xf]
      %v199 = vld [vmem:[%s1 + $0x20] sm:$0xf]
      %v200 = vld [vmem:[%s1 + $0x24] sm:$0xf]
      %v201 = vld [vmem:[%s1 + $0x28] sm:$0xf]
      %v202 = vld [vmem:[%s1 + $0x2c] sm:$0xf]
      %v203 = vld [vmem:[%s1 + $0x30] sm:$0xf]
      %v204 = vld [vmem:[%s1 + $0x34] sm:$0xf]
      %v205 = vld [vmem:[%s1 + $0x38] sm:$0xf]
      %v206 = vld [vmem:[%s1 + $0x3c] sm:$0xf]
      %vm207 = vsmask.f32 3328
      %vm208 = vsmask.f32 7440
      %vm209 = vmor %vm207, %vm208
      %v211 = vshrl.u32 %v171, 16
      %v213 = vrot.slane %v211, 4
      %v214 = vshll.u32 %v171, 16
      %v216 = vrot.slane %v214, 5
      %v217 = vor.u32 %v213, %v216
      %v218 = vrot.slane %v217, 4
      %v220 = vshll.u32 %v172, 16
      %v222 = vrot.slane %v220, 5
      %v223 = vsel %vm209, %v218, %v222
      %v225 = vshrl.u32 %v173, 16
      %v227 = vrot.slane %v225, 4
      %v228 = vshll.u32 %v173, 16
      %v230 = vrot.slane %v228, 5
      %v231 = vor.u32 %v227, %v230
      %v232 = vrot.slane %v231, 4
      %v234 = vshll.u32 %v174, 16
      %v236 = vrot.slane %v234, 5
      %v237 = vsel %vm209, %v232, %v236
      %v239 = vshrl.u32 %v175, 16
      %v241 = vrot.slane %v239, 4
      %v242 = vshll.u32 %v175, 16
      %v244 = vrot.slane %v242, 5
      %v245 = vor.u32 %v241, %v244
      %v246 = vrot.slane %v245, 4
      %v248 = vshll.u32 %v176, 16
      %v250 = vrot.slane %v248, 5
      %v251 = vsel %vm209, %v246, %v250
      %v253 = vshrl.u32 %v177, 16
      %v255 = vrot.slane %v253, 4
      %v256 = vshll.u32 %v177, 16
      %v258 = vrot.slane %v256, 5
      %v259 = vor.u32 %v255, %v258
      %v260 = vrot.slane %v259, 4
      %v262 = vshll.u32 %v178, 16
      %v264 = vrot.slane %v262, 5
      %v265 = vsel %vm209, %v260, %v264
      %v267 = vshrl.u32 %v179, 16
      %v269 = vrot.slane %v267, 4
      %v270 = vshll.u32 %v179, 16
      %v272 = vrot.slane %v270, 5
      %v273 = vor.u32 %v269, %v272
      %v274 = vrot.slane %v273, 4
      %v276 = vshll.u32 %v180, 16
      %v278 = vrot.slane %v276, 5
      %v279 = vsel %vm209, %v274, %v278
      %v281 = vshrl.u32 %v181, 16
      %v283 = vrot.slane %v281, 4
      %v284 = vshll.u32 %v181, 16
      %v286 = vrot.slane %v284, 5
      %v287 = vor.u32 %v283, %v286
      %v288 = vrot.slane %v287, 4
      %v290 = vshll.u32 %v182, 16
      %v292 = vrot.slane %v290, 5
      %v293 = vsel %vm209, %v288, %v292
      %v295 = vshrl.u32 %v183, 16
      %v297 = vrot.slane %v295, 4
      %v298 = vshll.u32 %v183, 16
      %v300 = vrot.slane %v298, 5
      %v301 = vor.u32 %v297, %v300
      %v302 = vrot.slane %v301, 4
      %v304 = vshll.u32 %v184, 16
      %v306 = vrot.slane %v304, 5
      %v307 = vsel %vm209, %v302, %v306
      %v309 = vshrl.u32 %v185, 16
      %v311 = vrot.slane %v309, 4
      %v312 = vshll.u32 %v185, 16
      %v314 = vrot.slane %v312, 5
      %v315 = vor.u32 %v311, %v314
      %v316 = vrot.slane %v315, 4
      %v318 = vshll.u32 %v186, 16
      %v320 = vrot.slane %v318, 5
      %v321 = vsel %vm209, %v316, %v320
      %s322 = scalar_lea.vmem %s1, 64
      %v323 = vld [vmem:[%s322] sm:$0xf]
      %v324 = vld [vmem:[%s322 + $0x4] sm:$0xf]
      %v325 = vld [vmem:[%s322 + $0x8] sm:$0xf]
      %v326 = vld [vmem:[%s322 + $0xc] sm:$0xf]
      %v327 = vld [vmem:[%s322 + $0x10] sm:$0xf]
      %v328 = vld [vmem:[%s322 + $0x14] sm:$0xf]
      %v329 = vld [vmem:[%s322 + $0x18] sm:$0xf]
      %v330 = vld [vmem:[%s322 + $0x1c] sm:$0xf]
      %v331 = vld [vmem:[%s322 + $0x20] sm:$0xf]
      %v332 = vld [vmem:[%s322 + $0x24] sm:$0xf]
      %v333 = vld [vmem:[%s322 + $0x28] sm:$0xf]
      %v334 = vld [vmem:[%s322 + $0x2c] sm:$0xf]
      %v335 = vld [vmem:[%s322 + $0x30] sm:$0xf]
      %v336 = vld [vmem:[%s322 + $0x34] sm:$0xf]
      %v337 = vld [vmem:[%s322 + $0x38] sm:$0xf]
      %v338 = vld [vmem:[%s322 + $0x3c] sm:$0xf]
      %v339 = vunpack.c.l.b16 %v223
      %v340 = vunpack.c.l.b16 %v237
      %v341 = vunpack.c.l.b16 %v251
      %v342 = vunpack.c.l.b16 %v265
      %v343 = vunpack.c.l.b16 %v279
      %v344 = vunpack.c.l.b16 %v293
      %v345 = vunpack.c.l.b16 %v307
      %v346 = vunpack.c.l.b16 %v321
      %v347 = vpack.c.b16 %v340, %v339
      %v348 = vpack.c.b16 %v342, %v341
      %v349 = vpack.c.b16 %v344, %v343
      %v350 = vpack.c.b16 %v346, %v345
      %v371 = vunpack.c.l.b16 %v323
      %v372 = vunpack.c.l.b16 %v324
      %v373 = vunpack.c.l.b16 %v325
      %v374 = vunpack.c.l.b16 %v326
      %v375 = vunpack.c.l.b16 %v327
      %v376 = vunpack.c.l.b16 %v328
      %v377 = vunpack.c.l.b16 %v329
      %v378 = vunpack.c.l.b16 %v330
      %v379 = vunpack.c.l.b16 %v331
      %v380 = vunpack.c.l.b16 %v332
      %v381 = vunpack.c.l.b16 %v333
      %v382 = vunpack.c.l.b16 %v334
      %v383 = vunpack.c.l.b16 %v335
      %v384 = vunpack.c.l.b16 %v336
      %v385 = vunpack.c.l.b16 %v337
      %v386 = vunpack.c.l.b16 %v338
      %v387 = vpack.c.b16 %v372, %v371
      %v388 = vpack.c.b16 %v374, %v373
      %v389 = vpack.c.b16 %v376, %v375
      %v390 = vpack.c.b16 %v378, %v377
      %v391 = vpack.c.b16 %v380, %v379
      %v392 = vpack.c.b16 %v382, %v381
      %v393 = vpack.c.b16 %v384, %v383
      %v394 = vpack.c.b16 %v386, %v385
      %403 = vmatpush.bf16.msra.mxu0 %v394
      %404 = vmatpush.bf16.msra.mxu0 %v393
      %405 = vmatpush.bf16.msra.mxu0 %v392
      %406 = vmatpush.bf16.msra.mxu0 %v391
      %407 = vmatpush.bf16.msra.mxu0 %v390
      %408 = vmatpush.bf16.msra.mxu0 %v389
      %409 = vmatpush.bf16.msra.mxu0 %v388
      %410 = vmatpush.bf16.msra.mxu0 %v387
      %411 = vmatmul.bf16.gmra.mxu0 %v347
      %v412 = vpop.f32.mrf.mxu0
      %v413 = vadd.f32 0.0, %v412
      %v414 = vpop.f32.mrf.mxu0
      %v415 = vadd.f32 0.0, %v414
      %416 = vmatmul.bf16.gmra.mxu0 %v348
      %v417 = vpop.f32.mrf.mxu0
      %v418 = vadd.f32 0.0, %v417
      %v419 = vpop.f32.mrf.mxu0
      %v420 = vadd.f32 0.0, %v419
      %421 = vmatmul.bf16.gmra.mxu0 %v349
      %v422 = vpop.f32.mrf.mxu0
      %v423 = vadd.f32 0.0, %v422
      %v424 = vpop.f32.mrf.mxu0
      %v425 = vadd.f32 0.0, %v424
      %426 = vmatmul.bf16.gmra.mxu0 %v350
      %v427 = vpop.f32.mrf.mxu0
      %v428 = vadd.f32 0.0, %v427
      %v429 = vpop.f32.mrf.mxu0
      %v430 = vadd.f32 0.0, %v429
      %431 = vdwg.mxu0
      %v440 = vunpack.c.l.b16 %v171
      %v441 = vunpack.c.l.b16 %v173
      %v442 = vunpack.c.l.b16 %v175
      %v443 = vunpack.c.l.b16 %v177
      %v444 = vunpack.c.l.b16 %v179
      %v445 = vunpack.c.l.b16 %v181
      %v446 = vunpack.c.l.b16 %v183
      %v447 = vunpack.c.l.b16 %v185
      %v448 = vpack.c.b16 %v441, %v440
      %v449 = vpack.c.b16 %v443, %v442
      %v450 = vpack.c.b16 %v445, %v444
      %v451 = vpack.c.b16 %v447, %v446
      %v472 = vunpack.c.l.b16 %v191
      %v473 = vunpack.c.l.b16 %v192
      %v474 = vunpack.c.l.b16 %v193
      %v475 = vunpack.c.l.b16 %v194
      %v476 = vunpack.c.l.b16 %v195
      %v477 = vunpack.c.l.b16 %v196
      %v478 = vunpack.c.l.b16 %v197
      %v479 = vunpack.c.l.b16 %v198
      %v480 = vunpack.c.l.b16 %v199
      %v481 = vunpack.c.l.b16 %v200
      %v482 = vunpack.c.l.b16 %v201
      %v483 = vunpack.c.l.b16 %v202
      %v484 = vunpack.c.l.b16 %v203
      %v485 = vunpack.c.l.b16 %v204
      %v486 = vunpack.c.l.b16 %v205
      %v487 = vunpack.c.l.b16 %v206
      %v488 = vpack.c.b16 %v473, %v472
      %v489 = vpack.c.b16 %v475, %v474
      %v490 = vpack.c.b16 %v477, %v476
      %v491 = vpack.c.b16 %v479, %v478
      %v492 = vpack.c.b16 %v481, %v480
      %v493 = vpack.c.b16 %v483, %v482
      %v494 = vpack.c.b16 %v485, %v484
      %v495 = vpack.c.b16 %v487, %v486
      %504 = vmatpush.bf16.msra.mxu0 %v495
      %505 = vmatpush.bf16.msra.mxu0 %v494
      %506 = vmatpush.bf16.msra.mxu0 %v493
      %507 = vmatpush.bf16.msra.mxu0 %v492
      %508 = vmatpush.bf16.msra.mxu0 %v491
      %509 = vmatpush.bf16.msra.mxu0 %v490
      %510 = vmatpush.bf16.msra.mxu0 %v489
      %511 = vmatpush.bf16.msra.mxu0 %v488
      %512 = vmatmul.bf16.gmra.mxu0 %v448
      %v513 = vpop.f32.mrf.mxu0
      %v514 = vadd.f32 %v413, %v513
      %v515 = vpop.f32.mrf.mxu0
      %v516 = vadd.f32 %v415, %v515
      %517 = vmatmul.bf16.gmra.mxu0 %v449
      %v518 = vpop.f32.mrf.mxu0
      %v519 = vadd.f32 %v418, %v518
      %v520 = vpop.f32.mrf.mxu0
      %v521 = vadd.f32 %v420, %v520
      %522 = vmatmul.bf16.gmra.mxu0 %v450
      %v523 = vpop.f32.mrf.mxu0
      %v524 = vadd.f32 %v423, %v523
      %v525 = vpop.f32.mrf.mxu0
      %v526 = vadd.f32 %v425, %v525
      %527 = vmatmul.bf16.gmra.mxu0 %v451
      %v528 = vpop.f32.mrf.mxu0
      %v529 = vadd.f32 %v428, %v528
      %v530 = vpop.f32.mrf.mxu0
      %v531 = vadd.f32 %v430, %v530
      %532 = vdwg.mxu0
      %vm541 = vcmask 1042432
      %vm542 = vcmask 1046532
      %vm543 = vmor %vm541, %vm542
      %v544 = vrot.slane %v171, 5
      %v545 = vrot.slane %v544, 4
      %v546 = vrot.slane %v172, 5
      %v547 = vsel %vm543, %v545, %v546
      %v548 = vrot.slane %v173, 5
      %v549 = vrot.slane %v548, 4
      %v550 = vrot.slane %v174, 5
      %v551 = vsel %vm543, %v549, %v550
      %v552 = vrot.slane %v175, 5
      %v553 = vrot.slane %v552, 4
      %v554 = vrot.slane %v176, 5
      %v555 = vsel %vm543, %v553, %v554
      %v556 = vrot.slane %v177, 5
      %v557 = vrot.slane %v556, 4
      %v558 = vrot.slane %v178, 5
      %v559 = vsel %vm543, %v557, %v558
      %v560 = vrot.slane %v179, 5
      %v561 = vrot.slane %v560, 4
      %v562 = vrot.slane %v180, 5
      %v563 = vsel %vm543, %v561, %v562
      %v564 = vrot.slane %v181, 5
      %v565 = vrot.slane %v564, 4
      %v566 = vrot.slane %v182, 5
      %v567 = vsel %vm543, %v565, %v566
      %v568 = vrot.slane %v183, 5
      %v569 = vrot.slane %v568, 4
      %v570 = vrot.slane %v184, 5
      %v571 = vsel %vm543, %v569, %v570
      %v572 = vrot.slane %v185, 5
      %v573 = vrot.slane %v572, 4
      %v574 = vrot.slane %v186, 5
      %v575 = vsel %vm543, %v573, %v574
      %s576 = scalar_lea.vmem %s1, 128
      %v577 = vld [vmem:[%s576] sm:$0xf]
      %v578 = vld [vmem:[%s576 + $0x4] sm:$0xf]
      %v579 = vld [vmem:[%s576 + $0x8] sm:$0xf]
      %v580 = vld [vmem:[%s576 + $0xc] sm:$0xf]
      %v581 = vld [vmem:[%s576 + $0x10] sm:$0xf]
      %v582 = vld [vmem:[%s576 + $0x14] sm:$0xf]
      %v583 = vld [vmem:[%s576 + $0x18] sm:$0xf]
      %v584 = vld [vmem:[%s576 + $0x1c] sm:$0xf]
      %v585 = vld [vmem:[%s576 + $0x20] sm:$0xf]
      %v586 = vld [vmem:[%s576 + $0x24] sm:$0xf]
      %v587 = vld [vmem:[%s576 + $0x28] sm:$0xf]
      %v588 = vld [vmem:[%s576 + $0x2c] sm:$0xf]
      %v589 = vld [vmem:[%s576 + $0x30] sm:$0xf]
      %v590 = vld [vmem:[%s576 + $0x34] sm:$0xf]
      %v591 = vld [vmem:[%s576 + $0x38] sm:$0xf]
      %v592 = vld [vmem:[%s576 + $0x3c] sm:$0xf]
      %v593 = vunpack.c.l.b16 %v547
      %v594 = vunpack.c.l.b16 %v551
      %v595 = vunpack.c.l.b16 %v555
      %v596 = vunpack.c.l.b16 %v559
      %v597 = vunpack.c.l.b16 %v563
      %v598 = vunpack.c.l.b16 %v567
      %v599 = vunpack.c.l.b16 %v571
      %v600 = vunpack.c.l.b16 %v575
      %v601 = vpack.c.b16 %v594, %v593
      %v602 = vpack.c.b16 %v596, %v595
      %v603 = vpack.c.b16 %v598, %v597
      %v604 = vpack.c.b16 %v600, %v599
      %v625 = vunpack.c.l.b16 %v577
      %v626 = vunpack.c.l.b16 %v578
      %v627 = vunpack.c.l.b16 %v579
      %v628 = vunpack.c.l.b16 %v580
      %v629 = vunpack.c.l.b16 %v581
      %v630 = vunpack.c.l.b16 %v582
      %v631 = vunpack.c.l.b16 %v583
      %v632 = vunpack.c.l.b16 %v584
      %v633 = vunpack.c.l.b16 %v585
      %v634 = vunpack.c.l.b16 %v586
      %v635 = vunpack.c.l.b16 %v587
      %v636 = vunpack.c.l.b16 %v588
      %v637 = vunpack.c.l.b16 %v589
      %v638 = vunpack.c.l.b16 %v590
      %v639 = vunpack.c.l.b16 %v591
      %v640 = vunpack.c.l.b16 %v592
      %v641 = vpack.c.b16 %v626, %v625
      %v642 = vpack.c.b16 %v628, %v627
      %v643 = vpack.c.b16 %v630, %v629
      %v644 = vpack.c.b16 %v632, %v631
      %v645 = vpack.c.b16 %v634, %v633
      %v646 = vpack.c.b16 %v636, %v635
      %v647 = vpack.c.b16 %v638, %v637
      %v648 = vpack.c.b16 %v640, %v639
      %657 = vmatpush.bf16.msra.mxu0 %v648
      %658 = vmatpush.bf16.msra.mxu0 %v647
      %659 = vmatpush.bf16.msra.mxu0 %v646
      %660 = vmatpush.bf16.msra.mxu0 %v645
      %661 = vmatpush.bf16.msra.mxu0 %v644
      %662 = vmatpush.bf16.msra.mxu0 %v643
      %663 = vmatpush.bf16.msra.mxu0 %v642
      %664 = vmatpush.bf16.msra.mxu0 %v641
      %665 = vmatmul.bf16.gmra.mxu0 %v601
      %v666 = vpop.f32.mrf.mxu0
      %v667 = vadd.f32 0.0, %v666
      %v668 = vpop.f32.mrf.mxu0
      %v669 = vadd.f32 0.0, %v668
      %670 = vmatmul.bf16.gmra.mxu0 %v602
      %v671 = vpop.f32.mrf.mxu0
      %v672 = vadd.f32 0.0, %v671
      %v673 = vpop.f32.mrf.mxu0
      %v674 = vadd.f32 0.0, %v673
      %675 = vmatmul.bf16.gmra.mxu0 %v603
      %v676 = vpop.f32.mrf.mxu0
      %v677 = vadd.f32 0.0, %v676
      %v678 = vpop.f32.mrf.mxu0
      %v679 = vadd.f32 0.0, %v678
      %680 = vmatmul.bf16.gmra.mxu0 %v604
      %v681 = vpop.f32.mrf.mxu0
      %v682 = vadd.f32 0.0, %v681
      %v683 = vpop.f32.mrf.mxu0
      %v684 = vadd.f32 0.0, %v683
      %685 = vdwg.mxu0
      %v686 = vadd.f32 %v514, %v667
      %v687 = vadd.f32 %v516, %v669
      %v688 = vadd.f32 %v519, %v672
      %v689 = vadd.f32 %v521, %v674
      %v690 = vadd.f32 %v524, %v677
      %v691 = vadd.f32 %v526, %v679
      %v692 = vadd.f32 %v529, %v682
      %v693 = vadd.f32 %v531, %v684
      %s694 = scalar_lea.vmem %s1, 192
      %v695 = vld [vmem:[%s694] sm:$0xf]
      %v696 = vld [vmem:[%s694 + $0x4] sm:$0xf]
      %v697 = vld [vmem:[%s694 + $0x8] sm:$0xf]
      %v698 = vld [vmem:[%s694 + $0xc] sm:$0xf]
      %v699 = vld [vmem:[%s694 + $0x10] sm:$0xf]
      %v700 = vld [vmem:[%s694 + $0x14] sm:$0xf]
      %v701 = vld [vmem:[%s694 + $0x18] sm:$0xf]
      %v702 = vld [vmem:[%s694 + $0x1c] sm:$0xf]
      %v703 = vld [vmem:[%s694 + $0x20] sm:$0xf]
      %v704 = vld [vmem:[%s694 + $0x24] sm:$0xf]
      %v705 = vld [vmem:[%s694 + $0x28] sm:$0xf]
      %v706 = vld [vmem:[%s694 + $0x2c] sm:$0xf]
      %v707 = vld [vmem:[%s694 + $0x30] sm:$0xf]
      %v708 = vld [vmem:[%s694 + $0x34] sm:$0xf]
      %v709 = vld [vmem:[%s694 + $0x38] sm:$0xf]
      %v710 = vld [vmem:[%s694 + $0x3c] sm:$0xf]
      %v712 = vunpack.c.l.b16 %v187
      %v713 = vpack.c.b16 %v442, %v441
      %v714 = vpack.c.b16 %v444, %v443
      %v715 = vpack.c.b16 %v446, %v445
      %v716 = vpack.c.b16 %v712, %v447
      %v737 = vunpack.c.l.b16 %v695
      %v738 = vunpack.c.l.b16 %v696
      %v739 = vunpack.c.l.b16 %v697
      %v740 = vunpack.c.l.b16 %v698
      %v741 = vunpack.c.l.b16 %v699
      %v742 = vunpack.c.l.b16 %v700
      %v743 = vunpack.c.l.b16 %v701
      %v744 = vunpack.c.l.b16 %v702
      %v745 = vunpack.c.l.b16 %v703
      %v746 = vunpack.c.l.b16 %v704
      %v747 = vunpack.c.l.b16 %v705
      %v748 = vunpack.c.l.b16 %v706
      %v749 = vunpack.c.l.b16 %v707
      %v750 = vunpack.c.l.b16 %v708
      %v751 = vunpack.c.l.b16 %v709
      %v752 = vunpack.c.l.b16 %v710
      %v753 = vpack.c.b16 %v738, %v737
      %v754 = vpack.c.b16 %v740, %v739
      %v755 = vpack.c.b16 %v742, %v741
      %v756 = vpack.c.b16 %v744, %v743
      %v757 = vpack.c.b16 %v746, %v745
      %v758 = vpack.c.b16 %v748, %v747
      %v759 = vpack.c.b16 %v750, %v749
      %v760 = vpack.c.b16 %v752, %v751
      %769 = vmatpush.bf16.msra.mxu0 %v760
      %770 = vmatpush.bf16.msra.mxu0 %v759
      %771 = vmatpush.bf16.msra.mxu0 %v758
      %772 = vmatpush.bf16.msra.mxu0 %v757
      %773 = vmatpush.bf16.msra.mxu0 %v756
      %774 = vmatpush.bf16.msra.mxu0 %v755
      %775 = vmatpush.bf16.msra.mxu0 %v754
      %776 = vmatpush.bf16.msra.mxu0 %v753
      %777 = vmatmul.bf16.gmra.mxu0 %v713
      %v778 = vpop.f32.mrf.mxu0
      %v779 = vadd.f32 0.0, %v778
      %v780 = vpop.f32.mrf.mxu0
      %v781 = vadd.f32 0.0, %v780
      %782 = vmatmul.bf16.gmra.mxu0 %v714
      %v783 = vpop.f32.mrf.mxu0
      %v784 = vadd.f32 0.0, %v783
      %v785 = vpop.f32.mrf.mxu0
      %v786 = vadd.f32 0.0, %v785
      %787 = vmatmul.bf16.gmra.mxu0 %v715
      %v788 = vpop.f32.mrf.mxu0
      %v789 = vadd.f32 0.0, %v788
      %v790 = vpop.f32.mrf.mxu0
      %v791 = vadd.f32 0.0, %v790
      %792 = vmatmul.bf16.gmra.mxu0 %v716
      %v793 = vpop.f32.mrf.mxu0
      %v794 = vadd.f32 0.0, %v793
      %v795 = vpop.f32.mrf.mxu0
      %v796 = vadd.f32 0.0, %v795
      %797 = vdwg.mxu0
      %v798 = vadd.f32 %v686, %v779
      %v799 = vadd.f32 %v687, %v781
      %v800 = vadd.f32 %v688, %v784
      %v801 = vadd.f32 %v689, %v786
      %v802 = vadd.f32 %v690, %v789
      %v803 = vadd.f32 %v691, %v791
      %v804 = vadd.f32 %v692, %v794
      %v805 = vadd.f32 %v693, %v796
      %v807 = vshrl.u32 %v187, 16
      %v809 = vrot.slane %v807, 4
      %v810 = vshll.u32 %v187, 16
      %v812 = vrot.slane %v810, 5
      %v813 = vor.u32 %v809, %v812
      %v814 = vrot.slane %v813, 4
      %v816 = vshll.u32 %v188, 16
      %v818 = vrot.slane %v816, 5
      %v819 = vsel %vm209, %v814, %v818
      %s820 = scalar_lea.vmem %s1, 256
      %v821 = vld [vmem:[%s820] sm:$0xf]
      %v822 = vld [vmem:[%s820 + $0x4] sm:$0xf]
      %v823 = vld [vmem:[%s820 + $0x8] sm:$0xf]
      %v824 = vld [vmem:[%s820 + $0xc] sm:$0xf]
      %v825 = vld [vmem:[%s820 + $0x10] sm:$0xf]
      %v826 = vld [vmem:[%s820 + $0x14] sm:$0xf]
      %v827 = vld [vmem:[%s820 + $0x18] sm:$0xf]
      %v828 = vld [vmem:[%s820 + $0x1c] sm:$0xf]
      %v829 = vld [vmem:[%s820 + $0x20] sm:$0xf]
      %v830 = vld [vmem:[%s820 + $0x24] sm:$0xf]
      %v831 = vld [vmem:[%s820 + $0x28] sm:$0xf]
      %v832 = vld [vmem:[%s820 + $0x2c] sm:$0xf]
      %v833 = vld [vmem:[%s820 + $0x30] sm:$0xf]
      %v834 = vld [vmem:[%s820 + $0x34] sm:$0xf]
      %v835 = vld [vmem:[%s820 + $0x38] sm:$0xf]
      %v836 = vld [vmem:[%s820 + $0x3c] sm:$0xf]
      %v837 = vunpack.c.l.b16 %v819
      %v838 = vpack.c.b16 %v341, %v340
      %v839 = vpack.c.b16 %v343, %v342
      %v840 = vpack.c.b16 %v345, %v344
      %v841 = vpack.c.b16 %v837, %v346
      %v862 = vunpack.c.l.b16 %v821
      %v863 = vunpack.c.l.b16 %v822
      %v864 = vunpack.c.l.b16 %v823
      %v865 = vunpack.c.l.b16 %v824
      %v866 = vunpack.c.l.b16 %v825
      %v867 = vunpack.c.l.b16 %v826
      %v868 = vunpack.c.l.b16 %v827
      %v869 = vunpack.c.l.b16 %v828
      %v870 = vunpack.c.l.b16 %v829
      %v871 = vunpack.c.l.b16 %v830
      %v872 = vunpack.c.l.b16 %v831
      %v873 = vunpack.c.l.b16 %v832
      %v874 = vunpack.c.l.b16 %v833
      %v875 = vunpack.c.l.b16 %v834
      %v876 = vunpack.c.l.b16 %v835
      %v877 = vunpack.c.l.b16 %v836
      %v878 = vpack.c.b16 %v863, %v862
      %v879 = vpack.c.b16 %v865, %v864
      %v880 = vpack.c.b16 %v867, %v866
      %v881 = vpack.c.b16 %v869, %v868
      %v882 = vpack.c.b16 %v871, %v870
      %v883 = vpack.c.b16 %v873, %v872
      %v884 = vpack.c.b16 %v875, %v874
      %v885 = vpack.c.b16 %v877, %v876
      %894 = vmatpush.bf16.msra.mxu0 %v885
      %895 = vmatpush.bf16.msra.mxu0 %v884
      %896 = vmatpush.bf16.msra.mxu0 %v883
      %897 = vmatpush.bf16.msra.mxu0 %v882
      %898 = vmatpush.bf16.msra.mxu0 %v881
      %899 = vmatpush.bf16.msra.mxu0 %v880
      %900 = vmatpush.bf16.msra.mxu0 %v879
      %901 = vmatpush.bf16.msra.mxu0 %v878
      %902 = vmatmul.bf16.gmra.mxu0 %v838
      %v903 = vpop.f32.mrf.mxu0
      %v904 = vadd.f32 0.0, %v903
      %v905 = vpop.f32.mrf.mxu0
      %v906 = vadd.f32 0.0, %v905
      %907 = vmatmul.bf16.gmra.mxu0 %v839
      %v908 = vpop.f32.mrf.mxu0
      %v909 = vadd.f32 0.0, %v908
      %v910 = vpop.f32.mrf.mxu0
      %v911 = vadd.f32 0.0, %v910
      %912 = vmatmul.bf16.gmra.mxu0 %v840
      %v913 = vpop.f32.mrf.mxu0
      %v914 = vadd.f32 0.0, %v913
      %v915 = vpop.f32.mrf.mxu0
      %v916 = vadd.f32 0.0, %v915
      %917 = vmatmul.bf16.gmra.mxu0 %v841
      %v918 = vpop.f32.mrf.mxu0
      %v919 = vadd.f32 0.0, %v918
      %v920 = vpop.f32.mrf.mxu0
      %v921 = vadd.f32 0.0, %v920
      %922 = vdwg.mxu0
      %v923 = vadd.f32 %v798, %v904
      %v924 = vadd.f32 %v799, %v906
      %v925 = vadd.f32 %v800, %v909
      %v926 = vadd.f32 %v801, %v911
      %v927 = vadd.f32 %v802, %v914
      %v928 = vadd.f32 %v803, %v916
      %v929 = vadd.f32 %v804, %v919
      %v930 = vadd.f32 %v805, %v921
      %v932 = vrot.slane %v187, 5
      %v933 = vrot.slane %v932, 4
      %v934 = vrot.slane %v188, 5
      %v935 = vsel %vm543, %v933, %v934
      %s936 = scalar_lea.vmem %s1, 320
      %v937 = vld [vmem:[%s936] sm:$0xf]
      %v938 = vld [vmem:[%s936 + $0x4] sm:$0xf]
      %v939 = vld [vmem:[%s936 + $0x8] sm:$0xf]
      %v940 = vld [vmem:[%s936 + $0xc] sm:$0xf]
      %v941 = vld [vmem:[%s936 + $0x10] sm:$0xf]
      %v942 = vld [vmem:[%s936 + $0x14] sm:$0xf]
      %v943 = vld [vmem:[%s936 + $0x18] sm:$0xf]
      %v944 = vld [vmem:[%s936 + $0x1c] sm:$0xf]
      %v945 = vld [vmem:[%s936 + $0x20] sm:$0xf]
      %v946 = vld [vmem:[%s936 + $0x24] sm:$0xf]
      %v947 = vld [vmem:[%s936 + $0x28] sm:$0xf]
      %v948 = vld [vmem:[%s936 + $0x2c] sm:$0xf]
      %v949 = vld [vmem:[%s936 + $0x30] sm:$0xf]
      %v950 = vld [vmem:[%s936 + $0x34] sm:$0xf]
      %v951 = vld [vmem:[%s936 + $0x38] sm:$0xf]
      %v952 = vld [vmem:[%s936 + $0x3c] sm:$0xf]
      %v953 = vunpack.c.l.b16 %v935
      %v954 = vpack.c.b16 %v595, %v594
      %v955 = vpack.c.b16 %v597, %v596
      %v956 = vpack.c.b16 %v599, %v598
      %v957 = vpack.c.b16 %v953, %v600
      %v978 = vunpack.c.l.b16 %v937
      %v979 = vunpack.c.l.b16 %v938
      %v980 = vunpack.c.l.b16 %v939
      %v981 = vunpack.c.l.b16 %v940
      %v982 = vunpack.c.l.b16 %v941
      %v983 = vunpack.c.l.b16 %v942
      %v984 = vunpack.c.l.b16 %v943
      %v985 = vunpack.c.l.b16 %v944
      %v986 = vunpack.c.l.b16 %v945
      %v987 = vunpack.c.l.b16 %v946
      %v988 = vunpack.c.l.b16 %v947
      %v989 = vunpack.c.l.b16 %v948
      %v990 = vunpack.c.l.b16 %v949
      %v991 = vunpack.c.l.b16 %v950
      %v992 = vunpack.c.l.b16 %v951
      %v993 = vunpack.c.l.b16 %v952
      %v994 = vpack.c.b16 %v979, %v978
      %v995 = vpack.c.b16 %v981, %v980
      %v996 = vpack.c.b16 %v983, %v982
      %v997 = vpack.c.b16 %v985, %v984
      %v998 = vpack.c.b16 %v987, %v986
      %v999 = vpack.c.b16 %v989, %v988
      %v1000 = vpack.c.b16 %v991, %v990
      %v1001 = vpack.c.b16 %v993, %v992
      %1010 = vmatpush.bf16.msra.mxu0 %v1001
      %1011 = vmatpush.bf16.msra.mxu0 %v1000
      %1012 = vmatpush.bf16.msra.mxu0 %v999
      %1013 = vmatpush.bf16.msra.mxu0 %v998
      %1014 = vmatpush.bf16.msra.mxu0 %v997
      %1015 = vmatpush.bf16.msra.mxu0 %v996
      %1016 = vmatpush.bf16.msra.mxu0 %v995
      %1017 = vmatpush.bf16.msra.mxu0 %v994
      %1018 = vmatmul.bf16.gmra.mxu0 %v954
      %v1019 = vpop.f32.mrf.mxu0
      %v1020 = vadd.f32 0.0, %v1019
      %v1021 = vpop.f32.mrf.mxu0
      %v1022 = vadd.f32 0.0, %v1021
      %1023 = vmatmul.bf16.gmra.mxu0 %v955
      %v1024 = vpop.f32.mrf.mxu0
      %v1025 = vadd.f32 0.0, %v1024
      %v1026 = vpop.f32.mrf.mxu0
      %v1027 = vadd.f32 0.0, %v1026
      %1028 = vmatmul.bf16.gmra.mxu0 %v956
      %v1029 = vpop.f32.mrf.mxu0
      %v1030 = vadd.f32 0.0, %v1029
      %v1031 = vpop.f32.mrf.mxu0
      %v1032 = vadd.f32 0.0, %v1031
      %1033 = vmatmul.bf16.gmra.mxu0 %v957
      %v1034 = vpop.f32.mrf.mxu0
      %v1035 = vadd.f32 0.0, %v1034
      %v1036 = vpop.f32.mrf.mxu0
      %v1037 = vadd.f32 0.0, %v1036
      %1038 = vdwg.mxu0
      %v1039 = vadd.f32 %v923, %v1020
      %v1040 = vadd.f32 %v924, %v1022
      %v1041 = vadd.f32 %v925, %v1025
      %v1042 = vadd.f32 %v926, %v1027
      %v1043 = vadd.f32 %v927, %v1030
      %v1044 = vadd.f32 %v928, %v1032
      %v1045 = vadd.f32 %v929, %v1035
      %v1046 = vadd.f32 %v930, %v1037
      %s1047 = scalar_lea.vmem %s1, 384
      %v1048 = vld [vmem:[%s1047] sm:$0xf]
      %v1049 = vld [vmem:[%s1047 + $0x4] sm:$0xf]
      %v1050 = vld [vmem:[%s1047 + $0x8] sm:$0xf]
      %v1051 = vld [vmem:[%s1047 + $0xc] sm:$0xf]
      %v1052 = vld [vmem:[%s1047 + $0x10] sm:$0xf]
      %v1053 = vld [vmem:[%s1047 + $0x14] sm:$0xf]
      %v1054 = vld [vmem:[%s1047 + $0x18] sm:$0xf]
      %v1055 = vld [vmem:[%s1047 + $0x1c] sm:$0xf]
      %v1056 = vld [vmem:[%s1047 + $0x20] sm:$0xf]
      %v1057 = vld [vmem:[%s1047 + $0x24] sm:$0xf]
      %v1058 = vld [vmem:[%s1047 + $0x28] sm:$0xf]
      %v1059 = vld [vmem:[%s1047 + $0x2c] sm:$0xf]
      %v1060 = vld [vmem:[%s1047 + $0x30] sm:$0xf]
      %v1061 = vld [vmem:[%s1047 + $0x34] sm:$0xf]
      %v1062 = vld [vmem:[%s1047 + $0x38] sm:$0xf]
      %v1063 = vld [vmem:[%s1047 + $0x3c] sm:$0xf]
      %v1065 = vunpack.c.l.b16 %v189
      %v1066 = vpack.c.b16 %v1065, %v712
      %v1084 = vunpack.c.l.b16 %v1048
      %v1085 = vunpack.c.l.b16 %v1049
      %v1086 = vunpack.c.l.b16 %v1050
      %v1087 = vunpack.c.l.b16 %v1051
      %v1088 = vunpack.c.l.b16 %v1052
      %v1089 = vunpack.c.l.b16 %v1053
      %v1090 = vunpack.c.l.b16 %v1054
      %v1091 = vunpack.c.l.b16 %v1055
      %v1092 = vunpack.c.l.b16 %v1056
      %v1093 = vunpack.c.l.b16 %v1057
      %v1094 = vunpack.c.l.b16 %v1058
      %v1095 = vunpack.c.l.b16 %v1059
      %v1096 = vunpack.c.l.b16 %v1060
      %v1097 = vunpack.c.l.b16 %v1061
      %v1098 = vunpack.c.l.b16 %v1062
      %v1099 = vunpack.c.l.b16 %v1063
      %v1100 = vpack.c.b16 %v1085, %v1084
      %v1101 = vpack.c.b16 %v1087, %v1086
      %v1102 = vpack.c.b16 %v1089, %v1088
      %v1103 = vpack.c.b16 %v1091, %v1090
      %v1104 = vpack.c.b16 %v1093, %v1092
      %v1105 = vpack.c.b16 %v1095, %v1094
      %v1106 = vpack.c.b16 %v1097, %v1096
      %v1107 = vpack.c.b16 %v1099, %v1098
      %1116 = vmatpush.bf16.msra.mxu0 %v1107
      %1117 = vmatpush.bf16.msra.mxu0 %v1106
      %1118 = vmatpush.bf16.msra.mxu0 %v1105
      %1119 = vmatpush.bf16.msra.mxu0 %v1104
      %1120 = vmatpush.bf16.msra.mxu0 %v1103
      %1121 = vmatpush.bf16.msra.mxu0 %v1102
      %1122 = vmatpush.bf16.msra.mxu0 %v1101
      %1123 = vmatpush.bf16.msra.mxu0 %v1100
      %1124 = vmatmul.bf16.gmra.mxu0 %v449
      %v1125 = vpop.f32.mrf.mxu0
      %v1126 = vadd.f32 0.0, %v1125
      %v1127 = vpop.f32.mrf.mxu0
      %v1128 = vadd.f32 0.0, %v1127
      %1129 = vmatmul.bf16.gmra.mxu0 %v450
      %v1130 = vpop.f32.mrf.mxu0
      %v1131 = vadd.f32 0.0, %v1130
      %v1132 = vpop.f32.mrf.mxu0
      %v1133 = vadd.f32 0.0, %v1132
      %1134 = vmatmul.bf16.gmra.mxu0 %v451
      %v1135 = vpop.f32.mrf.mxu0
      %v1136 = vadd.f32 0.0, %v1135
      %v1137 = vpop.f32.mrf.mxu0
      %v1138 = vadd.f32 0.0, %v1137
      %1139 = vmatmul.bf16.gmra.mxu0 %v1066
      %v1140 = vpop.f32.mrf.mxu0
      %v1141 = vadd.f32 0.0, %v1140
      %v1142 = vpop.f32.mrf.mxu0
      %v1143 = vadd.f32 0.0, %v1142
      %1144 = vdwg.mxu0
      %v1145 = vadd.f32 %v1039, %v1126
      %v1146 = vadd.f32 %v1040, %v1128
      %v1147 = vadd.f32 %v1041, %v1131
      %v1148 = vadd.f32 %v1042, %v1133
      %v1149 = vadd.f32 %v1043, %v1136
      %v1150 = vadd.f32 %v1044, %v1138
      %v1151 = vadd.f32 %v1045, %v1141
      %v1152 = vadd.f32 %v1046, %v1143
      %v1154 = vshrl.u32 %v189, 16
      %v1156 = vrot.slane %v1154, 4
      %v1157 = vshll.u32 %v189, 16
      %v1159 = vrot.slane %v1157, 5
      %v1160 = vor.u32 %v1156, %v1159
      %v1161 = vrot.slane %v1160, 4
      %v1163 = vshll.u32 %v190, 16
      %v1165 = vrot.slane %v1163, 5
      %v1166 = vsel %vm209, %v1161, %v1165
      %s1167 = scalar_lea.vmem %s1, 448
      %v1168 = vld [vmem:[%s1167] sm:$0xf]
      %v1169 = vld [vmem:[%s1167 + $0x4] sm:$0xf]
      %v1170 = vld [vmem:[%s1167 + $0x8] sm:$0xf]
      %v1171 = vld [vmem:[%s1167 + $0xc] sm:$0xf]
      %v1172 = vld [vmem:[%s1167 + $0x10] sm:$0xf]
      %v1173 = vld [vmem:[%s1167 + $0x14] sm:$0xf]
      %v1174 = vld [vmem:[%s1167 + $0x18] sm:$0xf]
      %v1175 = vld [vmem:[%s1167 + $0x1c] sm:$0xf]
      %v1176 = vld [vmem:[%s1167 + $0x20] sm:$0xf]
      %v1177 = vld [vmem:[%s1167 + $0x24] sm:$0xf]
      %v1178 = vld [vmem:[%s1167 + $0x28] sm:$0xf]
      %v1179 = vld [vmem:[%s1167 + $0x2c] sm:$0xf]
      %v1180 = vld [vmem:[%s1167 + $0x30] sm:$0xf]
      %v1181 = vld [vmem:[%s1167 + $0x34] sm:$0xf]
      %v1182 = vld [vmem:[%s1167 + $0x38] sm:$0xf]
      %v1183 = vld [vmem:[%s1167 + $0x3c] sm:$0xf]
      %v1184 = vunpack.c.l.b16 %v1166
      %v1185 = vpack.c.b16 %v1184, %v837
      %v1203 = vunpack.c.l.b16 %v1168
      %v1204 = vunpack.c.l.b16 %v1169
      %v1205 = vunpack.c.l.b16 %v1170
      %v1206 = vunpack.c.l.b16 %v1171
      %v1207 = vunpack.c.l.b16 %v1172
      %v1208 = vunpack.c.l.b16 %v1173
      %v1209 = vunpack.c.l.b16 %v1174
      %v1210 = vunpack.c.l.b16 %v1175
      %v1211 = vunpack.c.l.b16 %v1176
      %v1212 = vunpack.c.l.b16 %v1177
      %v1213 = vunpack.c.l.b16 %v1178
      %v1214 = vunpack.c.l.b16 %v1179
      %v1215 = vunpack.c.l.b16 %v1180
      %v1216 = vunpack.c.l.b16 %v1181
      %v1217 = vunpack.c.l.b16 %v1182
      %v1218 = vunpack.c.l.b16 %v1183
      %v1219 = vpack.c.b16 %v1204, %v1203
      %v1220 = vpack.c.b16 %v1206, %v1205
      %v1221 = vpack.c.b16 %v1208, %v1207
      %v1222 = vpack.c.b16 %v1210, %v1209
      %v1223 = vpack.c.b16 %v1212, %v1211
      %v1224 = vpack.c.b16 %v1214, %v1213
      %v1225 = vpack.c.b16 %v1216, %v1215
      %v1226 = vpack.c.b16 %v1218, %v1217
      %1235 = vmatpush.bf16.msra.mxu0 %v1226
      %1236 = vmatpush.bf16.msra.mxu0 %v1225
      %1237 = vmatpush.bf16.msra.mxu0 %v1224
      %1238 = vmatpush.bf16.msra.mxu0 %v1223
      %1239 = vmatpush.bf16.msra.mxu0 %v1222
      %1240 = vmatpush.bf16.msra.mxu0 %v1221
      %1241 = vmatpush.bf16.msra.mxu0 %v1220
      %1242 = vmatpush.bf16.msra.mxu0 %v1219
      %1243 = vmatmul.bf16.gmra.mxu0 %v348
      %v1244 = vpop.f32.mrf.mxu0
      %v1245 = vadd.f32 0.0, %v1244
      %v1246 = vpop.f32.mrf.mxu0
      %v1247 = vadd.f32 0.0, %v1246
      %1248 = vmatmul.bf16.gmra.mxu0 %v349
      %v1249 = vpop.f32.mrf.mxu0
      %v1250 = vadd.f32 0.0, %v1249
      %v1251 = vpop.f32.mrf.mxu0
      %v1252 = vadd.f32 0.0, %v1251
      %1253 = vmatmul.bf16.gmra.mxu0 %v350
      %v1254 = vpop.f32.mrf.mxu0
      %v1255 = vadd.f32 0.0, %v1254
      %v1256 = vpop.f32.mrf.mxu0
      %v1257 = vadd.f32 0.0, %v1256
      %1258 = vmatmul.bf16.gmra.mxu0 %v1185
      %v1259 = vpop.f32.mrf.mxu0
      %v1260 = vadd.f32 0.0, %v1259
      %v1261 = vpop.f32.mrf.mxu0
      %v1262 = vadd.f32 0.0, %v1261
      %1263 = vdwg.mxu0
      %v1264 = vadd.f32 %v1145, %v1245
      %v1265 = vadd.f32 %v1146, %v1247
      %v1266 = vadd.f32 %v1147, %v1250
      %v1267 = vadd.f32 %v1148, %v1252
      %v1268 = vadd.f32 %v1149, %v1255
      %v1269 = vadd.f32 %v1150, %v1257
      %v1270 = vadd.f32 %v1151, %v1260
      %v1271 = vadd.f32 %v1152, %v1262
      %v1273 = vrot.slane %v189, 5
      %v1274 = vrot.slane %v1273, 4
      %v1275 = vrot.slane %v190, 5
      %v1276 = vsel %vm543, %v1274, %v1275
      %s1277 = scalar_lea.vmem %s1, 512
      %v1278 = vld [vmem:[%s1277] sm:$0xf]
      %v1279 = vld [vmem:[%s1277 + $0x4] sm:$0xf]
      %v1280 = vld [vmem:[%s1277 + $0x8] sm:$0xf]
      %v1281 = vld [vmem:[%s1277 + $0xc] sm:$0xf]
      %v1282 = vld [vmem:[%s1277 + $0x10] sm:$0xf]
      %v1283 = vld [vmem:[%s1277 + $0x14] sm:$0xf]
      %v1284 = vld [vmem:[%s1277 + $0x18] sm:$0xf]
      %v1285 = vld [vmem:[%s1277 + $0x1c] sm:$0xf]
      %v1286 = vld [vmem:[%s1277 + $0x20] sm:$0xf]
      %v1287 = vld [vmem:[%s1277 + $0x24] sm:$0xf]
      %v1288 = vld [vmem:[%s1277 + $0x28] sm:$0xf]
      %v1289 = vld [vmem:[%s1277 + $0x2c] sm:$0xf]
      %v1290 = vld [vmem:[%s1277 + $0x30] sm:$0xf]
      %v1291 = vld [vmem:[%s1277 + $0x34] sm:$0xf]
      %v1292 = vld [vmem:[%s1277 + $0x38] sm:$0xf]
      %v1293 = vld [vmem:[%s1277 + $0x3c] sm:$0xf]
      %v1294 = vunpack.c.l.b16 %v1276
      %v1295 = vpack.c.b16 %v1294, %v953
      %v1313 = vunpack.c.l.b16 %v1278
      %v1314 = vunpack.c.l.b16 %v1279
      %v1315 = vunpack.c.l.b16 %v1280
      %v1316 = vunpack.c.l.b16 %v1281
      %v1317 = vunpack.c.l.b16 %v1282
      %v1318 = vunpack.c.l.b16 %v1283
      %v1319 = vunpack.c.l.b16 %v1284
      %v1320 = vunpack.c.l.b16 %v1285
      %v1321 = vunpack.c.l.b16 %v1286
      %v1322 = vunpack.c.l.b16 %v1287
      %v1323 = vunpack.c.l.b16 %v1288
      %v1324 = vunpack.c.l.b16 %v1289
      %v1325 = vunpack.c.l.b16 %v1290
      %v1326 = vunpack.c.l.b16 %v1291
      %v1327 = vunpack.c.l.b16 %v1292
      %v1328 = vunpack.c.l.b16 %v1293
      %v1329 = vpack.c.b16 %v1314, %v1313
      %v1330 = vpack.c.b16 %v1316, %v1315
      %v1331 = vpack.c.b16 %v1318, %v1317
      %v1332 = vpack.c.b16 %v1320, %v1319
      %v1333 = vpack.c.b16 %v1322, %v1321
      %v1334 = vpack.c.b16 %v1324, %v1323
      %v1335 = vpack.c.b16 %v1326, %v1325
      %v1336 = vpack.c.b16 %v1328, %v1327
      %1345 = vmatpush.bf16.msra.mxu0 %v1336
      %1346 = vmatpush.bf16.msra.mxu0 %v1335
      %1347 = vmatpush.bf16.msra.mxu0 %v1334
      %1348 = vmatpush.bf16.msra.mxu0 %v1333
      %1349 = vmatpush.bf16.msra.mxu0 %v1332
      %1350 = vmatpush.bf16.msra.mxu0 %v1331
      %1351 = vmatpush.bf16.msra.mxu0 %v1330
      %1352 = vmatpush.bf16.msra.mxu0 %v1329
      %1353 = vmatmul.bf16.gmra.mxu0 %v602
      %v1354 = vpop.f32.mrf.mxu0
      %v1355 = vadd.f32 0.0, %v1354
      %v1356 = vpop.f32.mrf.mxu0
      %v1357 = vadd.f32 0.0, %v1356
      %1358 = vmatmul.bf16.gmra.mxu0 %v603
      %v1359 = vpop.f32.mrf.mxu0
      %v1360 = vadd.f32 0.0, %v1359
      %v1361 = vpop.f32.mrf.mxu0
      %v1362 = vadd.f32 0.0, %v1361
      %1363 = vmatmul.bf16.gmra.mxu0 %v604
      %v1364 = vpop.f32.mrf.mxu0
      %v1365 = vadd.f32 0.0, %v1364
      %v1366 = vpop.f32.mrf.mxu0
      %v1367 = vadd.f32 0.0, %v1366
      %1368 = vmatmul.bf16.gmra.mxu0 %v1295
      %v1369 = vpop.f32.mrf.mxu0
      %v1370 = vadd.f32 0.0, %v1369
      %v1371 = vpop.f32.mrf.mxu0
      %v1372 = vadd.f32 0.0, %v1371
      %1373 = vdwg.mxu0
      %v1374 = vadd.f32 %v1264, %v1355
      %v1375 = vadd.f32 %v1265, %v1357
      %v1376 = vadd.f32 %v1266, %v1360
      %v1377 = vadd.f32 %v1267, %v1362
      %v1378 = vadd.f32 %v1268, %v1365
      %v1379 = vadd.f32 %v1269, %v1367
      %v1380 = vadd.f32 %v1270, %v1370
      %v1381 = vadd.f32 %v1271, %v1372
      %v1382 = vld [vmem:[%s2] sm:$0x1]
      %v1384 = vperm.slane %v1382, 0
      %v1386 = vadd.f32 %v1374, %v1384
      %v1387 = vadd.f32 %v1375, %v1384
      %v1388 = vadd.f32 %v1376, %v1384
      %v1389 = vadd.f32 %v1377, %v1384
      %v1390 = vadd.f32 %v1378, %v1384
      %v1391 = vadd.f32 %v1379, %v1384
      %v1392 = vadd.f32 %v1380, %v1384
      %v1393 = vadd.f32 %v1381, %v1384
      %v1394 = vmul.f32 %v1386, %v1386
      %v1395 = vmul.f32 %v1387, %v1387
      %v1396 = vmul.f32 %v1388, %v1388
      %v1397 = vmul.f32 %v1389, %v1389
      %v1398 = vmul.f32 %v1390, %v1390
      %v1399 = vmul.f32 %v1391, %v1391
      %v1400 = vmul.f32 %v1392, %v1392
      %v1401 = vmul.f32 %v1393, %v1393
      %v1402 = vmul.f32 %v1386, %v1394
      %v1403 = vmul.f32 %v1387, %v1395
      %v1404 = vmul.f32 %v1388, %v1396
      %v1405 = vmul.f32 %v1389, %v1397
      %v1406 = vmul.f32 %v1390, %v1398
      %v1407 = vmul.f32 %v1391, %v1399
      %v1408 = vmul.f32 %v1392, %v1400
      %v1409 = vmul.f32 %v1393, %v1401
      %v1410 = vmul.f32 %v1402, 0.044715
      %v1411 = vmul.f32 %v1403, 0.044715
      %v1412 = vmul.f32 %v1404, 0.044715
      %v1413 = vmul.f32 %v1405, 0.044715
      %v1414 = vmul.f32 %v1406, 0.044715
      %v1415 = vmul.f32 %v1407, 0.044715
      %v1416 = vmul.f32 %v1408, 0.044715
      %v1417 = vmul.f32 %v1409, 0.044715
      %v1418 = vadd.f32 %v1386, %v1410
      %v1419 = vadd.f32 %v1387, %v1411
      %v1420 = vadd.f32 %v1388, %v1412
      %v1421 = vadd.f32 %v1389, %v1413
      %v1422 = vadd.f32 %v1390, %v1414
      %v1423 = vadd.f32 %v1391, %v1415
      %v1424 = vadd.f32 %v1392, %v1416
      %v1425 = vadd.f32 %v1393, %v1417
      %v1426 = vmul.f32 %v1418, 0.7978846
      %v1427 = vmul.f32 %v1419, 0.7978846
      %v1428 = vmul.f32 %v1420, 0.7978846
      %v1429 = vmul.f32 %v1421, 0.7978846
      %v1430 = vmul.f32 %v1422, 0.7978846
      %v1431 = vmul.f32 %v1423, 0.7978846
      %v1432 = vmul.f32 %v1424, 0.7978846
      %v1433 = vmul.f32 %v1425, 0.7978846
      %v1434 = vtanh.pop %v1426
      %v1435 = vtanh.pop %v1427
      %v1436 = vtanh.pop %v1428
      %v1437 = vtanh.pop %v1429
      %v1438 = vtanh.pop %v1430
      %v1439 = vtanh.pop %v1431
      %v1440 = vtanh.pop %v1432
      %v1441 = vtanh.pop %v1433
      %v1442 = vadd.f32 %v1434, 1.0
      %v1443 = vadd.f32 %v1435, 1.0
      %v1444 = vadd.f32 %v1436, 1.0
      %v1445 = vadd.f32 %v1437, 1.0
      %v1446 = vadd.f32 %v1438, 1.0
      %v1447 = vadd.f32 %v1439, 1.0
      %v1448 = vadd.f32 %v1440, 1.0
      %v1449 = vadd.f32 %v1441, 1.0
      %v1450 = vmul.f32 %v1442, 0.5
      %v1451 = vmul.f32 %v1443, 0.5
      %v1452 = vmul.f32 %v1444, 0.5
      %v1453 = vmul.f32 %v1445, 0.5
      %v1454 = vmul.f32 %v1446, 0.5
      %v1455 = vmul.f32 %v1447, 0.5
      %v1456 = vmul.f32 %v1448, 0.5
      %v1457 = vmul.f32 %v1449, 0.5
      %v1458 = vmul.f32 %v1386, %v1450
      %v1459 = vmul.f32 %v1387, %v1451
      %v1460 = vmul.f32 %v1388, %v1452
      %v1461 = vmul.f32 %v1389, %v1453
      %v1462 = vmul.f32 %v1390, %v1454
      %v1463 = vmul.f32 %v1391, %v1455
      %v1464 = vmul.f32 %v1392, %v1456
      %v1465 = vmul.f32 %v1393, %v1457
      %v1466 = vmul.f32 %v1458, 1.7015043
      %v1467 = vmul.f32 %v1459, 1.7015043
      %v1468 = vmul.f32 %v1460, 1.7015043
      %v1469 = vmul.f32 %v1461, 1.7015043
      %v1470 = vmul.f32 %v1462, 1.7015043
      %v1471 = vmul.f32 %v1463, 1.7015043
      %v1472 = vmul.f32 %v1464, 1.7015043
      %v1473 = vmul.f32 %v1465, 1.7015043
      %v1474 = vpack.c.bf16 %v1466, %v1466
      %v1475 = vpack.c.bf16 %v1467, %v1467
      %v1476 = vpack.c.bf16 %v1468, %v1468
      %v1477 = vpack.c.bf16 %v1469, %v1469
      %v1478 = vpack.c.bf16 %v1470, %v1470
      %v1479 = vpack.c.bf16 %v1471, %v1471
      %v1480 = vpack.c.bf16 %v1472, %v1472
      %v1481 = vpack.c.bf16 %v1473, %v1473
      %1482 = vst [vmem:[%s170] sm:$0xf] %v1474
      %1483 = vst [vmem:[%s170 + $0x4] sm:$0xf] %v1475
      %1484 = vst [vmem:[%s170 + $0x8] sm:$0xf] %v1476
      %1485 = vst [vmem:[%s170 + $0xc] sm:$0xf] %v1477
      %1486 = vst [vmem:[%s170 + $0x10] sm:$0xf] %v1478
      %1487 = vst [vmem:[%s170 + $0x14] sm:$0xf] %v1479
      %1488 = vst [vmem:[%s170 + $0x18] sm:$0xf] %v1480
      %1489 = vst [vmem:[%s170 + $0x1c] sm:$0xf] %v1481
      %p1490 = scmp.lt.s32.totalorder %s14, 1
      %s1491 = scalar_select %p1490, %s14, 1
      %s1492 = smul.addr %s1491, 8
      %s1493 = smul.addr %s1492, 4
      %s1494 = scalar_lea.vmem %s3, %s1493
      // Predicated region
      $region33: #{nfnet_forward.8} parent=31 // pred_check
        %p1495 = pneg %p100
      $region34: #{nfnet_forward.8} parent=31 // pred_check_branch
        %1497 = sbr.rel (%p1495) target = $region36
      $region35: #{nfnet_forward.8} parent=31 // pred_region
        _
      $region36: #{nfnet_forward.8} parent=31 // pred_fallthru
        _
    $region32: #{nfnet_forward.8} parent=5 // pred_fallthru
      _
    %p1498 = scmp.le.s32.totalorder 2, %s9
    // Predicated region
    $region37: #{nfnet_forward.8} parent=5 // pred_check
      %p1499 = pneg %p1498
    $region38: #{nfnet_forward.8} parent=5 // pred_check_branch
      %1501 = sbr.rel (%p1499) target = $region40
    $region39: #{nfnet_forward.8} parent=5 // pred_region
      %s1502 = ssub.s32 %s9, 2
      // Predicated region
      $region41: #{nfnet_forward.8} parent=39 // pred_check
        %p1503 = pneg %p106
      $region42: #{nfnet_forward.8} parent=39 // pred_check_branch
        %1505 = sbr.rel (%p1503) target = $region44
      $region43: #{nfnet_forward.8} parent=39 // pred_region
        %p1506 = scmp.lt.s32.totalorder %s15, 1
        %s1507 = scalar_select %p1506, %s15, 1
        %s1508 = smul.addr %s1507, 8
        %s1509 = smul.addr %s1508, 4
        %s1510 = scalar_lea.vmem %s3, %s1509
      $region44: #{nfnet_forward.8} parent=39 // pred_fallthru
        _
    $region40: #{nfnet_forward.8} parent=5 // pred_fallthru
      _
  $region6: #{nfnet_forward.8} parent=0 // loop_footer
    %s13 = sadd.s32 1, %s9
  $region7: #{nfnet_forward.8} parent=0 // loop_footer_branch
    %8 = sbr.rel target = $region3
  $region8: #{nfnet_forward.8} parent=0 // loop_exit
    _

// kernel: nfnet_forward.10
$region0: #{nfnet_forward.10}
  #allocation0 [shape = 'u32[]', space=smem, size = 0x4, offset = 0x4, fixed_abs, tag = 'smem constant byte address 0x4 - core index']
  #allocation1 [shape = 'u32[72,128]{1,0:T(1,128)}', space=vmem, size = 0x9000, scoped, tag = 'internal scratch']
  %s0 = inlined_call_operand.vmem [shape: f32[2,128], index: 0, kind: input, shape index: {}]
  %s1 = inlined_call_operand.vmem [shape: f32[128,64], index: 1, kind: input, shape index: {}]
  %s2 = inlined_call_operand.vmem [shape: f32[1,64], index: 2, kind: input, shape index: {}]
  %s3 = inlined_call_operand.vmem [shape: f32[64,128], index: 3, kind: input, shape index: {}]
  %s4 = inlined_call_operand.vmem [shape: f32[1,128], index: 4, kind: input, shape index: {}]
  %s5 = inlined_call_operand.vmem [shape: f32[2,128], index: 5, kind: output, shape index: {}]
  %s6 = sld [smem:[#allocation0]]
  $region30: #{nfnet_forward.10} parent=0
    _
  %s8 = ssub.s32 1, %s6
  %s9 = scalar_select 0, %s8, %s6
  // Predicated region
  $region2: #{nfnet_forward.10} parent=0 // pred_check
    _
  $region3: #{nfnet_forward.10} parent=0 // pred_check_branch
    %11 = sbr.rel (0) target = $region5
  $region4: #{nfnet_forward.10} parent=0 // pred_region
    _
  $region5: #{nfnet_forward.10} parent=0 // pred_fallthru
    _
  // Predicated region
  $region6: #{nfnet_forward.10} parent=0 // pred_check
    _
  $region7: #{nfnet_forward.10} parent=0 // pred_check_branch
    %13 = sbr.rel (0) target = $region9
  $region8: #{nfnet_forward.10} parent=0 // pred_region
    _
  $region9: #{nfnet_forward.10} parent=0 // pred_fallthru
    _
  // Predicated region
  $region10: #{nfnet_forward.10} parent=0 // pred_check
    _
  $region11: #{nfnet_forward.10} parent=0 // pred_check_branch
    %15 = sbr.rel (0) target = $region13
  $region12: #{nfnet_forward.10} parent=0 // pred_region
    _
  $region13: #{nfnet_forward.10} parent=0 // pred_fallthru
    _
  // Predicated region
  $region14: #{nfnet_forward.10} parent=0 // pred_check
    _
  $region15: #{nfnet_forward.10} parent=0 // pred_check_branch
    %17 = sbr.rel (0) target = $region17
  $region16: #{nfnet_forward.10} parent=0 // pred_region
    _
  $region17: #{nfnet_forward.10} parent=0 // pred_fallthru
    _
  // Predicated region
  $region18: #{nfnet_forward.10} parent=0 // pred_check
    _
  $region19: #{nfnet_forward.10} parent=0 // pred_check_branch
    %19 = sbr.rel (0) target = $region21
  $region20: #{nfnet_forward.10} parent=0 // pred_region
    _
  $region21: #{nfnet_forward.10} parent=0 // pred_fallthru
    _
  %v20 = vld [vmem:[%s0] sm:$0x3]
  %v21 = vmul.f32 %v20, 0.015625
  %v22 = vld [vmem:[%s1] sm:$0xff]
  %v23 = vld [vmem:[%s1 + $0x8] sm:$0xff]
  %v24 = vld [vmem:[%s1 + $0x10] sm:$0xff]
  %v25 = vld [vmem:[%s1 + $0x18] sm:$0xff]
  %v26 = vld [vmem:[%s1 + $0x20] sm:$0xff]
  %v27 = vld [vmem:[%s1 + $0x28] sm:$0xff]
  %v28 = vld [vmem:[%s1 + $0x30] sm:$0xff]
  %v29 = vld [vmem:[%s1 + $0x38] sm:$0xff]
  %v30 = vld [vmem:[%s1 + $0x40] sm:$0xff]
  %v31 = vld [vmem:[%s1 + $0x48] sm:$0xff]
  %v32 = vld [vmem:[%s1 + $0x50] sm:$0xff]
  %v33 = vld [vmem:[%s1 + $0x58] sm:$0xff]
  %v34 = vld [vmem:[%s1 + $0x60] sm:$0xff]
  %v35 = vld [vmem:[%s1 + $0x68] sm:$0xff]
  %v36 = vld [vmem:[%s1 + $0x70] sm:$0xff]
  %v37 = vld [vmem:[%s1 + $0x78] sm:$0xff]
  %v38 = vld [vmem:[%s2] sm:$0x1]
  %v40 = vperm.slane %v38, 0
  %42 = vmatpush.msra.mxu0 %v37
  %43 = vmatpush.msra.mxu0 %v36
  %44 = vmatpush.msra.mxu0 %v35
  %45 = vmatpush.msra.mxu0 %v34
  %46 = vmatpush.msra.mxu0 %v33
  %47 = vmatpush.msra.mxu0 %v32
  %48 = vmatpush.msra.mxu0 %v31
  %49 = vmatpush.msra.mxu0 %v30
  %50 = vmatpush.msra.mxu0 %v29
  %51 = vmatpush.msra.mxu0 %v28
  %52 = vmatpush.msra.mxu0 %v27
  %53 = vmatpush.msra.mxu0 %v26
  %54 = vmatpush.msra.mxu0 %v25
  %55 = vmatpush.msra.mxu0 %v24
  %56 = vmatpush.msra.mxu0 %v23
  %57 = vmatpush.msra.mxu0 %v22
  %58 = vmatmul.f32.gmra.mxu0 %v21
  %v59 = vpop.f32.mrf.mxu0
  %v60 = vadd.f32 %v40, %v59
  %61 = vdwg.mxu0
  %v62 = vmax.f32 %v60, 0.0
  %v63 = vld [vmem:[%s3] sm:$0xff]
  %v64 = vld [vmem:[%s3 + $0x8] sm:$0xff]
  %v65 = vld [vmem:[%s3 + $0x10] sm:$0xff]
  %v66 = vld [vmem:[%s3 + $0x18] sm:$0xff]
  %v67 = vld [vmem:[%s3 + $0x20] sm:$0xff]
  %v68 = vld [vmem:[%s3 + $0x28] sm:$0xff]
  %v69 = vld [vmem:[%s3 + $0x30] sm:$0xff]
  %v70 = vld [vmem:[%s3 + $0x38] sm:$0xff]
  %v71 = vld [vmem:[%s4] sm:$0x1]
  %v73 = vperm.slane %v71, 0
  %vm75 = vcmask 523264
  %v77 = vsel %vm75, %v62, 0
  %79 = vmatpush.msra.mxu0 0.0
  %80 = vmatpush.msra.mxu0 0.0
  %81 = vmatpush.msra.mxu0 0.0
  %82 = vmatpush.msra.mxu0 0.0
  %83 = vmatpush.msra.mxu0 0.0
  %84 = vmatpush.msra.mxu0 0.0
  %85 = vmatpush.msra.mxu0 0.0
  %86 = vmatpush.msra.mxu0 0.0
  %87 = vmatpush.msra.mxu0 %v70
  %88 = vmatpush.msra.mxu0 %v69
  %89 = vmatpush.msra.mxu0 %v68
  %90 = vmatpush.msra.mxu0 %v67
  %91 = vmatpush.msra.mxu0 %v66
  %92 = vmatpush.msra.mxu0 %v65
  %93 = vmatpush.msra.mxu0 %v64
  %94 = vmatpush.msra.mxu0 %v63
  %95 = vmatmul.f32.gmra.mxu0 %v77
  %v96 = vpop.f32.mrf.mxu0
  %v97 = vadd.f32 %v73, %v96
  %98 = vdwg.mxu0
  %v99 = vxor.u32 %v97, 2147483648
  %v100 = vmul.f32 %v99, 1.442695
  %v101 = vpow.pop %v100
  %v102 = vadd.f32 %v101, 1.0
  %v103 = vrcp.pop %v102
  %v104 = vmul.f32 %v102, %v103
  %v105 = vsub.f32 1.0, %v104
  %v106 = vmul.f32 %v103, %v105
  %v107 = vadd.f32 %v103, %v106
  %vm108 = vweird.f32 %v102
  %vm109 = vweird.f32 %v103
  %vm110 = vmor %vm108, %vm109
  %v111 = vsel %vm110, %v103, %v107
  %v112 = vand.u32 2147483647, %v102
  %vm113 = vcmp.eq.f32.partialorder %v112, 8.507059e+37
  %v114 = vand.u32 %v102, 2147483648
  %v115 = vor.u32 1.1754944e-38, %v114
  %v116 = vsel %vm113, %v115, %v111
  %v117 = vmul.f32 1.0, %v116
  %v118 = vmul.f32 %v117, 0.4
  %119 = vst [vmem:[%s5] sm:$0x3] %v118
  // Predicated region
  $region22: #{nfnet_forward.10} parent=0 // pred_check
    _
  $region23: #{nfnet_forward.10} parent=0 // pred_check_branch
    %121 = sbr.rel (0) target = $region25
  $region24: #{nfnet_forward.10} parent=0 // pred_region
    _
  $region25: #{nfnet_forward.10} parent=0 // pred_fallthru
    _
  // Predicated region
  $region26: #{nfnet_forward.10} parent=0 // pred_check
    _
  $region27: #{nfnet_forward.10} parent=0 // pred_check_branch
    %123 = sbr.rel (0) target = $region29
  $region28: #{nfnet_forward.10} parent=0 // pred_region
    _
  $region29: #{nfnet_forward.10} parent=0 // pred_fallthru
    _

// kernel: nfnet_forward.11
$region0: #{nfnet_forward.11}
  #allocation0 [shape = 'u32[]', space=smem, size = 0x4, offset = 0x4, fixed_abs, tag = 'smem constant byte address 0x4 - core index']
  #allocation1 [shape = 'u32[72,128]{1,0:T(1,128)}', space=vmem, size = 0x9000, scoped, tag = 'internal scratch']
  #allocation2 [shape = 'f32[1,256]{1,0:T(1,128)}', space=vmem, size = 0x400, scoped, tag = 'scratch operand']
  %s0 = inlined_call_operand.vmem [shape: bf16[2,64,128], index: 0, kind: input, shape index: {}]
  %s1 = inlined_call_operand.vmem [shape: bf16[2,64,128], index: 1, kind: input, shape index: {}]
  %s2 = inlined_call_operand.vmem [shape: f32[2,1,128], index: 2, kind: input, shape index: {}]
  %s3 = inlined_call_operand.vmem [shape: bf16[128,256], index: 3, kind: input, shape index: {}]
  %s4 = inlined_call_operand.vmem [shape: f32[1,256], index: 4, kind: input, shape index: {}]
  %s5 = inlined_call_operand.vmem [shape: bf16[256,128], index: 5, kind: input, shape index: {}]
  %s6 = inlined_call_operand.vmem [shape: f32[1,128], index: 6, kind: input, shape index: {}]
  %s7 = inlined_call_operand.hbm [shape: f32[2,1,128], index: 7, kind: output, shape index: {}]
  %s8 = sld [smem:[#allocation0]]
  $region73: #{nfnet_forward.11} parent=0
    _
  %s10 = ssub.s32 1, %s8
  %s11 = scalar_select 0, %s10, %s8
  $region1: #{nfnet_forward.11} parent=0
    #allocation3 [shape = 'u8[1024]{0}', space=vmem, size = 0x400, scoped, tag = 'output window, operand 0']
    #allocation4 [shape = 's32[2]{0}', space=sflag, size = 0x8, scoped, tag = 'scoped memory for nfnet_forward.11']
    %12 = vsyncpa [#allocation4], 0
    %s13 = scalar_lea.sflag [#allocation4], 1
    %14 = vsyncpa %s13, 0
    loop: start=0, step=1, limit=4
    $region2: #{nfnet_forward.11} parent=1 // loop_pre_header
      _
    $region3: #{nfnet_forward.11} parent=1 // loop_header
      %s16 = sphi 0, %s20
      %p17 = scmp.ge.s32.totalorder %s16, 4
      %s23 = sphi 0, %s35
      %s24 = sphi 0, %s31
      %s25 = sphi 0, %s23
      %s26 = sphi 0, %s24
      %s27 = sphi 0, %s25
      %s28 = sphi 0, %s26
      %s40 = sphi 0, %s42
      %s43 = sphi 0, %s40
      %s44 = sphi 0, %s43
      %s60 = sphi 0, %s44
      %s68 = sphi 0, %s70
      %s71 = sphi 0, %s68
      %s72 = sphi 0, %s71
      %s88 = sphi 0, %s72
      %s94 = sphi 0, %s96
      %s97 = sphi 0, %s94
      %s98 = sphi 0, %s97
      %s114 = sphi 0, %s98
      %s118 = sphi 0, %s118
      %s120 = sphi 0, %s118
      %s121 = sphi 0, %s120
      %s135 = sphi 0, %s121
      %s139 = sphi 0, %s139
      %s141 = sphi 0, %s139
      %s142 = sphi 0, %s141
      %s156 = sphi 0, %s142
      %s160 = sphi 0, %s160
      %s162 = sphi 0, %s160
      %s163 = sphi 0, %s162
      %s177 = sphi 0, %s163
      %s181 = sphi 0, %s181
      %s183 = sphi 0, %s181
      %s184 = sphi 0, %s183
      %s198 = sphi 0, %s184
      %s204 = sphi 0, %s206
      %s207 = sphi 0, %s204
      %s208 = sphi 0, %s207
      %s224 = sphi 0, %s208
    $region4: #{nfnet_forward.11} parent=1 // loop_header_branch
      %19 = sbr.rel (%p17) target = $region8
    $region5: #{nfnet_forward.11} parent=1 // loop_body
      %s21 = ssub.s32 %s16, 1
      %s22 = ssub.s32 %s16, 2
      %s29 = sadd.s32 1, %s24
      %p30 = scmp.ge.s32.totalorder %s29, 1
      %s31 = scalar_select %p30, 0, %s29
      %s32 = sadd.s32 1, %s23
      %s33 = scalar_select %p30, %s32, %s23
      %p34 = scmp.ge.s32.totalorder %s33, 2
      %s35 = scalar_select %p34, 0, %s33
      %s36 = ssub.s32 %s23, %s35
      %s37 = ssub.s32 %s24, %s31
      %s38 = sor.u32 %s36, %s37
      %p39 = scmp.eq.s32.totalorder %s38, 0
      %s41 = sadd.s32 %s40, 1
      %s42 = scalar_select %p39, %s40, %s41
      %p45 = pneg %p39
      %p46 = scmp.eq.s32.totalorder %s16, 1
      %p47 = por %p45, %p46
      %p48 = scmp.ne.s32.totalorder %s40, %s43
      %p49 = scmp.eq.s32.totalorder %s16, 0
      %p50 = por %p48, %p49
      %p51 = scmp.ne.s32.totalorder %s40, %s43
      %p52 = scmp.eq.s32.totalorder %s21, 1
      %p53 = por %p51, %p52
      %p54 = scmp.ne.s32.totalorder %s43, %s44
      %p55 = scmp.eq.s32.totalorder %s21, 0
      %p56 = por %p54, %p55
      %p57 = scmp.ne.s32.totalorder %s43, %s44
      %p58 = scmp.eq.s32.totalorder %s22, 1
      %p59 = por %p57, %p58
      %p61 = scmp.ne.s32.totalorder %s44, %s60
      %p62 = scmp.eq.s32.totalorder %s22, 0
      %p63 = por %p61, %p62
      %s64 = ssub.s32 %s23, %s35
      %s65 = ssub.s32 %s24, %s31
      %s66 = sor.u32 %s64, %s65
      %p67 = scmp.eq.s32.totalorder %s66, 0
      %s69 = sadd.s32 %s68, 1
      %s70 = scalar_select %p67, %s68, %s69
      %p73 = pneg %p67
      %p74 = scmp.eq.s32.totalorder %s16, 1
      %p75 = por %p73, %p74
      %p76 = scmp.ne.s32.totalorder %s68, %s71
      %p77 = scmp.eq.s32.totalorder %s16, 0
      %p78 = por %p76, %p77
      %p79 = scmp.ne.s32.totalorder %s68, %s71
      %p80 = scmp.eq.s32.totalorder %s21, 1
      %p81 = por %p79, %p80
      %p82 = scmp.ne.s32.totalorder %s71, %s72
      %p83 = scmp.eq.s32.totalorder %s21, 0
      %p84 = por %p82, %p83
      %p85 = scmp.ne.s32.totalorder %s71, %s72
      %p86 = scmp.eq.s32.totalorder %s22, 1
      %p87 = por %p85, %p86
      %p89 = scmp.ne.s32.totalorder %s72, %s88
      %p90 = scmp.eq.s32.totalorder %s22, 0
      %p91 = por %p89, %p90
      %s92 = ssub.s32 %s23, %s35
      %p93 = scmp.eq.s32.totalorder %s92, 0
      %s95 = sadd.s32 %s94, 1
      %s96 = scalar_select %p93, %s94, %s95
      %p99 = pneg %p93
      %p100 = scmp.eq.s32.totalorder %s16, 1
      %p101 = por %p99, %p100
      %p102 = scmp.ne.s32.totalorder %s94, %s97
      %p103 = scmp.eq.s32.totalorder %s16, 0
      %p104 = por %p102, %p103
      %p105 = scmp.ne.s32.totalorder %s94, %s97
      %p106 = scmp.eq.s32.totalorder %s21, 1
      %p107 = por %p105, %p106
      %p108 = scmp.ne.s32.totalorder %s97, %s98
      %p109 = scmp.eq.s32.totalorder %s21, 0
      %p110 = por %p108, %p109
      %p111 = scmp.ne.s32.totalorder %s97, %s98
      %p112 = scmp.eq.s32.totalorder %s22, 1
      %p113 = por %p111, %p112
      %p115 = scmp.ne.s32.totalorder %s98, %s114
      %p116 = scmp.eq.s32.totalorder %s22, 0
      %p117 = por %p115, %p116
      %s119 = sadd.s32 %s118, 1
      %p122 = scmp.eq.s32.totalorder %s16, 1
      %p123 = scmp.ne.s32.totalorder %s118, %s120
      %p124 = scmp.eq.s32.totalorder %s16, 0
      %p125 = por %p123, %p124
      %p126 = scmp.ne.s32.totalorder %s118, %s120
      %p127 = scmp.eq.s32.totalorder %s21, 1
      %p128 = por %p126, %p127
      %p129 = scmp.ne.s32.totalorder %s120, %s121
      %p130 = scmp.eq.s32.totalorder %s21, 0
      %p131 = por %p129, %p130
      %p132 = scmp.ne.s32.totalorder %s120, %s121
      %p133 = scmp.eq.s32.totalorder %s22, 1
      %p134 = por %p132, %p133
      %p136 = scmp.ne.s32.totalorder %s121, %s135
      %p137 = scmp.eq.s32.totalorder %s22, 0
      %p138 = por %p136, %p137
      %s140 = sadd.s32 %s139, 1
      %p143 = scmp.eq.s32.totalorder %s16, 1
      %p144 = scmp.ne.s32.totalorder %s139, %s141
      %p145 = scmp.eq.s32.totalorder %s16, 0
      %p146 = por %p144, %p145
      %p147 = scmp.ne.s32.totalorder %s139, %s141
      %p148 = scmp.eq.s32.totalorder %s21, 1
      %p149 = por %p147, %p148
      %p150 = scmp.ne.s32.totalorder %s141, %s142
      %p151 = scmp.eq.s32.totalorder %s21, 0
      %p152 = por %p150, %p151
      %p153 = scmp.ne.s32.totalorder %s141, %s142
      %p154 = scmp.eq.s32.totalorder %s22, 1
      %p155 = por %p153, %p154
      %p157 = scmp.ne.s32.totalorder %s142, %s156
      %p158 = scmp.eq.s32.totalorder %s22, 0
      %p159 = por %p157, %p158
      %s161 = sadd.s32 %s160, 1
      %p164 = scmp.eq.s32.totalorder %s16, 1
      %p165 = scmp.ne.s32.totalorder %s160, %s162
      %p166 = scmp.eq.s32.totalorder %s16, 0
      %p167 = por %p165, %p166
      %p168 = scmp.ne.s32.totalorder %s160, %s162
      %p169 = scmp.eq.s32.totalorder %s21, 1
      %p170 = por %p168, %p169
      %p171 = scmp.ne.s32.totalorder %s162, %s163
      %p172 = scmp.eq.s32.totalorder %s21, 0
      %p173 = por %p171, %p172
      %p174 = scmp.ne.s32.totalorder %s162, %s163
      %p175 = scmp.eq.s32.totalorder %s22, 1
      %p176 = por %p174, %p175
      %p178 = scmp.ne.s32.totalorder %s163, %s177
      %p179 = scmp.eq.s32.totalorder %s22, 0
      %p180 = por %p178, %p179
      %s182 = sadd.s32 %s181, 1
      %p185 = scmp.eq.s32.totalorder %s16, 1
      %p186 = scmp.ne.s32.totalorder %s181, %s183
      %p187 = scmp.eq.s32.totalorder %s16, 0
      %p188 = por %p186, %p187
      %p189 = scmp.ne.s32.totalorder %s181, %s183
      %p190 = scmp.eq.s32.totalorder %s21, 1
      %p191 = por %p189, %p190
      %p192 = scmp.ne.s32.totalorder %s183, %s184
      %p193 = scmp.eq.s32.totalorder %s21, 0
      %p194 = por %p192, %p193
      %p195 = scmp.ne.s32.totalorder %s183, %s184
      %p196 = scmp.eq.s32.totalorder %s22, 1
      %p197 = por %p195, %p196
      %p199 = scmp.ne.s32.totalorder %s184, %s198
      %p200 = scmp.eq.s32.totalorder %s22, 0
      %p201 = por %p199, %p200
      %s202 = ssub.s32 %s23, %s35
      %p203 = scmp.eq.s32.totalorder %s202, 0
      %s205 = sadd.s32 %s204, 1
      %s206 = scalar_select %p203, %s204, %s205
      %p209 = pneg %p203
      %p210 = scmp.eq.s32.totalorder %s16, 1
      %p211 = por %p209, %p210
      %p212 = scmp.ne.s32.totalorder %s204, %s207
      %p213 = scmp.eq.s32.totalorder %s16, 0
      %p214 = por %p212, %p213
      %p215 = scmp.ne.s32.totalorder %s204, %s207
      %p216 = scmp.eq.s32.totalorder %s21, 1
      %p217 = por %p215, %p216
      %p218 = scmp.ne.s32.totalorder %s207, %s208
      %p219 = scmp.eq.s32.totalorder %s21, 0
      %p220 = por %p218, %p219
      %p221 = scmp.ne.s32.totalorder %s207, %s208
      %p222 = scmp.eq.s32.totalorder %s22, 1
      %p223 = por %p221, %p222
      %p225 = scmp.ne.s32.totalorder %s208, %s224
      %p226 = scmp.eq.s32.totalorder %s22, 0
      %p227 = por %p225, %p226
      %p228 = scmp.le.s32.totalorder 1, %s16
      %p229 = scmp.lt.s32.totalorder %s16, 3
      %p230 = pnand %p228, %p229
      %p231 = pneg %p230
      // Predicated region
      $region9: #{nfnet_forward.11} parent=5 // pred_check
        _
      $region10: #{nfnet_forward.11} parent=5 // pred_check_branch
        %233 = sbr.rel (%p230) target = $region12
      $region11: #{nfnet_forward.11} parent=5 // pred_region
        %s234 = ssub.s32 %s16, 1
        // Predicated region
        $region13: #{nfnet_forward.11} parent=11 // pred_check
          %p235 = pneg %p131
        $region14: #{nfnet_forward.11} parent=11 // pred_check_branch
          %237 = sbr.rel (%p235) target = $region16
        $region15: #{nfnet_forward.11} parent=11 // pred_region
          _
        $region16: #{nfnet_forward.11} parent=11 // pred_fallthru
          _
        // Predicated region
        $region17: #{nfnet_forward.11} parent=11 // pred_check
          %p238 = pneg %p152
        $region18: #{nfnet_forward.11} parent=11 // pred_check_branch
          %240 = sbr.rel (%p238) target = $region20
        $region19: #{nfnet_forward.11} parent=11 // pred_region
          _
        $region20: #{nfnet_forward.11} parent=11 // pred_fallthru
          _
        // Predicated region
        $region21: #{nfnet_forward.11} parent=11 // pred_check
          %p241 = pneg %p173
        $region22: #{nfnet_forward.11} parent=11 // pred_check_branch
          %243 = sbr.rel (%p241) target = $region24
        $region23: #{nfnet_forward.11} parent=11 // pred_region
          _
        $region24: #{nfnet_forward.11} parent=11 // pred_fallthru
          _
        // Predicated region
        $region25: #{nfnet_forward.11} parent=11 // pred_check
          %p244 = pneg %p194
        $region26: #{nfnet_forward.11} parent=11 // pred_check_branch
          %246 = sbr.rel (%p244) target = $region28
        $region27: #{nfnet_forward.11} parent=11 // pred_region
          _
        $region28: #{nfnet_forward.11} parent=11 // pred_fallthru
          _
      $region12: #{nfnet_forward.11} parent=5 // pred_fallthru
        _
      %p247 = scmp.lt.s32.totalorder %s16, 2
      // Predicated region
      $region29: #{nfnet_forward.11} parent=5 // pred_check
        %p248 = pneg %p247
      $region30: #{nfnet_forward.11} parent=5 // pred_check_branch
        %250 = sbr.rel (%p248) target = $region32
      $region31: #{nfnet_forward.11} parent=5 // pred_region
        // Predicated region
        $region33: #{nfnet_forward.11} parent=31 // pred_check
          %p251 = pneg %p50
        $region34: #{nfnet_forward.11} parent=31 // pred_check_branch
          %253 = sbr.rel (%p251) target = $region36
        $region35: #{nfnet_forward.11} parent=31 // pred_region
          %s254 = smul.u32 8, %s24
          %p255 = scmp.lt.s32.totalorder %s23, 1
          %s256 = scalar_select %p255, %s23, 1
          %p257 = scmp.lt.s32.totalorder %s254, 7
          %s258 = scalar_select %p257, %s254, 7
          %s259 = smul.addr %s256, 8
          %s260 = sadd.s32 %s258, %s259
          %s261 = smul.addr %s260, 4
          %s262 = scalar_lea.vmem %s0, %s261
          %s263 = smul.u32 8, %s24
        $region36: #{nfnet_forward.11} parent=31 // pred_fallthru
          _
        // Predicated region
        $region37: #{nfnet_forward.11} parent=31 // pred_check
          %p264 = pneg %p78
        $region38: #{nfnet_forward.11} parent=31 // pred_check_branch
          %266 = sbr.rel (%p264) target = $region40
        $region39: #{nfnet_forward.11} parent=31 // pred_region
          %s267 = smul.u32 8, %s24
          %p268 = scmp.lt.s32.totalorder %s23, 1
          %s269 = scalar_select %p268, %s23, 1
          %p270 = scmp.lt.s32.totalorder %s267, 7
          %s271 = scalar_select %p270, %s267, 7
          %s272 = smul.addr %s269, 8
          %s273 = sadd.s32 %s271, %s272
          %s274 = smul.addr %s273, 4
          %s275 = scalar_lea.vmem %s1, %s274
          %s276 = smul.u32 8, %s24
        $region40: #{nfnet_forward.11} parent=31 // pred_fallthru
          _
        // Predicated region
        $region41: #{nfnet_forward.11} parent=31 // pred_check
          %p277 = pneg %p104
        $region42: #{nfnet_forward.11} parent=31 // pred_check_branch
          %279 = sbr.rel (%p277) target = $region44
        $region43: #{nfnet_forward.11} parent=31 // pred_region
          %p280 = scmp.lt.s32.totalorder %s23, 1
          %s281 = scalar_select %p280, %s23, 1
          %s282 = scalar_lea.vmem %s2, %s281
        $region44: #{nfnet_forward.11} parent=31 // pred_fallthru
          _
      $region32: #{nfnet_forward.11} parent=5 // pred_fallthru
        _
      %p283 = scmp.le.s32.totalorder 1, %s16
      %p284 = scmp.lt.s32.totalorder %s16, 3
      %p285 = pnand %p283, %p284
      %p286 = pneg %p285
      // Predicated region
      $region45: #{nfnet_forward.11} parent=5 // pred_check
        _
      $region46: #{nfnet_forward.11} parent=5 // pred_check_branch
        %288 = sbr.rel (%p285) target = $region48
      $region47: #{nfnet_forward.11} parent=5 // pred_region
        %s289 = ssub.s32 %s16, 1
        %s290 = smul.u32 8, %s26
        %p291 = scmp.lt.s32.totalorder %s25, 1
        %s292 = scalar_select %p291, %s25, 1
        %p293 = scmp.lt.s32.totalorder %s290, 7
        %s294 = scalar_select %p293, %s290, 7
        %s295 = smul.addr %s292, 8
        %s296 = sadd.s32 %s294, %s295
        %s297 = smul.addr %s296, 4
        %s298 = scalar_lea.vmem %s0, %s297
        %p299 = pneg %p56
        %p300 = pneg %p53
        %s301 = smul.u32 8, %s26
        %p302 = scmp.lt.s32.totalorder %s25, 1
        %s303 = scalar_select %p302, %s25, 1
        %p304 = scmp.lt.s32.totalorder %s301, 7
        %s305 = scalar_select %p304, %s301, 7
        %s306 = smul.addr %s303, 8
        %s307 = sadd.s32 %s305, %s306
        %s308 = smul.addr %s307, 4
        %s309 = scalar_lea.vmem %s1, %s308
        %p310 = pneg %p84
        %p311 = pneg %p81
        %p312 = scmp.lt.s32.totalorder %s25, 1
        %s313 = scalar_select %p312, %s25, 1
        %s314 = scalar_lea.vmem %s2, %s313
        %p315 = pneg %p110
        %p316 = pneg %p107
        %p317 = pneg %p131
        %p318 = pneg %p128
        %p319 = pneg %p152
        %p320 = pneg %p149
        %p321 = pneg %p173
        %p322 = pneg %p170
        %p323 = pneg %p194
        %p324 = pneg %p191
        %p325 = pneg %p220
        %p326 = pneg %p217
        %s327 = sand.u32 %s207, 1
        %s328 = scalar_lea.sflag [#allocation4], %s327
        %s329 = sand.u32 %s207, 1
        %s330 = scalar_lea.vmem [#allocation3], %s329
        %s331 = smul.u32 8, %s26
        %p332 = scmp.lt.s32.totalorder %s25, 1
        %s333 = scalar_select %p332, %s25, 1
        %p334 = scmp.lt.s32.totalorder %s331, 7
        %s335 = scalar_select %p334, %s331, 7
        %s336 = smul.addr %s333, 8
        %s337 = sadd.s32 %s335, %s336
        %s338 = smul.addr %s337, 4
        %s339 = scalar_lea.vmem %s0, %s338
        %s340 = smul.u32 8, %s26
        %s341 = smul.u32 8, %s26
        %p342 = scmp.lt.s32.totalorder %s25, 1
        %s343 = scalar_select %p342, %s25, 1
        %p344 = scmp.lt.s32.totalorder %s341, 7
        %s345 = scalar_select %p344, %s341, 7
        %s346 = smul.addr %s343, 8
        %s347 = sadd.s32 %s345, %s346
        %s348 = smul.addr %s347, 4
        %s349 = scalar_lea.vmem %s1, %s348
        %s350 = smul.u32 8, %s26
        %p351 = scmp.lt.s32.totalorder %s25, 1
        %s352 = scalar_select %p351, %s25, 1
        %s353 = scalar_lea.vmem %s2, %s352
        %v354 = vld [vmem:[%s339] sm:$0xf]
        %v355 = vld [vmem:[%s339 + $0x4] sm:$0xf]
        %v356 = vld [vmem:[%s339 + $0x8] sm:$0xf]
        %v357 = vld [vmem:[%s339 + $0xc] sm:$0xf]
        %v358 = vld [vmem:[%s339 + $0x10] sm:$0xf]
        %v359 = vld [vmem:[%s339 + $0x14] sm:$0xf]
        %v360 = vld [vmem:[%s339 + $0x18] sm:$0xf]
        %v361 = vld [vmem:[%s339 + $0x1c] sm:$0xf]
        %v362 = vunpack.c.l.bf16 %v354
        %v363 = vunpack.c.l.bf16 %v355
        %v364 = vunpack.c.l.bf16 %v356
        %v365 = vunpack.c.l.bf16 %v357
        %v366 = vunpack.c.l.bf16 %v358
        %v367 = vunpack.c.l.bf16 %v359
        %v368 = vunpack.c.l.bf16 %v360
        %v369 = vunpack.c.l.bf16 %v361
        %v370 = vld [vmem:[%s349] sm:$0xf]
        %v371 = vld [vmem:[%s349 + $0x4] sm:$0xf]
        %v372 = vld [vmem:[%s349 + $0x8] sm:$0xf]
        %v373 = vld [vmem:[%s349 + $0xc] sm:$0xf]
        %v374 = vld [vmem:[%s349 + $0x10] sm:$0xf]
        %v375 = vld [vmem:[%s349 + $0x14] sm:$0xf]
        %v376 = vld [vmem:[%s349 + $0x18] sm:$0xf]
        %v377 = vld [vmem:[%s349 + $0x1c] sm:$0xf]
        %v378 = vunpack.c.l.bf16 %v370
        %v379 = vunpack.c.l.bf16 %v371
        %v380 = vunpack.c.l.bf16 %v372
        %v381 = vunpack.c.l.bf16 %v373
        %v382 = vunpack.c.l.bf16 %v374
        %v383 = vunpack.c.l.bf16 %v375
        %v384 = vunpack.c.l.bf16 %v376
        %v385 = vunpack.c.l.bf16 %v377
        %v386 = vld [vmem:[%s353] sm:$0x1]
        %v388 = vperm.slane %v386, 0
        %v390 = vmul.f32 %v362, %v388
        %v391 = vmul.f32 %v363, %v388
        %v392 = vmul.f32 %v364, %v388
        %v393 = vmul.f32 %v365, %v388
        %v394 = vmul.f32 %v366, %v388
        %v395 = vmul.f32 %v367, %v388
        %v396 = vmul.f32 %v368, %v388
        %v397 = vmul.f32 %v369, %v388
        %v398 = vadd.f32 %v390, %v378
        %v399 = vadd.f32 %v391, %v379
        %v400 = vadd.f32 %v392, %v380
        %v401 = vadd.f32 %v393, %v381
        %v402 = vadd.f32 %v394, %v382
        %v403 = vadd.f32 %v395, %v383
        %v404 = vadd.f32 %v396, %v384
        %v405 = vadd.f32 %v397, %v385
        %v406 = vpack.c.bf16 %v399, %v398
        %v407 = vpack.c.bf16 %v401, %v400
        %v408 = vpack.c.bf16 %v403, %v402
        %v409 = vpack.c.bf16 %v405, %v404
        %v410 = vld [vmem:[%s3] sm:$0xff]
        %v411 = vld [vmem:[%s3 + $0x8] sm:$0xff]
        %v412 = vld [vmem:[%s3 + $0x10] sm:$0xff]
        %v413 = vld [vmem:[%s3 + $0x18] sm:$0xff]
        %v414 = vld [vmem:[%s3 + $0x20] sm:$0xff]
        %v415 = vld [vmem:[%s3 + $0x28] sm:$0xff]
        %v416 = vld [vmem:[%s3 + $0x30] sm:$0xff]
        %v417 = vld [vmem:[%s3 + $0x38] sm:$0xff]
        %v418 = vld [vmem:[%s3 + $0x40] sm:$0xff]
        %v419 = vld [vmem:[%s3 + $0x48] sm:$0xff]
        %v420 = vld [vmem:[%s3 + $0x50] sm:$0xff]
        %v421 = vld [vmem:[%s3 + $0x58] sm:$0xff]
        %v422 = vld [vmem:[%s3 + $0x60] sm:$0xff]
        %v423 = vld [vmem:[%s3 + $0x68] sm:$0xff]
        %v424 = vld [vmem:[%s3 + $0x70] sm:$0xff]
        %v425 = vld [vmem:[%s3 + $0x78] sm:$0xff]
        %v426 = vld [vmem:[%s4] sm:$0x3]
        %v428 = vperm.slane %v426, 0
        %v429 = vperm.slane %v426, 1
        %v448 = vunpack.c.l.b16 %v410
        %v449 = vunpack.c.h.b16 %v410
        %v450 = vunpack.c.l.b16 %v411
        %v451 = vunpack.c.h.b16 %v411
        %v452 = vunpack.c.l.b16 %v412
        %v453 = vunpack.c.h.b16 %v412
        %v454 = vunpack.c.l.b16 %v413
        %v455 = vunpack.c.h.b16 %v413
        %v456 = vunpack.c.l.b16 %v414
        %v457 = vunpack.c.h.b16 %v414
        %v458 = vunpack.c.l.b16 %v415
        %v459 = vunpack.c.h.b16 %v415
        %v460 = vunpack.c.l.b16 %v416
        %v461 = vunpack.c.h.b16 %v416
        %v462 = vunpack.c.l.b16 %v417
        %v463 = vunpack.c.h.b16 %v417
        %v464 = vunpack.c.l.b16 %v418
        %v465 = vunpack.c.h.b16 %v418
        %v466 = vunpack.c.l.b16 %v419
        %v467 = vunpack.c.h.b16 %v419
        %v468 = vunpack.c.l.b16 %v420
        %v469 = vunpack.c.h.b16 %v420
        %v470 = vunpack.c.l.b16 %v421
        %v471 = vunpack.c.h.b16 %v421
        %v472 = vunpack.c.l.b16 %v422
        %v473 = vunpack.c.h.b16 %v422
        %v474 = vunpack.c.l.b16 %v423
        %v475 = vunpack.c.h.b16 %v423
        %v476 = vunpack.c.l.b16 %v424
        %v477 = vunpack.c.h.b16 %v424
        %v478 = vunpack.c.l.b16 %v425
        %v479 = vunpack.c.h.b16 %v425
        %v480 = vpack.c.b16 %v450, %v448
        %v481 = vpack.c.b16 %v451, %v449
        %v482 = vpack.c.b16 %v454, %v452
        %v483 = vpack.c.b16 %v455, %v453
        %v484 = vpack.c.b16 %v458, %v456
        %v485 = vpack.c.b16 %v459, %v457
        %v486 = vpack.c.b16 %v462, %v460
        %v487 = vpack.c.b16 %v463, %v461
        %v488 = vpack.c.b16 %v466, %v464
        %v489 = vpack.c.b16 %v467, %v465
        %v490 = vpack.c.b16 %v470, %v468
        %v491 = vpack.c.b16 %v471, %v469
        %v492 = vpack.c.b16 %v474, %v472
        %v493 = vpack.c.b16 %v475, %v473
        %v494 = vpack.c.b16 %v478, %v476
        %v495 = vpack.c.b16 %v479, %v477
        %512 = vmatpush.bf16.msra.mxu0 %v494
        %513 = vmatpush.bf16.msra.mxu0 %v492
        %514 = vmatpush.bf16.msra.mxu0 %v490
        %515 = vmatpush.bf16.msra.mxu0 %v488
        %516 = vmatpush.bf16.msra.mxu0 %v486
        %517 = vmatpush.bf16.msra.mxu0 %v484
        %518 = vmatpush.bf16.msra.mxu0 %v482
        %519 = vmatpush.bf16.msra.mxu0 %v480
        %520 = vmatmul.bf16.gmra.mxu0 %v406
        %v521 = vpop.f32.mrf.mxu0
        %v522 = vadd.f32 %v428, %v521
        %v523 = vpop.f32.mrf.mxu0
        %v524 = vadd.f32 %v428, %v523
        %525 = vmatmul.bf16.gmra.mxu0 %v407
        %v526 = vpop.f32.mrf.mxu0
        %v527 = vadd.f32 %v428, %v526
        %v528 = vpop.f32.mrf.mxu0
        %v529 = vadd.f32 %v428, %v528
        %530 = vmatmul.bf16.gmra.mxu0 %v408
        %v531 = vpop.f32.mrf.mxu0
        %v532 = vadd.f32 %v428, %v531
        %v533 = vpop.f32.mrf.mxu0
        %v534 = vadd.f32 %v428, %v533
        %535 = vmatmul.bf16.gmra.mxu0 %v409
        %v536 = vpop.f32.mrf.mxu0
        %v537 = vadd.f32 %v428, %v536
        %v538 = vpop.f32.mrf.mxu0
        %v539 = vadd.f32 %v428, %v538
        %540 = vdwg.mxu0
        %541 = vmatpush.bf16.msra.mxu0 %v495
        %542 = vmatpush.bf16.msra.mxu0 %v493
        %543 = vmatpush.bf16.msra.mxu0 %v491
        %544 = vmatpush.bf16.msra.mxu0 %v489
        %545 = vmatpush.bf16.msra.mxu0 %v487
        %546 = vmatpush.bf16.msra.mxu0 %v485
        %547 = vmatpush.bf16.msra.mxu0 %v483
        %548 = vmatpush.bf16.msra.mxu0 %v481
        %549 = vmatmul.bf16.gmra.mxu0 %v406
        %v550 = vpop.f32.mrf.mxu0
        %v551 = vadd.f32 %v429, %v550
        %v552 = vpop.f32.mrf.mxu0
        %v553 = vadd.f32 %v429, %v552
        %554 = vmatmul.bf16.gmra.mxu0 %v407
        %v555 = vpop.f32.mrf.mxu0
        %v556 = vadd.f32 %v429, %v555
        %v557 = vpop.f32.mrf.mxu0
        %v558 = vadd.f32 %v429, %v557
        %559 = vmatmul.bf16.gmra.mxu0 %v408
        %v560 = vpop.f32.mrf.mxu0
        %v561 = vadd.f32 %v429, %v560
        %v562 = vpop.f32.mrf.mxu0
        %v563 = vadd.f32 %v429, %v562
        %564 = vmatmul.bf16.gmra.mxu0 %v409
        %v565 = vpop.f32.mrf.mxu0
        %v566 = vadd.f32 %v429, %v565
        %v567 = vpop.f32.mrf.mxu0
        %v568 = vadd.f32 %v429, %v567
        %569 = vdwg.mxu0
        %v570 = vmul.f32 %v522, %v522
        %v571 = vmul.f32 %v551, %v551
        %v572 = vmul.f32 %v524, %v524
        %v573 = vmul.f32 %v553, %v553
        %v574 = vmul.f32 %v527, %v527
        %v575 = vmul.f32 %v556, %v556
        %v576 = vmul.f32 %v529, %v529
        %v577 = vmul.f32 %v558, %v558
        %v578 = vmul.f32 %v532, %v532
        %v579 = vmul.f32 %v561, %v561
        %v580 = vmul.f32 %v534, %v534
        %v581 = vmul.f32 %v563, %v563
        %v582 = vmul.f32 %v537, %v537
        %v583 = vmul.f32 %v566, %v566
        %v584 = vmul.f32 %v539, %v539
        %v585 = vmul.f32 %v568, %v568
        %v586 = vmul.f32 %v522, %v570
        %v587 = vmul.f32 %v551, %v571
        %v588 = vmul.f32 %v524, %v572
        %v589 = vmul.f32 %v553, %v573
        %v590 = vmul.f32 %v527, %v574
        %v591 = vmul.f32 %v556, %v575
        %v592 = vmul.f32 %v529, %v576
        %v593 = vmul.f32 %v558, %v577
        %v594 = vmul.f32 %v532, %v578
        %v595 = vmul.f32 %v561, %v579
        %v596 = vmul.f32 %v534, %v580
        %v597 = vmul.f32 %v563, %v581
        %v598 = vmul.f32 %v537, %v582
        %v599 = vmul.f32 %v566, %v583
        %v600 = vmul.f32 %v539, %v584
        %v601 = vmul.f32 %v568, %v585
        %v602 = vmul.f32 %v586, 0.044715
        %v603 = vmul.f32 %v587, 0.044715
        %v604 = vmul.f32 %v588, 0.044715
        %v605 = vmul.f32 %v589, 0.044715
        %v606 = vmul.f32 %v590, 0.044715
        %v607 = vmul.f32 %v591, 0.044715
        %v608 = vmul.f32 %v592, 0.044715
        %v609 = vmul.f32 %v593, 0.044715
        %v610 = vmul.f32 %v594, 0.044715
        %v611 = vmul.f32 %v595, 0.044715
        %v612 = vmul.f32 %v596, 0.044715
        %v613 = vmul.f32 %v597, 0.044715
        %v614 = vmul.f32 %v598, 0.044715
        %v615 = vmul.f32 %v599, 0.044715
        %v616 = vmul.f32 %v600, 0.044715
        %v617 = vmul.f32 %v601, 0.044715
        %v618 = vadd.f32 %v522, %v602
        %v619 = vadd.f32 %v551, %v603
        %v620 = vadd.f32 %v524, %v604
        %v621 = vadd.f32 %v553, %v605
        %v622 = vadd.f32 %v527, %v606
        %v623 = vadd.f32 %v556, %v607
        %v624 = vadd.f32 %v529, %v608
        %v625 = vadd.f32 %v558, %v609
        %v626 = vadd.f32 %v532, %v610
        %v627 = vadd.f32 %v561, %v611
        %v628 = vadd.f32 %v534, %v612
        %v629 = vadd.f32 %v563, %v613
        %v630 = vadd.f32 %v537, %v614
        %v631 = vadd.f32 %v566, %v615
        %v632 = vadd.f32 %v539, %v616
        %v633 = vadd.f32 %v568, %v617
        %v634 = vmul.f32 %v618, 0.7978846
        %v635 = vmul.f32 %v619, 0.7978846
        %v636 = vmul.f32 %v620, 0.7978846
        %v637 = vmul.f32 %v621, 0.7978846
        %v638 = vmul.f32 %v622, 0.7978846
        %v639 = vmul.f32 %v623, 0.7978846
        %v640 = vmul.f32 %v624, 0.7978846
        %v641 = vmul.f32 %v625, 0.7978846
        %v642 = vmul.f32 %v626, 0.7978846
        %v643 = vmul.f32 %v627, 0.7978846
        %v644 = vmul.f32 %v628, 0.7978846
        %v645 = vmul.f32 %v629, 0.7978846
        %v646 = vmul.f32 %v630, 0.7978846
        %v647 = vmul.f32 %v631, 0.7978846
        %v648 = vmul.f32 %v632, 0.7978846
        %v649 = vmul.f32 %v633, 0.7978846
        %v650 = vtanh.pop %v634
        %v651 = vtanh.pop %v635
        %v652 = vtanh.pop %v636
        %v653 = vtanh.pop %v637
        %v654 = vtanh.pop %v638
        %v655 = vtanh.pop %v639
        %v656 = vtanh.pop %v640
        %v657 = vtanh.pop %v641
        %v658 = vtanh.pop %v642
        %v659 = vtanh.pop %v643
        %v660 = vtanh.pop %v644
        %v661 = vtanh.pop %v645
        %v662 = vtanh.pop %v646
        %v663 = vtanh.pop %v647
        %v664 = vtanh.pop %v648
        %v665 = vtanh.pop %v649
        %v666 = vadd.f32 %v650, 1.0
        %v667 = vadd.f32 %v651, 1.0
        %v668 = vadd.f32 %v652, 1.0
        %v669 = vadd.f32 %v653, 1.0
        %v670 = vadd.f32 %v654, 1.0
        %v671 = vadd.f32 %v655, 1.0
        %v672 = vadd.f32 %v656, 1.0
        %v673 = vadd.f32 %v657, 1.0
        %v674 = vadd.f32 %v658, 1.0
        %v675 = vadd.f32 %v659, 1.0
        %v676 = vadd.f32 %v660, 1.0
        %v677 = vadd.f32 %v661, 1.0
        %v678 = vadd.f32 %v662, 1.0
        %v679 = vadd.f32 %v663, 1.0
        %v680 = vadd.f32 %v664, 1.0
        %v681 = vadd.f32 %v665, 1.0
        %v682 = vmul.f32 %v666, 0.5
        %v683 = vmul.f32 %v667, 0.5
        %v684 = vmul.f32 %v668, 0.5
        %v685 = vmul.f32 %v669, 0.5
        %v686 = vmul.f32 %v670, 0.5
        %v687 = vmul.f32 %v671, 0.5
        %v688 = vmul.f32 %v672, 0.5
        %v689 = vmul.f32 %v673, 0.5
        %v690 = vmul.f32 %v674, 0.5
        %v691 = vmul.f32 %v675, 0.5
        %v692 = vmul.f32 %v676, 0.5
        %v693 = vmul.f32 %v677, 0.5
        %v694 = vmul.f32 %v678, 0.5
        %v695 = vmul.f32 %v679, 0.5
        %v696 = vmul.f32 %v680, 0.5
        %v697 = vmul.f32 %v681, 0.5
        %v698 = vmul.f32 %v522, %v682
        %v699 = vmul.f32 %v551, %v683
        %v700 = vmul.f32 %v524, %v684
        %v701 = vmul.f32 %v553, %v685
        %v702 = vmul.f32 %v527, %v686
        %v703 = vmul.f32 %v556, %v687
        %v704 = vmul.f32 %v529, %v688
        %v705 = vmul.f32 %v558, %v689
        %v706 = vmul.f32 %v532, %v690
        %v707 = vmul.f32 %v561, %v691
        %v708 = vmul.f32 %v534, %v692
        %v709 = vmul.f32 %v563, %v693
        %v710 = vmul.f32 %v537, %v694
        %v711 = vmul.f32 %v566, %v695
        %v712 = vmul.f32 %v539, %v696
        %v713 = vmul.f32 %v568, %v697
        %v714 = vmul.f32 %v698, 1.7015043
        %v715 = vmul.f32 %v699, 1.7015043
        %v716 = vmul.f32 %v700, 1.7015043
        %v717 = vmul.f32 %v701, 1.7015043
        %v718 = vmul.f32 %v702, 1.7015043
        %v719 = vmul.f32 %v703, 1.7015043
        %v720 = vmul.f32 %v704, 1.7015043
        %v721 = vmul.f32 %v705, 1.7015043
        %v722 = vmul.f32 %v706, 1.7015043
        %v723 = vmul.f32 %v707, 1.7015043
        %v724 = vmul.f32 %v708, 1.7015043
        %v725 = vmul.f32 %v709, 1.7015043
        %v726 = vmul.f32 %v710, 1.7015043
        %v727 = vmul.f32 %v711, 1.7015043
        %v728 = vmul.f32 %v712, 1.7015043
        %v729 = vmul.f32 %v713, 1.7015043
        %v730 = vadd.f32 %v714, %v716
        %v731 = vadd.f32 %v730, %v718
        %v732 = vadd.f32 %v731, %v720
        %v733 = vadd.f32 %v732, %v722
        %v734 = vadd.f32 %v733, %v724
        %v735 = vadd.f32 %v734, %v726
        %v736 = vadd.f32 %v735, %v728
        %v737 = vrot.slane %v736, 4
        %v738 = vadd.f32 %v736, %v737
        %v739 = vrot.slane %v738, 2
        %v740 = vadd.f32 %v738, %v739
        %v741 = vrot.slane %v740, 1
        %v742 = vadd.f32 %v740, %v741
        %v743 = vadd.f32 %v715, %v717
        %v744 = vadd.f32 %v743, %v719
        %v745 = vadd.f32 %v744, %v721
        %v746 = vadd.f32 %v745, %v723
        %v747 = vadd.f32 %v746, %v725
        %v748 = vadd.f32 %v747, %v727
        %v749 = vadd.f32 %v748, %v729
        %v750 = vrot.slane %v749, 4
        %v751 = vadd.f32 %v749, %v750
        %v752 = vrot.slane %v751, 2
        %v753 = vadd.f32 %v751, %v752
        %v754 = vrot.slane %v753, 1
        %v755 = vadd.f32 %v753, %v754
        %p756 = scmp.eq.s32.totalorder %s26, 0
        // Predicated region
        $region49: #{nfnet_forward.11} parent=47 // pred_check
          %p757 = pneg %p756
        $region50: #{nfnet_forward.11} parent=47 // pred_check_branch
          %759 = sbr.rel (%p757) target = $region52
        $region51: #{nfnet_forward.11} parent=47 // pred_region
          %v762 = vrot.slane %v755, 7
          %vm763 = vcmask 1040384
          %v764 = vsel %vm763, %v742, %v762
          %v766 = vlaneseq
          %vm767 = vcmp.ge.s32.totalorder %v766, 0
          %vm768 = vcmp.lt.s32.totalorder %v766, 256
          %vm769 = vmand %vm767, %vm768
          %770 = vst.msk [vmem:[#allocation2] sm:$0x3] %vm769, %v764
        $region52: #{nfnet_forward.11} parent=47 // pred_fallthru
          _
        %p771 = scmp.ne.s32.totalorder %s26, 0
        // Predicated region
        $region53: #{nfnet_forward.11} parent=47 // pred_check
          %p772 = pneg %p771
        $region54: #{nfnet_forward.11} parent=47 // pred_check_branch
          %774 = sbr.rel (%p772) target = $region56
        $region55: #{nfnet_forward.11} parent=47 // pred_region
          %v775 = vld [vmem:[#allocation2] sm:$0x3]
          %v778 = vrot.slane %v755, 7
          %vm779 = vcmask 1040384
          %v780 = vsel %vm779, %v742, %v778
          %v782 = vadd.f32 %v775, %v780
          %v783 = vlaneseq
          %vm784 = vcmp.ge.s32.totalorder %v783, 0
          %vm785 = vcmp.lt.s32.totalorder %v783, 256
          %vm786 = vmand %vm784, %vm785
          %787 = vst.msk [vmem:[#allocation2] sm:$0x3] %vm786, %v782
        $region56: #{nfnet_forward.11} parent=47 // pred_fallthru
          _
        // Predicated region
        $region57: #{nfnet_forward.11} parent=47 // pred_check
          %p788 = pneg %p756
        $region58: #{nfnet_forward.11} parent=47 // pred_check_branch
          %790 = sbr.rel (%p788) target = $region60
        $region59: #{nfnet_forward.11} parent=47 // pred_region
          %v791 = vld [vmem:[#allocation2] sm:$0x3]
          %v792 = vmul.f32 %v791, 0.015625
          %v794 = vperm.slane %v792, 0
          %v795 = vperm.slane %v792, 1
          %v798 = vpack.c.bf16 %v794, %v794
          %v799 = vpack.c.bf16 %v795, %v795
          %v800 = vld [vmem:[%s5] sm:$0xf]
          %v801 = vld [vmem:[%s5 + $0x4] sm:$0xf]
          %v802 = vld [vmem:[%s5 + $0x8] sm:$0xf]
          %v803 = vld [vmem:[%s5 + $0xc] sm:$0xf]
          %v804 = vld [vmem:[%s5 + $0x10] sm:$0xf]
          %v805 = vld [vmem:[%s5 + $0x14] sm:$0xf]
          %v806 = vld [vmem:[%s5 + $0x18] sm:$0xf]
          %v807 = vld [vmem:[%s5 + $0x1c] sm:$0xf]
          %v808 = vld [vmem:[%s5 + $0x20] sm:$0xf]
          %v809 = vld [vmem:[%s5 + $0x24] sm:$0xf]
          %v810 = vld [vmem:[%s5 + $0x28] sm:$0xf]
          %v811 = vld [vmem:[%s5 + $0x2c] sm:$0xf]
          %v812 = vld [vmem:[%s5 + $0x30] sm:$0xf]
          %v813 = vld [vmem:[%s5 + $0x34] sm:$0xf]
          %v814 = vld [vmem:[%s5 + $0x38] sm:$0xf]
          %v815 = vld [vmem:[%s5 + $0x3c] sm:$0xf]
          %v816 = vld [vmem:[%s5 + $0x40] sm:$0xf]
          %v817 = vld [vmem:[%s5 + $0x44] sm:$0xf]
          %v818 = vld [vmem:[%s5 + $0x48] sm:$0xf]
          %v819 = vld [vmem:[%s5 + $0x4c] sm:$0xf]
          %v820 = vld [vmem:[%s5 + $0x50] sm:$0xf]
          %v821 = vld [vmem:[%s5 + $0x54] sm:$0xf]
          %v822 = vld [vmem:[%s5 + $0x58] sm:$0xf]
          %v823 = vld [vmem:[%s5 + $0x5c] sm:$0xf]
          %v824 = vld [vmem:[%s5 + $0x60] sm:$0xf]
          %v825 = vld [vmem:[%s5 + $0x64] sm:$0xf]
          %v826 = vld [vmem:[%s5 + $0x68] sm:$0xf]
          %v827 = vld [vmem:[%s5 + $0x6c] sm:$0xf]
          %v828 = vld [vmem:[%s5 + $0x70] sm:$0xf]
          %v829 = vld [vmem:[%s5 + $0x74] sm:$0xf]
          %v830 = vld [vmem:[%s5 + $0x78] sm:$0xf]
          %v831 = vld [vmem:[%s5 + $0x7c] sm:$0xf]
          %v832 = vld [vmem:[%s6] sm:$0x1]
          %v865 = vunpack.c.l.b16 %v800
          %v866 = vunpack.c.l.b16 %v801
          %v867 = vunpack.c.l.b16 %v802
          %v868 = vunpack.c.l.b16 %v803
          %v869 = vunpack.c.l.b16 %v804
          %v870 = vunpack.c.l.b16 %v805
          %v871 = vunpack.c.l.b16 %v806
          %v872 = vunpack.c.l.b16 %v807
          %v873 = vunpack.c.l.b16 %v808
          %v874 = vunpack.c.l.b16 %v809
          %v875 = vunpack.c.l.b16 %v810
          %v876 = vunpack.c.l.b16 %v811
          %v877 = vunpack.c.l.b16 %v812
          %v878 = vunpack.c.l.b16 %v813
          %v879 = vunpack.c.l.b16 %v814
          %v880 = vunpack.c.l.b16 %v815
          %v881 = vunpack.c.l.b16 %v816
          %v882 = vunpack.c.l.b16 %v817
          %v883 = vunpack.c.l.b16 %v818
          %v884 = vunpack.c.l.b16 %v819
          %v885 = vunpack.c.l.b16 %v820
          %v886 = vunpack.c.l.b16 %v821
          %v887 = vunpack.c.l.b16 %v822
          %v888 = vunpack.c.l.b16 %v823
          %v889 = vunpack.c.l.b16 %v824
          %v890 = vunpack.c.l.b16 %v825
          %v891 = vunpack.c.l.b16 %v826
          %v892 = vunpack.c.l.b16 %v827
          %v893 = vunpack.c.l.b16 %v828
          %v894 = vunpack.c.l.b16 %v829
          %v895 = vunpack.c.l.b16 %v830
          %v896 = vunpack.c.l.b16 %v831
          %v897 = vpack.c.b16 %v866, %v865
          %v898 = vpack.c.b16 %v868, %v867
          %v899 = vpack.c.b16 %v870, %v869
          %v900 = vpack.c.b16 %v872, %v871
          %v901 = vpack.c.b16 %v874, %v873
          %v902 = vpack.c.b16 %v876, %v875
          %v903 = vpack.c.b16 %v878, %v877
          %v904 = vpack.c.b16 %v880, %v879
          %v905 = vpack.c.b16 %v882, %v881
          %v906 = vpack.c.b16 %v884, %v883
          %v907 = vpack.c.b16 %v886, %v885
          %v908 = vpack.c.b16 %v888, %v887
          %v909 = vpack.c.b16 %v890, %v889
          %v910 = vpack.c.b16 %v892, %v891
          %v911 = vpack.c.b16 %v894, %v893
          %v912 = vpack.c.b16 %v896, %v895
          %929 = vmatpush.bf16.msra.mxu0 %v904
          %930 = vmatpush.bf16.msra.mxu0 %v903
          %931 = vmatpush.bf16.msra.mxu0 %v902
          %932 = vmatpush.bf16.msra.mxu0 %v901
          %933 = vmatpush.bf16.msra.mxu0 %v900
          %934 = vmatpush.bf16.msra.mxu0 %v899
          %935 = vmatpush.bf16.msra.mxu0 %v898
          %936 = vmatpush.bf16.msra.mxu0 %v897
          %937 = vmatmul.bf16.gmra.mxu0 %v798
          %v938 = vpop.f32.mrf.mxu0
          %v939 = vadd.f32 %v832, %v938
          %v940 = vpop.f32.mrf.mxu0
          %941 = vdwg.mxu0
          %942 = vmatpush.bf16.msra.mxu0 %v912
          %943 = vmatpush.bf16.msra.mxu0 %v911
          %944 = vmatpush.bf16.msra.mxu0 %v910
          %945 = vmatpush.bf16.msra.mxu0 %v909
          %946 = vmatpush.bf16.msra.mxu0 %v908
          %947 = vmatpush.bf16.msra.mxu0 %v907
          %948 = vmatpush.bf16.msra.mxu0 %v906
          %949 = vmatpush.bf16.msra.mxu0 %v905
          %950 = vmatmul.bf16.gmra.mxu0 %v799
          %v951 = vpop.f32.mrf.mxu0
          %v952 = vadd.f32 %v939, %v951
          %v953 = vpop.f32.mrf.mxu0
          %954 = vdwg.mxu0
          %955 = vst [vmem:[%s330] sm:$0x1] %v952
        $region60: #{nfnet_forward.11} parent=47 // pred_fallthru
          _
        %s956 = sand.u32 %s207, 1
        %s957 = scalar_lea.sflag [#allocation4], %s956
        %s958 = sand.u32 %s207, 1
        %s959 = scalar_lea.vmem [#allocation3], %s958
        // Predicated region
        $region61: #{nfnet_forward.11} parent=47 // pred_check
          %p960 = pneg %p217
        $region62: #{nfnet_forward.11} parent=47 // pred_check_branch
          %962 = sbr.rel (%p960) target = $region64
        $region63: #{nfnet_forward.11} parent=47 // pred_region
          %964 = vsyncadd %s957, 0
          %s965 = scalar_lea.hbm %s7, %s25
          %s967 = sshll.u32 %s959, 4
          %s968 = int_to_ptr.vmem [resolvable:$true] %s967
          %s969 = sshll.u32 %s965, 4
          %s970 = int_to_ptr.hbm [resolvable:$true] %s969
          %972 = dma.vmem_to_hbm [thread:$0]  %s968, 16, %s970, %s957
        $region64: #{nfnet_forward.11} parent=47 // pred_fallthru
          _
      $region48: #{nfnet_forward.11} parent=5 // pred_fallthru
        _
      %p973 = scmp.le.s32.totalorder 2, %s16
      // Predicated region
      $region65: #{nfnet_forward.11} parent=5 // pred_check
        %p974 = pneg %p973
      $region66: #{nfnet_forward.11} parent=5 // pred_check_branch
        %976 = sbr.rel (%p974) target = $region68
      $region67: #{nfnet_forward.11} parent=5 // pred_region
        %s977 = ssub.s32 %s16, 2
        // Predicated region
        $region69: #{nfnet_forward.11} parent=67 // pred_check
          %p978 = pneg %p223
        $region70: #{nfnet_forward.11} parent=67 // pred_check_branch
          %980 = sbr.rel (%p978) target = $region72
        $region71: #{nfnet_forward.11} parent=67 // pred_region
          %s981 = sand.u32 %s208, 1
          %s982 = scalar_lea.sflag [#allocation4], %s981
          %s983 = sand.u32 %s208, 1
          %s984 = scalar_lea.vmem [#allocation3], %s983
          %986 = dma.done %s982, 16
        $region72: #{nfnet_forward.11} parent=67 // pred_fallthru
          _
      $region68: #{nfnet_forward.11} parent=5 // pred_fallthru
        _
    $region6: #{nfnet_forward.11} parent=1 // loop_footer
      %s20 = sadd.s32 1, %s16
    $region7: #{nfnet_forward.11} parent=1 // loop_footer_branch
      %15 = sbr.rel target = $region3
    $region8: #{nfnet_forward.11} parent=1 // loop_exit
      _
    %987 = vsyncpa [#allocation4], 1
    %s988 = scalar_lea.sflag [#allocation4], 1
    %989 = vsyncpa %s988, 1

</llo_original>
